<compile_context>
chip_gen: v7x
topology: tpu7x:2x2x1
jax: 0.10.0
libtpu: 0.0.40
codegen_flags: <defaults>
</compile_context>

<pallas_src>
import jax
import jax.numpy as jnp
from jax.experimental import pallas as pl
from jax.experimental.pallas import tpu as pltpu

NUM_CLASSES = 24
BN_EPS = 1e-5

# Row tiles (multiples of 16 so bf16 sublane tiles stay aligned).  Worst-case stage
# block: 4 taps * 512 rows * 144 * 2B ~= 0.56 MiB (x2 double buffering) -- far below
# the 32 MiB scoped default and v7x's 64 MiB physical VMEM, so no vmem_limit override.
TILE_N = 512   # conv-stage rows per grid step
TILE_B = 256   # classifier rows per grid step


def _round_up(x, m):
    return ((x + m - 1) // m) * m


# ----------------------------------------------------------------------------
# Pallas kernels
# ----------------------------------------------------------------------------
def _stage_kernel(p_ref, w_ref, b_ref, shift_ref, o_ref):
    """Fused Conv3x3 (im2col matmul) + bias + ReLU + 2x2/2 max-pool + BN shift.

    p_ref:     (4, TN, K)  bf16 im2col patches; leading axis = the 4 pool taps
    w_ref:     (K, Cout)   bf16 conv weight with BN scale pre-folded (resident)
    b_ref:     (1, Cout)   f32  conv bias * BN scale (resident)
    shift_ref: (1, Cout)   f32  BN shift = beta - mean*scale (resident)
    o_ref:     (TN, Cout)  bf16 pooled + normalized output rows
    """
    tn = p_ref.shape[1]
    # One MXU matmul for all four pool taps (single RHS push instead of four).
    p_all = jnp.concatenate([p_ref[0], p_ref[1], p_ref[2], p_ref[3]], axis=0)
    y = jnp.dot(p_all, w_ref[...], preferred_element_type=jnp.float32)   # (4*TN, Cout) f32
    # 2x2 stride-2 max-pool == elementwise max over the four tap slabs.
    m = jnp.maximum(jnp.maximum(y[0:tn], y[tn:2 * tn]),
                    jnp.maximum(y[2 * tn:3 * tn], y[3 * tn:4 * tn]))
    # bias + ReLU hoisted out of the max (max_i relu(z_i+b) == relu(max_i z_i + b));
    # BN scale already lives inside w/b (scale > 0), only the additive shift remains.
    o_ref[...] = (jnp.maximum(m + b_ref[...], 0.0) + shift_ref[...]).astype(o_ref.dtype)


def _classifier_kernel(x_ref, w_ref, b_ref, o_ref):
    """Collapsed classifier: fc2(fc1(x)) with no nonlinearity == single matmul."""
    y = jnp.dot(x_ref[...], w_ref[...], preferred_element_type=jnp.float32)
    o_ref[...] = (y + b_ref[...]).astype(o_ref.dtype)


# ----------------------------------------------------------------------------
# pallas_call wrappers (grid over rows, resident weights)
# ----------------------------------------------------------------------------
def _stage_pallas(patches, wm, bias, shift):
    taps, n, k = patches.shape
    cout = wm.shape[1]
    tile_n = min(TILE_N, _round_up(n, 16))
    return pl.pallas_call(
        _stage_kernel,
        out_shape=jax.ShapeDtypeStruct((n, cout), jnp.bfloat16),
        grid_spec=pltpu.PrefetchScalarGridSpec(
            num_scalar_prefetch=0,
            grid=(pl.cdiv(n, tile_n),),
            in_specs=[
                pl.BlockSpec((taps, tile_n, k), lambda i: (0, i, 0)),
                pl.BlockSpec((k, cout), lambda i: (0, 0)),     # resident weight
                pl.BlockSpec((1, cout), lambda i: (0, 0)),     # resident bias
                pl.BlockSpec((1, cout), lambda i: (0, 0)),     # resident BN shift
            ],
            out_specs=pl.BlockSpec((tile_n, cout), lambda i: (i, 0)),
        ),
        compiler_params=pltpu.CompilerParams(dimension_semantics=("parallel",)),
    )(patches, wm, bias, shift)


def _classifier_pallas(x, w, b):
    n, k = x.shape
    cout = w.shape[1]
    tile_b = min(TILE_B, _round_up(n, 16))
    return pl.pallas_call(
        _classifier_kernel,
        out_shape=jax.ShapeDtypeStruct((n, cout), jnp.float32),
        grid_spec=pltpu.PrefetchScalarGridSpec(
            num_scalar_prefetch=0,
            grid=(pl.cdiv(n, tile_b),),
            in_specs=[
                pl.BlockSpec((tile_b, k), lambda i: (i, 0)),
                pl.BlockSpec((k, cout), lambda i: (0, 0)),     # resident weight
                pl.BlockSpec((1, cout), lambda i: (0, 0)),     # resident bias
            ],
            out_specs=pl.BlockSpec((tile_b, cout), lambda i: (i, 0)),
        ),
        compiler_params=pltpu.CompilerParams(dimension_semantics=("parallel",)),
    )(x, w, b)


# ----------------------------------------------------------------------------
# Plain-JAX glue: padding / im2col / layout plumbing (data movement only)
# ----------------------------------------------------------------------------
def _im2col_pool_groups(x_nhwc):
    """x: (B, H, W, Cin) -> (4, B*(H//2)*(W//2), 9*Cin).

    Leading axis enumerates the 4 taps of the 2x2 stride-2 max-pool window; last axis
    is the 3x3xCin conv patch (kh-major, kw, cin-minor), matching the reshaped weight."""
    B, H, W, Cin = x_nhwc.shape
    Ho, Wo = H // 2, W // 2
    xp = jnp.pad(x_nhwc, ((0, 0), (1, 1), (1, 1), (0, 0)))
    cols = [xp[:, kh:kh + H, kw:kw + W, :] for kh in range(3) for kw in range(3)]
    pat = jnp.concatenate(cols, axis=-1)                       # (B, H, W, 9*Cin)
    groups = [pat[:, dh::2, dw::2, :].reshape(B * Ho * Wo, 9 * Cin)
              for dh in range(2) for dw in range(2)]
    return jnp.stack(groups, axis=0)


def _conv_w_to_matmul(w_oihw):
    # (Cout, Cin, 3, 3) -> (3, 3, Cin, Cout) -> (9*Cin, Cout)
    cout, cin = w_oihw.shape[0], w_oihw.shape[1]
    return jnp.transpose(w_oihw, (2, 3, 1, 0)).reshape(9 * cin, cout)


def prepare_params(params):
    """One-time prep: fold eval-mode BN into conv weights/bias, collapse fc1/fc2 into a
    single matmul, permute fc rows to NHWC flatten order, cast MXU operands to bf16."""
    def bn_fold(bn):
        scale = bn["gamma"] / jnp.sqrt(bn["var"] + BN_EPS)
        shift = bn["beta"] - bn["mean"] * scale
        return scale, shift

    s1, t1 = bn_fold(params["bn1"])
    s2, t2 = bn_fold(params["bn2"])
    # Folding BN scale through ReLU/max-pool is only valid for scale > 0
    # (true for eval-mode default stats: gamma=1, var=1).
    assert bool(jnp.all(s1 > 0)) and bool(jnp.all(s2 > 0))

    wm1 = _conv_w_to_matmul(params["conv1_w"]) * s1[None, :]
    wm2 = _conv_w_to_matmul(params["conv2_w"]) * s2[None, :]

    # classify: Linear(1568,60) -> Linear(60,24) with no activation -> one matmul.
    w_fc = params["fc1_w"].T @ params["fc2_w"].T                      # (1568, 24)
    b_fc = params["fc1_b"] @ params["fc2_w"].T + params["fc2_b"]      # (24,)
    # Re-order rows from PyTorch NCHW flatten (c*49+h*7+w) to NHWC flatten ((h*7+w)*32+c).
    w_fc = (w_fc.reshape(32, 7, 7, NUM_CLASSES)
                .transpose(1, 2, 0, 3)
                .reshape(32 * 7 * 7, NUM_CLASSES))

    return {
        "wm1": wm1.astype(jnp.bfloat16),
        "b1": (params["conv1_b"] * s1)[None, :].astype(jnp.float32),
        "shift1": t1[None, :].astype(jnp.float32),
        "wm2": wm2.astype(jnp.bfloat16),
        "b2": (params["conv2_b"] * s2)[None, :].astype(jnp.float32),
        "shift2": t2[None, :].astype(jnp.float32),
        "w_fc": w_fc.astype(jnp.bfloat16),
        "b_fc": b_fc[None, :].astype(jnp.float32),
    }


def cnn_forward(x_nchw, prep):
    """Pallas forward. x_nchw: (B, 1, 28, 28) float32 -> (B, 24) float32."""
    B = x_nchw.shape[0]
    x = jnp.transpose(x_nchw, (0, 2, 3, 1)).astype(jnp.bfloat16)  # NCHW -> NHWC (C=1)

    # stage 1: Conv(1->16) + ReLU + MaxPool + BN
    p1 = _im2col_pool_groups(x)                                   # (4, B*14*14, 9)
    y1 = _stage_pallas(p1, prep["wm1"], prep["b1"], prep["shift1"])
    y1 = y1.reshape(B, 14, 14, 16)

    # stage 2: Conv(16->32) + ReLU + MaxPool + BN
    p2 = _im2col_pool_groups(y1)                                  # (4, B*7*7, 144)
    y2 = _stage_pallas(p2, prep["wm2"], prep["b2"], prep["shift2"])

    # NHWC flatten: fc weights were pre-permuted, so no NCHW transpose is needed.
    flat = y2.reshape(B, 32 * 7 * 7)
    return _classifier_pallas(flat, prep["w_fc"], prep["b_fc"])


# ----------------------------------------------------------------------------
# Deterministic parameter init (PyTorch tensor shapes/conventions)
# ----------------------------------------------------------------------------
def init_params(key):
    ks = jax.random.split(key, 8)
    return {
        "conv1_w": jax.random.normal(ks[0], (16, 1, 3, 3), jnp.float32) * 0.10,   # OIHW
        "conv1_b": jax.random.normal(ks[1], (16,), jnp.float32) * 0.10,
        "conv2_w": jax.random.normal(ks[2], (32, 16, 3, 3), jnp.float32) * 0.05,  # OIHW
        "conv2_b": jax.random.normal(ks[3], (32,), jnp.float32) * 0.05,
        "fc1_w": jax.random.normal(ks[4], (60, 32 * 7 * 7), jnp.float32) * 0.02,  # (out,in)
        "fc1_b": jax.random.normal(ks[5], (60,), jnp.float32) * 0.02,
        "fc2_w": jax.random.normal(ks[6], (NUM_CLASSES, 60), jnp.float32) * 0.05,
        "fc2_b": jax.random.normal(ks[7], (NUM_CLASSES,), jnp.float32) * 0.05,
        # BatchNorm2d default init, eval mode
        "bn1": {"gamma": jnp.ones(16), "beta": jnp.zeros(16),
                "mean": jnp.zeros(16), "var": jnp.ones(16)},
        "bn2": {"gamma": jnp.ones(32), "beta": jnp.zeros(32),
                "mean": jnp.zeros(32), "var": jnp.ones(32)},
    }


# ----------------------------------------------------------------------------
# Independent pure-JAX (f32) reference mirroring the PyTorch forward pass
# ----------------------------------------------------------------------------
def reference_forward(x_nchw, params):
    def bn(y, p):
        s = p["gamma"] / jnp.sqrt(p["var"] + BN_EPS)
        t = p["beta"] - p["mean"] * s
        return y * s[None, :, None, None] + t[None, :, None, None]

    def conv(y, w, b):
        y = jax.lax.conv_general_dilated(
            y, w, (1, 1), ((1, 1), (1, 1)),
            dimension_numbers=("NCHW", "OIHW", "NCHW"))
        return y + b[None, :, None, None]

    def pool(y):
        return jax.lax.reduce_window(y, -jnp.inf, jax.lax.max,
                                     (1, 1, 2, 2), (1, 1, 2, 2), "VALID")

    y = bn(pool(jnp.maximum(conv(x_nchw, params["conv1_w"], params["conv1_b"]), 0.0)),
           params["bn1"])
    y = bn(pool(jnp.maximum(conv(y, params["conv2_w"], params["conv2_b"]), 0.0)),
           params["bn2"])
    flat = y.reshape(y.shape[0], -1)
    h = flat @ params["fc1_w"].T + params["fc1_b"]
    return h @ params["fc2_w"].T + params["fc2_b"]


if __name__ == "__main__":
    key = jax.random.PRNGKey(0)
    k_x, k_p = jax.random.split(key)
    params = init_params(k_p)
    # Input shape forced by the module: 1 channel, 28x28 (so the flatten is 32*7*7).
    x = jax.random.normal(k_x, (2, 1, 28, 28), jnp.float32)

    prep = prepare_params(params)
    out = jax.jit(cnn_forward)(x, prep)
    out = jax.block_until_ready(out)

    ref = reference_forward(x, params)
    assert out.shape == (2, NUM_CLASSES), out.shape
    err = float(jnp.max(jnp.abs(out - ref)))
    # Tolerance widened vs. the f32 reference to cover bf16 MXU operand rounding and
    # the fc1/fc2 algebraic collapse (both change rounding only).
    assert jnp.allclose(out, ref, atol=2e-2, rtol=2e-2), err

    print("KERNEL_OK")
</pallas_src>

<mosaic_0001>
module attributes {stable_mosaic.version = 11 : i64} {
  func.func @_stage_kernel(%arg0: i32, %arg1: memref<4x400x9xbf16, #tpu.memory_space<vmem>>, %arg2: memref<9x16xbf16, #tpu.memory_space<vmem>>, %arg3: memref<1x16xf32, #tpu.memory_space<vmem>>, %arg4: memref<1x16xf32, #tpu.memory_space<vmem>>, %arg5: memref<400x16xbf16, #tpu.memory_space<vmem>>) attributes {dimension_semantics = [#tpu.dimension_semantics<parallel>], iteration_bounds = array<i64: 1>, scalar_prefetch = 0 : i64, scratch_operands = 0 : i64, tpu.core_type = #tpu.core_type<tc>, window_params = [{transform_indices = @transform_0, window_bounds = array<i64: 4, 400, 9>}, {pipeline_mode = #tpu.pipeline_mode<synchronous>, transform_indices = @transform_1, window_bounds = array<i64: 9, 16>}, {pipeline_mode = #tpu.pipeline_mode<synchronous>, transform_indices = @transform_2, window_bounds = array<i64: 1, 16>}, {pipeline_mode = #tpu.pipeline_mode<synchronous>, transform_indices = @transform_3, window_bounds = array<i64: 1, 16>}, {transform_indices = @transform_4, window_bounds = array<i64: 400, 16>}]} {
    %c0 = arith.constant 0 : index
    %c0_0 = arith.constant 0 : index
    %c0_1 = arith.constant 0 : index
    %0 = vector.load %arg1[%c0, %c0_0, %c0_1] : memref<4x400x9xbf16, #tpu.memory_space<vmem>>, vector<1x400x9xbf16>
    %1 = vector.shape_cast %0 : vector<1x400x9xbf16> to vector<400x9xbf16>
    %c1 = arith.constant 1 : index
    %c0_2 = arith.constant 0 : index
    %c0_3 = arith.constant 0 : index
    %2 = vector.load %arg1[%c1, %c0_2, %c0_3] : memref<4x400x9xbf16, #tpu.memory_space<vmem>>, vector<1x400x9xbf16>
    %3 = vector.shape_cast %2 : vector<1x400x9xbf16> to vector<400x9xbf16>
    %c2 = arith.constant 2 : index
    %c0_4 = arith.constant 0 : index
    %c0_5 = arith.constant 0 : index
    %4 = vector.load %arg1[%c2, %c0_4, %c0_5] : memref<4x400x9xbf16, #tpu.memory_space<vmem>>, vector<1x400x9xbf16>
    %5 = vector.shape_cast %4 : vector<1x400x9xbf16> to vector<400x9xbf16>
    %c3 = arith.constant 3 : index
    %c0_6 = arith.constant 0 : index
    %c0_7 = arith.constant 0 : index
    %6 = vector.load %arg1[%c3, %c0_6, %c0_7] : memref<4x400x9xbf16, #tpu.memory_space<vmem>>, vector<1x400x9xbf16>
    %7 = vector.shape_cast %6 : vector<1x400x9xbf16> to vector<400x9xbf16>
    %8 = tpu.concatenate %1, %3, %5, %7 in 0 : vector<400x9xbf16>, vector<400x9xbf16>, vector<400x9xbf16>, vector<400x9xbf16> -> vector<1600x9xbf16>
    %c0_8 = arith.constant 0 : index
    %c0_9 = arith.constant 0 : index
    %9 = vector.load %arg2[%c0_8, %c0_9] : memref<9x16xbf16, #tpu.memory_space<vmem>>, vector<9x16xbf16>
    %cst = arith.constant dense<0.000000e+00> : vector<1600x16xf32>
    %10 = tpu.matmul %8, %9, %cst {dimension_numbers = #tpu.dot_dimension_numbers<[1], [0], [0], [1], [0, 0, 1, 1], [], []>} : vector<1600x9xbf16>, vector<9x16xbf16>, vector<1600x16xf32> -> vector<1600x16xf32>
    %11 = vector.extract_strided_slice %10 {offsets = [0, 0], sizes = [400, 16], strides = [1, 1]} : vector<1600x16xf32> to vector<400x16xf32>
    %12 = vector.extract_strided_slice %10 {offsets = [400, 0], sizes = [400, 16], strides = [1, 1]} : vector<1600x16xf32> to vector<400x16xf32>
    %13 = arith.maximumf %11, %12 : vector<400x16xf32>
    %14 = vector.extract_strided_slice %10 {offsets = [800, 0], sizes = [400, 16], strides = [1, 1]} : vector<1600x16xf32> to vector<400x16xf32>
    %15 = vector.extract_strided_slice %10 {offsets = [1200, 0], sizes = [400, 16], strides = [1, 1]} : vector<1600x16xf32> to vector<400x16xf32>
    %16 = arith.maximumf %14, %15 : vector<400x16xf32>
    %17 = arith.maximumf %13, %16 : vector<400x16xf32>
    %c0_10 = arith.constant 0 : index
    %c0_11 = arith.constant 0 : index
    %18 = vector.load %arg3[%c0_10, %c0_11] : memref<1x16xf32, #tpu.memory_space<vmem>>, vector<1x16xf32>
    %19 = vector.broadcast %18 : vector<1x16xf32> to vector<400x16xf32>
    %20 = arith.addf %17, %19 : vector<400x16xf32>
    %cst_12 = arith.constant 0.000000e+00 : f32
    %21 = vector.broadcast %cst_12 : f32 to vector<400x16xf32>
    %22 = arith.maximumf %20, %21 : vector<400x16xf32>
    %c0_13 = arith.constant 0 : index
    %c0_14 = arith.constant 0 : index
    %23 = vector.load %arg4[%c0_13, %c0_14] : memref<1x16xf32, #tpu.memory_space<vmem>>, vector<1x16xf32>
    %24 = vector.broadcast %23 : vector<1x16xf32> to vector<400x16xf32>
    %25 = arith.addf %22, %24 : vector<400x16xf32>
    %26 = arith.truncf %25 : vector<400x16xf32> to vector<400x16xbf16>
    %c0_15 = arith.constant 0 : index
    %c0_16 = arith.constant 0 : index
    %27 = vector.load %arg5[%c0_15, %c0_16] : memref<400x16xbf16, #tpu.memory_space<vmem>>, vector<400x16xbf16>
    tpu.vector_store %arg5[%c0_15, %c0_16], %26 {strides = array<i32>} : memref<400x16xbf16, #tpu.memory_space<vmem>>, vector<400x16xbf16>,
    return
  }
  func.func @transform_0(%arg0: i32) -> (i32, i32, i32) {
    %c0_i32 = arith.constant 0 : i32
    %c0_i32_0 = arith.constant 0 : i32
    %c0_i32_1 = arith.constant 0 : i32
    return %c0_i32, %arg0, %c0_i32_0 : i32, i32, i32
  }
  func.func @transform_1(%arg0: i32) -> (i32, i32) {
    %c0_i32 = arith.constant 0 : i32
    %c0_i32_0 = arith.constant 0 : i32
    %c0_i32_1 = arith.constant 0 : i32
    return %c0_i32, %c0_i32_0 : i32, i32
  }
  func.func @transform_2(%arg0: i32) -> (i32, i32) {
    %c0_i32 = arith.constant 0 : i32
    %c0_i32_0 = arith.constant 0 : i32
    %c0_i32_1 = arith.constant 0 : i32
    return %c0_i32, %c0_i32_0 : i32, i32
  }
  func.func @transform_3(%arg0: i32) -> (i32, i32) {
    %c0_i32 = arith.constant 0 : i32
    %c0_i32_0 = arith.constant 0 : i32
    %c0_i32_1 = arith.constant 0 : i32
    return %c0_i32, %c0_i32_0 : i32, i32
  }
  func.func @transform_4(%arg0: i32) -> (i32, i32) {
    %c0_i32 = arith.constant 0 : i32
    %c0_i32_0 = arith.constant 0 : i32
    return %arg0, %c0_i32 : i32, i32
  }
}

module attributes {stable_mosaic.version = 11 : i64} {
  func.func @_stage_kernel(%arg0: i32, %arg1: memref<4x112x144xbf16, #tpu.memory_space<vmem>>, %arg2: memref<144x32xbf16, #tpu.memory_space<vmem>>, %arg3: memref<1x32xf32, #tpu.memory_space<vmem>>, %arg4: memref<1x32xf32, #tpu.memory_space<vmem>>, %arg5: memref<112x32xbf16, #tpu.memory_space<vmem>>) attributes {dimension_semantics = [#tpu.dimension_semantics<parallel>], iteration_bounds = array<i64: 1>, scalar_prefetch = 0 : i64, scratch_operands = 0 : i64, tpu.core_type = #tpu.core_type<tc>, window_params = [{transform_indices = @transform_0, window_bounds = array<i64: 4, 112, 144>}, {pipeline_mode = #tpu.pipeline_mode<synchronous>, transform_indices = @transform_1, window_bounds = array<i64: 144, 32>}, {pipeline_mode = #tpu.pipeline_mode<synchronous>, transform_indices = @transform_2, window_bounds = array<i64: 1, 32>}, {pipeline_mode = #tpu.pipeline_mode<synchronous>, transform_indices = @transform_3, window_bounds = array<i64: 1, 32>}, {transform_indices = @transform_4, window_bounds = array<i64: 112, 32>}]} {
    %c0 = arith.constant 0 : index
    %c0_0 = arith.constant 0 : index
    %c0_1 = arith.constant 0 : index
    %0 = vector.load %arg1[%c0, %c0_0, %c0_1] : memref<4x112x144xbf16, #tpu.memory_space<vmem>>, vector<1x112x144xbf16>
    %1 = vector.shape_cast %0 : vector<1x112x144xbf16> to vector<112x144xbf16>
    %c1 = arith.constant 1 : index
    %c0_2 = arith.constant 0 : index
    %c0_3 = arith.constant 0 : index
    %2 = vector.load %arg1[%c1, %c0_2, %c0_3] : memref<4x112x144xbf16, #tpu.memory_space<vmem>>, vector<1x112x144xbf16>
    %3 = vector.shape_cast %2 : vector<1x112x144xbf16> to vector<112x144xbf16>
    %c2 = arith.constant 2 : index
    %c0_4 = arith.constant 0 : index
    %c0_5 = arith.constant 0 : index
    %4 = vector.load %arg1[%c2, %c0_4, %c0_5] : memref<4x112x144xbf16, #tpu.memory_space<vmem>>, vector<1x112x144xbf16>
    %5 = vector.shape_cast %4 : vector<1x112x144xbf16> to vector<112x144xbf16>
    %c3 = arith.constant 3 : index
    %c0_6 = arith.constant 0 : index
    %c0_7 = arith.constant 0 : index
    %6 = vector.load %arg1[%c3, %c0_6, %c0_7] : memref<4x112x144xbf16, #tpu.memory_space<vmem>>, vector<1x112x144xbf16>
    %7 = vector.shape_cast %6 : vector<1x112x144xbf16> to vector<112x144xbf16>
    %8 = tpu.concatenate %1, %3, %5, %7 in 0 : vector<112x144xbf16>, vector<112x144xbf16>, vector<112x144xbf16>, vector<112x144xbf16> -> vector<448x144xbf16>
    %c0_8 = arith.constant 0 : index
    %c0_9 = arith.constant 0 : index
    %9 = vector.load %arg2[%c0_8, %c0_9] : memref<144x32xbf16, #tpu.memory_space<vmem>>, vector<144x32xbf16>
    %cst = arith.constant dense<0.000000e+00> : vector<448x32xf32>
    %10 = tpu.matmul %8, %9, %cst {dimension_numbers = #tpu.dot_dimension_numbers<[1], [0], [0], [1], [0, 0, 1, 1], [], []>} : vector<448x144xbf16>, vector<144x32xbf16>, vector<448x32xf32> -> vector<448x32xf32>
    %11 = vector.extract_strided_slice %10 {offsets = [0, 0], sizes = [112, 32], strides = [1, 1]} : vector<448x32xf32> to vector<112x32xf32>
    %12 = vector.extract_strided_slice %10 {offsets = [112, 0], sizes = [112, 32], strides = [1, 1]} : vector<448x32xf32> to vector<112x32xf32>
    %13 = arith.maximumf %11, %12 : vector<112x32xf32>
    %14 = vector.extract_strided_slice %10 {offsets = [224, 0], sizes = [112, 32], strides = [1, 1]} : vector<448x32xf32> to vector<112x32xf32>
    %15 = vector.extract_strided_slice %10 {offsets = [336, 0], sizes = [112, 32], strides = [1, 1]} : vector<448x32xf32> to vector<112x32xf32>
    %16 = arith.maximumf %14, %15 : vector<112x32xf32>
    %17 = arith.maximumf %13, %16 : vector<112x32xf32>
    %c0_10 = arith.constant 0 : index
    %c0_11 = arith.constant 0 : index
    %18 = vector.load %arg3[%c0_10, %c0_11] : memref<1x32xf32, #tpu.memory_space<vmem>>, vector<1x32xf32>
    %19 = vector.broadcast %18 : vector<1x32xf32> to vector<112x32xf32>
    %20 = arith.addf %17, %19 : vector<112x32xf32>
    %cst_12 = arith.constant 0.000000e+00 : f32
    %21 = vector.broadcast %cst_12 : f32 to vector<112x32xf32>
    %22 = arith.maximumf %20, %21 : vector<112x32xf32>
    %c0_13 = arith.constant 0 : index
    %c0_14 = arith.constant 0 : index
    %23 = vector.load %arg4[%c0_13, %c0_14] : memref<1x32xf32, #tpu.memory_space<vmem>>, vector<1x32xf32>
    %24 = vector.broadcast %23 : vector<1x32xf32> to vector<112x32xf32>
    %25 = arith.addf %22, %24 : vector<112x32xf32>
    %26 = arith.truncf %25 : vector<112x32xf32> to vector<112x32xbf16>
    %c0_15 = arith.constant 0 : index
    %c0_16 = arith.constant 0 : index
    %27 = vector.load %arg5[%c0_15, %c0_16] : memref<112x32xbf16, #tpu.memory_space<vmem>>, vector<112x32xbf16>
    tpu.vector_store %arg5[%c0_15, %c0_16], %26 {strides = array<i32>} : memref<112x32xbf16, #tpu.memory_space<vmem>>, vector<112x32xbf16>,
    return
  }
  func.func @transform_0(%arg0: i32) -> (i32, i32, i32) {
    %c0_i32 = arith.constant 0 : i32
    %c0_i32_0 = arith.constant 0 : i32
    %c0_i32_1 = arith.constant 0 : i32
    return %c0_i32, %arg0, %c0_i32_0 : i32, i32, i32
  }
  func.func @transform_1(%arg0: i32) -> (i32, i32) {
    %c0_i32 = arith.constant 0 : i32
    %c0_i32_0 = arith.constant 0 : i32
    %c0_i32_1 = arith.constant 0 : i32
    return %c0_i32, %c0_i32_0 : i32, i32
  }
  func.func @transform_2(%arg0: i32) -> (i32, i32) {
    %c0_i32 = arith.constant 0 : i32
    %c0_i32_0 = arith.constant 0 : i32
    %c0_i32_1 = arith.constant 0 : i32
    return %c0_i32, %c0_i32_0 : i32, i32
  }
  func.func @transform_3(%arg0: i32) -> (i32, i32) {
    %c0_i32 = arith.constant 0 : i32
    %c0_i32_0 = arith.constant 0 : i32
    %c0_i32_1 = arith.constant 0 : i32
    return %c0_i32, %c0_i32_0 : i32, i32
  }
  func.func @transform_4(%arg0: i32) -> (i32, i32) {
    %c0_i32 = arith.constant 0 : i32
    %c0_i32_0 = arith.constant 0 : i32
    return %arg0, %c0_i32 : i32, i32
  }
}

module attributes {stable_mosaic.version = 11 : i64} {
  func.func @_classifier_kernel(%arg0: i32, %arg1: memref<16x1568xbf16, #tpu.memory_space<vmem>>, %arg2: memref<1568x24xbf16, #tpu.memory_space<vmem>>, %arg3: memref<1x24xf32, #tpu.memory_space<vmem>>, %arg4: memref<16x24xf32, #tpu.memory_space<vmem>>) attributes {dimension_semantics = [#tpu.dimension_semantics<parallel>], iteration_bounds = array<i64: 1>, scalar_prefetch = 0 : i64, scratch_operands = 0 : i64, tpu.core_type = #tpu.core_type<tc>, window_params = [{transform_indices = @transform_0, window_bounds = array<i64: 16, 1568>}, {pipeline_mode = #tpu.pipeline_mode<synchronous>, transform_indices = @transform_1, window_bounds = array<i64: 1568, 24>}, {pipeline_mode = #tpu.pipeline_mode<synchronous>, transform_indices = @transform_2, window_bounds = array<i64: 1, 24>}, {transform_indices = @transform_3, window_bounds = array<i64: 16, 24>}]} {
    %c0 = arith.constant 0 : index
    %c0_0 = arith.constant 0 : index
    %0 = vector.load %arg1[%c0, %c0_0] : memref<16x1568xbf16, #tpu.memory_space<vmem>>, vector<16x1568xbf16>
    %c0_1 = arith.constant 0 : index
    %c0_2 = arith.constant 0 : index
    %1 = vector.load %arg2[%c0_1, %c0_2] : memref<1568x24xbf16, #tpu.memory_space<vmem>>, vector<1568x24xbf16>
    %cst = arith.constant dense<0.000000e+00> : vector<16x24xf32>
    %2 = tpu.matmul %0, %1, %cst {dimension_numbers = #tpu.dot_dimension_numbers<[1], [0], [0], [1], [0, 0, 1, 1], [], []>} : vector<16x1568xbf16>, vector<1568x24xbf16>, vector<16x24xf32> -> vector<16x24xf32>
    %c0_3 = arith.constant 0 : index
    %c0_4 = arith.constant 0 : index
    %3 = vector.load %arg3[%c0_3, %c0_4] : memref<1x24xf32, #tpu.memory_space<vmem>>, vector<1x24xf32>
    %4 = vector.broadcast %3 : vector<1x24xf32> to vector<16x24xf32>
    %5 = arith.addf %2, %4 : vector<16x24xf32>
    %c0_5 = arith.constant 0 : index
    %c0_6 = arith.constant 0 : index
    %6 = vector.load %arg4[%c0_5, %c0_6] : memref<16x24xf32, #tpu.memory_space<vmem>>, vector<16x24xf32>
    tpu.vector_store %arg4[%c0_5, %c0_6], %5 {strides = array<i32>} : memref<16x24xf32, #tpu.memory_space<vmem>>, vector<16x24xf32>,
    return
  }
  func.func @transform_0(%arg0: i32) -> (i32, i32) {
    %c0_i32 = arith.constant 0 : i32
    %c0_i32_0 = arith.constant 0 : i32
    return %arg0, %c0_i32 : i32, i32
  }
  func.func @transform_1(%arg0: i32) -> (i32, i32) {
    %c0_i32 = arith.constant 0 : i32
    %c0_i32_0 = arith.constant 0 : i32
    %c0_i32_1 = arith.constant 0 : i32
    return %c0_i32, %c0_i32_0 : i32, i32
  }
  func.func @transform_2(%arg0: i32) -> (i32, i32) {
    %c0_i32 = arith.constant 0 : i32
    %c0_i32_0 = arith.constant 0 : i32
    %c0_i32_1 = arith.constant 0 : i32
    return %c0_i32, %c0_i32_0 : i32, i32
  }
  func.func @transform_3(%arg0: i32) -> (i32, i32) {
    %c0_i32 = arith.constant 0 : i32
    %c0_i32_0 = arith.constant 0 : i32
    return %arg0, %c0_i32 : i32, i32
  }
}

</mosaic_0001>

<llo_original>
// kernel: cnn_forward.3
$region0: #{cnn_forward.3}
  #allocation0 [shape = 'u32[]', space=smem, size = 0x4, offset = 0x4, fixed_abs, tag = 'smem constant byte address 0x4 - core index']
  #allocation1 [shape = 'u32[144,128]{1,0:T(1,128)}', space=vmem, size = 0x12000, scoped, tag = 'internal scratch']
  %s0 = inlined_call_operand.vmem [shape: bf16[4,392,9], index: 0, kind: input, shape index: {}]
  %s1 = inlined_call_operand.vmem [shape: bf16[9,16], index: 1, kind: input, shape index: {}]
  %s2 = inlined_call_operand.vmem [shape: f32[1,16], index: 2, kind: input, shape index: {}]
  %s3 = inlined_call_operand.vmem [shape: f32[1,16], index: 3, kind: input, shape index: {}]
  %s4 = inlined_call_operand.vmem [shape: bf16[392,16], index: 4, kind: output, shape index: {}]
  %s5 = sld [smem:[#allocation0]]
  $region104: #{cnn_forward.3} parent=0
    _
  %s7 = ssub.s32 1, %s5
  %s8 = scalar_select 0, %s7, %s5
  $region1: #{cnn_forward.3} parent=0
    #allocation2 [shape = 'u8[409600]{0}', space=vmem, size = 0x64000, scoped, tag = 'input window, operand 0, single buffered']
    #allocation3 [shape = 'u8[102400]{0}', space=vmem, size = 0x19000, scoped, tag = 'output window, operand 0, single buffered']
    // Predicated region
    $region2: #{cnn_forward.3} parent=1 // pred_check
      _
    $region3: #{cnn_forward.3} parent=1 // pred_check_branch
      %10 = sbr.rel (0) target = $region5
    $region4: #{cnn_forward.3} parent=1 // pred_region
      // Predicated region
      $region6: #{cnn_forward.3} parent=4 // pred_check
        _
      $region7: #{cnn_forward.3} parent=4 // pred_check_branch
        %12 = sbr.rel (0) target = $region9
      $region8: #{cnn_forward.3} parent=4 // pred_region
        // Predicated region
        $region10: #{cnn_forward.3} parent=8 // pred_check
          _
        $region11: #{cnn_forward.3} parent=8 // pred_check_branch
          %14 = sbr.rel target = $region13
        $region12: #{cnn_forward.3} parent=8 // pred_region
          // Predicated region
          $region25: #{cnn_forward.3} parent=12 // pred_check
            _
          $region26: #{cnn_forward.3} parent=12 // pred_check_branch
            %419 = sbr.rel (0) target = $region28
          $region27: #{cnn_forward.3} parent=12 // pred_region
            loop: start=0, step=1, limit=1
            $region29: #{cnn_forward.3} parent=27 // loop_pre_header
              _
            $region30: #{cnn_forward.3} parent=27 // loop_header
              %s421 = sphi 0, %s425
              %p422 = scmp.ge.s32.totalorder %s421, 1
              %s426 = sphi %s0, %s0
              %s427 = sphi [#allocation2], [#allocation2]
            $region31: #{cnn_forward.3} parent=27 // loop_header_branch
              %424 = sbr.rel (%p422) target = $region35
            $region32: #{cnn_forward.3} parent=27 // loop_body
              _
            $region33: #{cnn_forward.3} parent=27 // loop_footer
              %s425 = sadd.s32 1, %s421
            $region34: #{cnn_forward.3} parent=27 // loop_footer_branch
              %420 = sbr.rel target = $region30
            $region35: #{cnn_forward.3} parent=27 // loop_exit
              _
            loop: start=0, step=1, limit=1
            $region36: #{cnn_forward.3} parent=27 // loop_pre_header
              _
            $region37: #{cnn_forward.3} parent=27 // loop_header
              %s430 = sphi 0, %s434
              %p431 = scmp.ge.s32.totalorder %s430, 1
              %s435 = sphi %s0, %s0
              %s436 = sphi [#allocation2], [#allocation2]
            $region38: #{cnn_forward.3} parent=27 // loop_header_branch
              %433 = sbr.rel (%p431) target = $region42
            $region39: #{cnn_forward.3} parent=27 // loop_body
              %v437 = vld [vmem:[%s435] sm:$0xf]
              %438 = vst [vmem:[%s436] sm:$0xf] %v437
              %v439 = vld [vmem:[%s435 + $0x4] sm:$0xf]
              %440 = vst [vmem:[%s436 + $0x4] sm:$0xf] %v439
              %v441 = vld [vmem:[%s435 + $0x8] sm:$0xf]
              %442 = vst [vmem:[%s436 + $0x8] sm:$0xf] %v441
              %v443 = vld [vmem:[%s435 + $0xc] sm:$0xf]
              %444 = vst [vmem:[%s436 + $0xc] sm:$0xf] %v443
              %v445 = vld [vmem:[%s435 + $0x10] sm:$0xf]
              %446 = vst [vmem:[%s436 + $0x10] sm:$0xf] %v445
              %v447 = vld [vmem:[%s435 + $0x14] sm:$0xf]
              %448 = vst [vmem:[%s436 + $0x14] sm:$0xf] %v447
              %v449 = vld [vmem:[%s435 + $0x18] sm:$0xf]
              %450 = vst [vmem:[%s436 + $0x18] sm:$0xf] %v449
              %v451 = vld [vmem:[%s435 + $0x1c] sm:$0xf]
              %452 = vst [vmem:[%s436 + $0x1c] sm:$0xf] %v451
              %v453 = vld [vmem:[%s435 + $0x20] sm:$0xf]
              %454 = vst [vmem:[%s436 + $0x20] sm:$0xf] %v453
              %v455 = vld [vmem:[%s435 + $0x24] sm:$0xf]
              %456 = vst [vmem:[%s436 + $0x24] sm:$0xf] %v455
              %v457 = vld [vmem:[%s435 + $0x28] sm:$0xf]
              %458 = vst [vmem:[%s436 + $0x28] sm:$0xf] %v457
              %v459 = vld [vmem:[%s435 + $0x2c] sm:$0xf]
              %460 = vst [vmem:[%s436 + $0x2c] sm:$0xf] %v459
              %v461 = vld [vmem:[%s435 + $0x30] sm:$0xf]
              %462 = vst [vmem:[%s436 + $0x30] sm:$0xf] %v461
              %v463 = vld [vmem:[%s435 + $0x34] sm:$0xf]
              %464 = vst [vmem:[%s436 + $0x34] sm:$0xf] %v463
              %v465 = vld [vmem:[%s435 + $0x38] sm:$0xf]
              %466 = vst [vmem:[%s436 + $0x38] sm:$0xf] %v465
              %v467 = vld [vmem:[%s435 + $0x3c] sm:$0xf]
              %468 = vst [vmem:[%s436 + $0x3c] sm:$0xf] %v467
              %v469 = vld [vmem:[%s435 + $0x40] sm:$0xf]
              %470 = vst [vmem:[%s436 + $0x40] sm:$0xf] %v469
              %v471 = vld [vmem:[%s435 + $0x44] sm:$0xf]
              %472 = vst [vmem:[%s436 + $0x44] sm:$0xf] %v471
              %v473 = vld [vmem:[%s435 + $0x48] sm:$0xf]
              %474 = vst [vmem:[%s436 + $0x48] sm:$0xf] %v473
              %v475 = vld [vmem:[%s435 + $0x4c] sm:$0xf]
              %476 = vst [vmem:[%s436 + $0x4c] sm:$0xf] %v475
              %v477 = vld [vmem:[%s435 + $0x50] sm:$0xf]
              %478 = vst [vmem:[%s436 + $0x50] sm:$0xf] %v477
              %v479 = vld [vmem:[%s435 + $0x54] sm:$0xf]
              %480 = vst [vmem:[%s436 + $0x54] sm:$0xf] %v479
              %v481 = vld [vmem:[%s435 + $0x58] sm:$0xf]
              %482 = vst [vmem:[%s436 + $0x58] sm:$0xf] %v481
              %v483 = vld [vmem:[%s435 + $0x5c] sm:$0xf]
              %484 = vst [vmem:[%s436 + $0x5c] sm:$0xf] %v483
              %v485 = vld [vmem:[%s435 + $0x60] sm:$0xf]
              %486 = vst [vmem:[%s436 + $0x60] sm:$0xf] %v485
              %v487 = vld [vmem:[%s435 + $0x64] sm:$0xf]
              %488 = vst [vmem:[%s436 + $0x64] sm:$0xf] %v487
              %v489 = vld [vmem:[%s435 + $0x68] sm:$0xf]
              %490 = vst [vmem:[%s436 + $0x68] sm:$0xf] %v489
              %v491 = vld [vmem:[%s435 + $0x6c] sm:$0xf]
              %492 = vst [vmem:[%s436 + $0x6c] sm:$0xf] %v491
              %v493 = vld [vmem:[%s435 + $0x70] sm:$0xf]
              %494 = vst [vmem:[%s436 + $0x70] sm:$0xf] %v493
              %v495 = vld [vmem:[%s435 + $0x74] sm:$0xf]
              %496 = vst [vmem:[%s436 + $0x74] sm:$0xf] %v495
              %v497 = vld [vmem:[%s435 + $0x78] sm:$0xf]
              %498 = vst [vmem:[%s436 + $0x78] sm:$0xf] %v497
              %v499 = vld [vmem:[%s435 + $0x7c] sm:$0xf]
              %500 = vst [vmem:[%s436 + $0x7c] sm:$0xf] %v499
              %v501 = vld [vmem:[%s435 + $0x80] sm:$0xf]
              %502 = vst [vmem:[%s436 + $0x80] sm:$0xf] %v501
              %v503 = vld [vmem:[%s435 + $0x84] sm:$0xf]
              %504 = vst [vmem:[%s436 + $0x84] sm:$0xf] %v503
              %v505 = vld [vmem:[%s435 + $0x88] sm:$0xf]
              %506 = vst [vmem:[%s436 + $0x88] sm:$0xf] %v505
              %v507 = vld [vmem:[%s435 + $0x8c] sm:$0xf]
              %508 = vst [vmem:[%s436 + $0x8c] sm:$0xf] %v507
              %v509 = vld [vmem:[%s435 + $0x90] sm:$0xf]
              %510 = vst [vmem:[%s436 + $0x90] sm:$0xf] %v509
              %v511 = vld [vmem:[%s435 + $0x94] sm:$0xf]
              %512 = vst [vmem:[%s436 + $0x94] sm:$0xf] %v511
              %v513 = vld [vmem:[%s435 + $0x98] sm:$0xf]
              %514 = vst [vmem:[%s436 + $0x98] sm:$0xf] %v513
              %v515 = vld [vmem:[%s435 + $0x9c] sm:$0xf]
              %516 = vst [vmem:[%s436 + $0x9c] sm:$0xf] %v515
              %v517 = vld [vmem:[%s435 + $0xa0] sm:$0xf]
              %518 = vst [vmem:[%s436 + $0xa0] sm:$0xf] %v517
              %v519 = vld [vmem:[%s435 + $0xa4] sm:$0xf]
              %520 = vst [vmem:[%s436 + $0xa4] sm:$0xf] %v519
              %v521 = vld [vmem:[%s435 + $0xa8] sm:$0xf]
              %522 = vst [vmem:[%s436 + $0xa8] sm:$0xf] %v521
              %v523 = vld [vmem:[%s435 + $0xac] sm:$0xf]
              %524 = vst [vmem:[%s436 + $0xac] sm:$0xf] %v523
              %v525 = vld [vmem:[%s435 + $0xb0] sm:$0xf]
              %526 = vst [vmem:[%s436 + $0xb0] sm:$0xf] %v525
              %v527 = vld [vmem:[%s435 + $0xb4] sm:$0xf]
              %528 = vst [vmem:[%s436 + $0xb4] sm:$0xf] %v527
              %v529 = vld [vmem:[%s435 + $0xb8] sm:$0xf]
              %530 = vst [vmem:[%s436 + $0xb8] sm:$0xf] %v529
              %v531 = vld [vmem:[%s435 + $0xbc] sm:$0xf]
              %532 = vst [vmem:[%s436 + $0xbc] sm:$0xf] %v531
              %v533 = vld [vmem:[%s435 + $0xc0] sm:$0xf]
              %534 = vst [vmem:[%s436 + $0xc0] sm:$0xf] %v533
              %v535 = vld [vmem:[%s435 + $0xc4] sm:$0xf]
              %536 = vst [vmem:[%s436 + $0xc8] sm:$0xf] %v535
              %v537 = vld [vmem:[%s435 + $0xc8] sm:$0xf]
              %538 = vst [vmem:[%s436 + $0xcc] sm:$0xf] %v537
              %v539 = vld [vmem:[%s435 + $0xcc] sm:$0xf]
              %540 = vst [vmem:[%s436 + $0xd0] sm:$0xf] %v539
              %v541 = vld [vmem:[%s435 + $0xd0] sm:$0xf]
              %542 = vst [vmem:[%s436 + $0xd4] sm:$0xf] %v541
              %v543 = vld [vmem:[%s435 + $0xd4] sm:$0xf]
              %544 = vst [vmem:[%s436 + $0xd8] sm:$0xf] %v543
              %v545 = vld [vmem:[%s435 + $0xd8] sm:$0xf]
              %546 = vst [vmem:[%s436 + $0xdc] sm:$0xf] %v545
              %v547 = vld [vmem:[%s435 + $0xdc] sm:$0xf]
              %548 = vst [vmem:[%s436 + $0xe0] sm:$0xf] %v547
              %v549 = vld [vmem:[%s435 + $0xe0] sm:$0xf]
              %550 = vst [vmem:[%s436 + $0xe4] sm:$0xf] %v549
              %v551 = vld [vmem:[%s435 + $0xe4] sm:$0xf]
              %552 = vst [vmem:[%s436 + $0xe8] sm:$0xf] %v551
              %v553 = vld [vmem:[%s435 + $0xe8] sm:$0xf]
              %554 = vst [vmem:[%s436 + $0xec] sm:$0xf] %v553
              %v555 = vld [vmem:[%s435 + $0xec] sm:$0xf]
              %556 = vst [vmem:[%s436 + $0xf0] sm:$0xf] %v555
              %v557 = vld [vmem:[%s435 + $0xf0] sm:$0xf]
              %558 = vst [vmem:[%s436 + $0xf4] sm:$0xf] %v557
              %v559 = vld [vmem:[%s435 + $0xf4] sm:$0xf]
              %560 = vst [vmem:[%s436 + $0xf8] sm:$0xf] %v559
              %v561 = vld [vmem:[%s435 + $0xf8] sm:$0xf]
              %562 = vst [vmem:[%s436 + $0xfc] sm:$0xf] %v561
              %v563 = vld [vmem:[%s435 + $0xfc] sm:$0xf]
              %564 = vst [vmem:[%s436 + $0x100] sm:$0xf] %v563
              %v565 = vld [vmem:[%s435 + $0x100] sm:$0xf]
              %566 = vst [vmem:[%s436 + $0x104] sm:$0xf] %v565
              %v567 = vld [vmem:[%s435 + $0x104] sm:$0xf]
              %568 = vst [vmem:[%s436 + $0x108] sm:$0xf] %v567
              %v569 = vld [vmem:[%s435 + $0x108] sm:$0xf]
              %570 = vst [vmem:[%s436 + $0x10c] sm:$0xf] %v569
              %v571 = vld [vmem:[%s435 + $0x10c] sm:$0xf]
              %572 = vst [vmem:[%s436 + $0x110] sm:$0xf] %v571
              %v573 = vld [vmem:[%s435 + $0x110] sm:$0xf]
              %574 = vst [vmem:[%s436 + $0x114] sm:$0xf] %v573
              %v575 = vld [vmem:[%s435 + $0x114] sm:$0xf]
              %576 = vst [vmem:[%s436 + $0x118] sm:$0xf] %v575
              %v577 = vld [vmem:[%s435 + $0x118] sm:$0xf]
              %578 = vst [vmem:[%s436 + $0x11c] sm:$0xf] %v577
              %v579 = vld [vmem:[%s435 + $0x11c] sm:$0xf]
              %580 = vst [vmem:[%s436 + $0x120] sm:$0xf] %v579
              %v581 = vld [vmem:[%s435 + $0x120] sm:$0xf]
              %582 = vst [vmem:[%s436 + $0x124] sm:$0xf] %v581
              %v583 = vld [vmem:[%s435 + $0x124] sm:$0xf]
              %584 = vst [vmem:[%s436 + $0x128] sm:$0xf] %v583
              %v585 = vld [vmem:[%s435 + $0x128] sm:$0xf]
              %586 = vst [vmem:[%s436 + $0x12c] sm:$0xf] %v585
              %v587 = vld [vmem:[%s435 + $0x12c] sm:$0xf]
              %588 = vst [vmem:[%s436 + $0x130] sm:$0xf] %v587
              %v589 = vld [vmem:[%s435 + $0x130] sm:$0xf]
              %590 = vst [vmem:[%s436 + $0x134] sm:$0xf] %v589
              %v591 = vld [vmem:[%s435 + $0x134] sm:$0xf]
              %592 = vst [vmem:[%s436 + $0x138] sm:$0xf] %v591
              %v593 = vld [vmem:[%s435 + $0x138] sm:$0xf]
              %594 = vst [vmem:[%s436 + $0x13c] sm:$0xf] %v593
              %v595 = vld [vmem:[%s435 + $0x13c] sm:$0xf]
              %596 = vst [vmem:[%s436 + $0x140] sm:$0xf] %v595
              %v597 = vld [vmem:[%s435 + $0x140] sm:$0xf]
              %598 = vst [vmem:[%s436 + $0x144] sm:$0xf] %v597
              %v599 = vld [vmem:[%s435 + $0x144] sm:$0xf]
              %600 = vst [vmem:[%s436 + $0x148] sm:$0xf] %v599
              %v601 = vld [vmem:[%s435 + $0x148] sm:$0xf]
              %602 = vst [vmem:[%s436 + $0x14c] sm:$0xf] %v601
              %v603 = vld [vmem:[%s435 + $0x14c] sm:$0xf]
              %604 = vst [vmem:[%s436 + $0x150] sm:$0xf] %v603
              %v605 = vld [vmem:[%s435 + $0x150] sm:$0xf]
              %606 = vst [vmem:[%s436 + $0x154] sm:$0xf] %v605
              %v607 = vld [vmem:[%s435 + $0x154] sm:$0xf]
              %608 = vst [vmem:[%s436 + $0x158] sm:$0xf] %v607
              %v609 = vld [vmem:[%s435 + $0x158] sm:$0xf]
              %610 = vst [vmem:[%s436 + $0x15c] sm:$0xf] %v609
              %v611 = vld [vmem:[%s435 + $0x15c] sm:$0xf]
              %612 = vst [vmem:[%s436 + $0x160] sm:$0xf] %v611
              %v613 = vld [vmem:[%s435 + $0x160] sm:$0xf]
              %614 = vst [vmem:[%s436 + $0x164] sm:$0xf] %v613
              %v615 = vld [vmem:[%s435 + $0x164] sm:$0xf]
              %616 = vst [vmem:[%s436 + $0x168] sm:$0xf] %v615
              %v617 = vld [vmem:[%s435 + $0x168] sm:$0xf]
              %618 = vst [vmem:[%s436 + $0x16c] sm:$0xf] %v617
              %v619 = vld [vmem:[%s435 + $0x16c] sm:$0xf]
              %620 = vst [vmem:[%s436 + $0x170] sm:$0xf] %v619
              %v621 = vld [vmem:[%s435 + $0x170] sm:$0xf]
              %622 = vst [vmem:[%s436 + $0x174] sm:$0xf] %v621
              %v623 = vld [vmem:[%s435 + $0x174] sm:$0xf]
              %624 = vst [vmem:[%s436 + $0x178] sm:$0xf] %v623
              %v625 = vld [vmem:[%s435 + $0x178] sm:$0xf]
              %626 = vst [vmem:[%s436 + $0x17c] sm:$0xf] %v625
              %v627 = vld [vmem:[%s435 + $0x17c] sm:$0xf]
              %628 = vst [vmem:[%s436 + $0x180] sm:$0xf] %v627
              %v629 = vld [vmem:[%s435 + $0x180] sm:$0xf]
              %630 = vst [vmem:[%s436 + $0x184] sm:$0xf] %v629
              %v631 = vld [vmem:[%s435 + $0x184] sm:$0xf]
              %632 = vst [vmem:[%s436 + $0x188] sm:$0xf] %v631
              %v633 = vld [vmem:[%s435 + $0x188] sm:$0xf]
              %634 = vst [vmem:[%s436 + $0x190] sm:$0xf] %v633
              %v635 = vld [vmem:[%s435 + $0x18c] sm:$0xf]
              %636 = vst [vmem:[%s436 + $0x194] sm:$0xf] %v635
              %v637 = vld [vmem:[%s435 + $0x190] sm:$0xf]
              %638 = vst [vmem:[%s436 + $0x198] sm:$0xf] %v637
              %v639 = vld [vmem:[%s435 + $0x194] sm:$0xf]
              %640 = vst [vmem:[%s436 + $0x19c] sm:$0xf] %v639
              %v641 = vld [vmem:[%s435 + $0x198] sm:$0xf]
              %642 = vst [vmem:[%s436 + $0x1a0] sm:$0xf] %v641
              %v643 = vld [vmem:[%s435 + $0x19c] sm:$0xf]
              %644 = vst [vmem:[%s436 + $0x1a4] sm:$0xf] %v643
              %v645 = vld [vmem:[%s435 + $0x1a0] sm:$0xf]
              %646 = vst [vmem:[%s436 + $0x1a8] sm:$0xf] %v645
              %v647 = vld [vmem:[%s435 + $0x1a4] sm:$0xf]
              %648 = vst [vmem:[%s436 + $0x1ac] sm:$0xf] %v647
              %v649 = vld [vmem:[%s435 + $0x1a8] sm:$0xf]
              %650 = vst [vmem:[%s436 + $0x1b0] sm:$0xf] %v649
              %v651 = vld [vmem:[%s435 + $0x1ac] sm:$0xf]
              %652 = vst [vmem:[%s436 + $0x1b4] sm:$0xf] %v651
              %v653 = vld [vmem:[%s435 + $0x1b0] sm:$0xf]
              %654 = vst [vmem:[%s436 + $0x1b8] sm:$0xf] %v653
              %v655 = vld [vmem:[%s435 + $0x1b4] sm:$0xf]
              %656 = vst [vmem:[%s436 + $0x1bc] sm:$0xf] %v655
              %v657 = vld [vmem:[%s435 + $0x1b8] sm:$0xf]
              %658 = vst [vmem:[%s436 + $0x1c0] sm:$0xf] %v657
              %v659 = vld [vmem:[%s435 + $0x1bc] sm:$0xf]
              %660 = vst [vmem:[%s436 + $0x1c4] sm:$0xf] %v659
              %v661 = vld [vmem:[%s435 + $0x1c0] sm:$0xf]
              %662 = vst [vmem:[%s436 + $0x1c8] sm:$0xf] %v661
              %v663 = vld [vmem:[%s435 + $0x1c4] sm:$0xf]
              %664 = vst [vmem:[%s436 + $0x1cc] sm:$0xf] %v663
              %v665 = vld [vmem:[%s435 + $0x1c8] sm:$0xf]
              %666 = vst [vmem:[%s436 + $0x1d0] sm:$0xf] %v665
              %v667 = vld [vmem:[%s435 + $0x1cc] sm:$0xf]
              %668 = vst [vmem:[%s436 + $0x1d4] sm:$0xf] %v667
              %v669 = vld [vmem:[%s435 + $0x1d0] sm:$0xf]
              %670 = vst [vmem:[%s436 + $0x1d8] sm:$0xf] %v669
              %v671 = vld [vmem:[%s435 + $0x1d4] sm:$0xf]
              %672 = vst [vmem:[%s436 + $0x1dc] sm:$0xf] %v671
              %v673 = vld [vmem:[%s435 + $0x1d8] sm:$0xf]
              %674 = vst [vmem:[%s436 + $0x1e0] sm:$0xf] %v673
              %v675 = vld [vmem:[%s435 + $0x1dc] sm:$0xf]
              %676 = vst [vmem:[%s436 + $0x1e4] sm:$0xf] %v675
              %v677 = vld [vmem:[%s435 + $0x1e0] sm:$0xf]
              %678 = vst [vmem:[%s436 + $0x1e8] sm:$0xf] %v677
              %v679 = vld [vmem:[%s435 + $0x1e4] sm:$0xf]
              %680 = vst [vmem:[%s436 + $0x1ec] sm:$0xf] %v679
              %v681 = vld [vmem:[%s435 + $0x1e8] sm:$0xf]
              %682 = vst [vmem:[%s436 + $0x1f0] sm:$0xf] %v681
              %v683 = vld [vmem:[%s435 + $0x1ec] sm:$0xf]
              %684 = vst [vmem:[%s436 + $0x1f4] sm:$0xf] %v683
              %v685 = vld [vmem:[%s435 + $0x1f0] sm:$0xf]
              %686 = vst [vmem:[%s436 + $0x1f8] sm:$0xf] %v685
              %v687 = vld [vmem:[%s435 + $0x1f4] sm:$0xf]
              %688 = vst [vmem:[%s436 + $0x1fc] sm:$0xf] %v687
              %v689 = vld [vmem:[%s435 + $0x1f8] sm:$0xf]
              %690 = vst [vmem:[%s436 + $0x200] sm:$0xf] %v689
              %v691 = vld [vmem:[%s435 + $0x1fc] sm:$0xf]
              %692 = vst [vmem:[%s436 + $0x204] sm:$0xf] %v691
              %v693 = vld [vmem:[%s435 + $0x200] sm:$0xf]
              %694 = vst [vmem:[%s436 + $0x208] sm:$0xf] %v693
              %v695 = vld [vmem:[%s435 + $0x204] sm:$0xf]
              %696 = vst [vmem:[%s436 + $0x20c] sm:$0xf] %v695
              %v697 = vld [vmem:[%s435 + $0x208] sm:$0xf]
              %698 = vst [vmem:[%s436 + $0x210] sm:$0xf] %v697
              %v699 = vld [vmem:[%s435 + $0x20c] sm:$0xf]
              %700 = vst [vmem:[%s436 + $0x214] sm:$0xf] %v699
              %v701 = vld [vmem:[%s435 + $0x210] sm:$0xf]
              %702 = vst [vmem:[%s436 + $0x218] sm:$0xf] %v701
              %v703 = vld [vmem:[%s435 + $0x214] sm:$0xf]
              %704 = vst [vmem:[%s436 + $0x21c] sm:$0xf] %v703
              %v705 = vld [vmem:[%s435 + $0x218] sm:$0xf]
              %706 = vst [vmem:[%s436 + $0x220] sm:$0xf] %v705
              %v707 = vld [vmem:[%s435 + $0x21c] sm:$0xf]
              %708 = vst [vmem:[%s436 + $0x224] sm:$0xf] %v707
              %v709 = vld [vmem:[%s435 + $0x220] sm:$0xf]
              %710 = vst [vmem:[%s436 + $0x228] sm:$0xf] %v709
              %v711 = vld [vmem:[%s435 + $0x224] sm:$0xf]
              %712 = vst [vmem:[%s436 + $0x22c] sm:$0xf] %v711
              %v713 = vld [vmem:[%s435 + $0x228] sm:$0xf]
              %714 = vst [vmem:[%s436 + $0x230] sm:$0xf] %v713
              %v715 = vld [vmem:[%s435 + $0x22c] sm:$0xf]
              %716 = vst [vmem:[%s436 + $0x234] sm:$0xf] %v715
              %v717 = vld [vmem:[%s435 + $0x230] sm:$0xf]
              %718 = vst [vmem:[%s436 + $0x238] sm:$0xf] %v717
              %v719 = vld [vmem:[%s435 + $0x234] sm:$0xf]
              %720 = vst [vmem:[%s436 + $0x23c] sm:$0xf] %v719
              %v721 = vld [vmem:[%s435 + $0x238] sm:$0xf]
              %722 = vst [vmem:[%s436 + $0x240] sm:$0xf] %v721
              %v723 = vld [vmem:[%s435 + $0x23c] sm:$0xf]
              %724 = vst [vmem:[%s436 + $0x244] sm:$0xf] %v723
              %v725 = vld [vmem:[%s435 + $0x240] sm:$0xf]
              %726 = vst [vmem:[%s436 + $0x248] sm:$0xf] %v725
              %v727 = vld [vmem:[%s435 + $0x244] sm:$0xf]
              %728 = vst [vmem:[%s436 + $0x24c] sm:$0xf] %v727
              %v729 = vld [vmem:[%s435 + $0x248] sm:$0xf]
              %730 = vst [vmem:[%s436 + $0x250] sm:$0xf] %v729
              %v731 = vld [vmem:[%s435 + $0x24c] sm:$0xf]
              %732 = vst [vmem:[%s436 + $0x258] sm:$0xf] %v731
              %v733 = vld [vmem:[%s435 + $0x250] sm:$0xf]
              %734 = vst [vmem:[%s436 + $0x25c] sm:$0xf] %v733
              %v735 = vld [vmem:[%s435 + $0x254] sm:$0xf]
              %736 = vst [vmem:[%s436 + $0x260] sm:$0xf] %v735
              %v737 = vld [vmem:[%s435 + $0x258] sm:$0xf]
              %738 = vst [vmem:[%s436 + $0x264] sm:$0xf] %v737
              %v739 = vld [vmem:[%s435 + $0x25c] sm:$0xf]
              %740 = vst [vmem:[%s436 + $0x268] sm:$0xf] %v739
              %v741 = vld [vmem:[%s435 + $0x260] sm:$0xf]
              %742 = vst [vmem:[%s436 + $0x26c] sm:$0xf] %v741
              %v743 = vld [vmem:[%s435 + $0x264] sm:$0xf]
              %744 = vst [vmem:[%s436 + $0x270] sm:$0xf] %v743
              %v745 = vld [vmem:[%s435 + $0x268] sm:$0xf]
              %746 = vst [vmem:[%s436 + $0x274] sm:$0xf] %v745
              %v747 = vld [vmem:[%s435 + $0x26c] sm:$0xf]
              %748 = vst [vmem:[%s436 + $0x278] sm:$0xf] %v747
              %v749 = vld [vmem:[%s435 + $0x270] sm:$0xf]
              %750 = vst [vmem:[%s436 + $0x27c] sm:$0xf] %v749
              %v751 = vld [vmem:[%s435 + $0x274] sm:$0xf]
              %752 = vst [vmem:[%s436 + $0x280] sm:$0xf] %v751
              %v753 = vld [vmem:[%s435 + $0x278] sm:$0xf]
              %754 = vst [vmem:[%s436 + $0x284] sm:$0xf] %v753
              %v755 = vld [vmem:[%s435 + $0x27c] sm:$0xf]
              %756 = vst [vmem:[%s436 + $0x288] sm:$0xf] %v755
              %v757 = vld [vmem:[%s435 + $0x280] sm:$0xf]
              %758 = vst [vmem:[%s436 + $0x28c] sm:$0xf] %v757
              %v759 = vld [vmem:[%s435 + $0x284] sm:$0xf]
              %760 = vst [vmem:[%s436 + $0x290] sm:$0xf] %v759
              %v761 = vld [vmem:[%s435 + $0x288] sm:$0xf]
              %762 = vst [vmem:[%s436 + $0x294] sm:$0xf] %v761
              %v763 = vld [vmem:[%s435 + $0x28c] sm:$0xf]
              %764 = vst [vmem:[%s436 + $0x298] sm:$0xf] %v763
              %v765 = vld [vmem:[%s435 + $0x290] sm:$0xf]
              %766 = vst [vmem:[%s436 + $0x29c] sm:$0xf] %v765
              %v767 = vld [vmem:[%s435 + $0x294] sm:$0xf]
              %768 = vst [vmem:[%s436 + $0x2a0] sm:$0xf] %v767
              %v769 = vld [vmem:[%s435 + $0x298] sm:$0xf]
              %770 = vst [vmem:[%s436 + $0x2a4] sm:$0xf] %v769
              %v771 = vld [vmem:[%s435 + $0x29c] sm:$0xf]
              %772 = vst [vmem:[%s436 + $0x2a8] sm:$0xf] %v771
              %v773 = vld [vmem:[%s435 + $0x2a0] sm:$0xf]
              %774 = vst [vmem:[%s436 + $0x2ac] sm:$0xf] %v773
              %v775 = vld [vmem:[%s435 + $0x2a4] sm:$0xf]
              %776 = vst [vmem:[%s436 + $0x2b0] sm:$0xf] %v775
              %v777 = vld [vmem:[%s435 + $0x2a8] sm:$0xf]
              %778 = vst [vmem:[%s436 + $0x2b4] sm:$0xf] %v777
              %v779 = vld [vmem:[%s435 + $0x2ac] sm:$0xf]
              %780 = vst [vmem:[%s436 + $0x2b8] sm:$0xf] %v779
              %v781 = vld [vmem:[%s435 + $0x2b0] sm:$0xf]
              %782 = vst [vmem:[%s436 + $0x2bc] sm:$0xf] %v781
              %v783 = vld [vmem:[%s435 + $0x2b4] sm:$0xf]
              %784 = vst [vmem:[%s436 + $0x2c0] sm:$0xf] %v783
              %v785 = vld [vmem:[%s435 + $0x2b8] sm:$0xf]
              %786 = vst [vmem:[%s436 + $0x2c4] sm:$0xf] %v785
              %v787 = vld [vmem:[%s435 + $0x2bc] sm:$0xf]
              %788 = vst [vmem:[%s436 + $0x2c8] sm:$0xf] %v787
              %v789 = vld [vmem:[%s435 + $0x2c0] sm:$0xf]
              %790 = vst [vmem:[%s436 + $0x2cc] sm:$0xf] %v789
              %v791 = vld [vmem:[%s435 + $0x2c4] sm:$0xf]
              %792 = vst [vmem:[%s436 + $0x2d0] sm:$0xf] %v791
              %v793 = vld [vmem:[%s435 + $0x2c8] sm:$0xf]
              %794 = vst [vmem:[%s436 + $0x2d4] sm:$0xf] %v793
              %v795 = vld [vmem:[%s435 + $0x2cc] sm:$0xf]
              %796 = vst [vmem:[%s436 + $0x2d8] sm:$0xf] %v795
              %v797 = vld [vmem:[%s435 + $0x2d0] sm:$0xf]
              %798 = vst [vmem:[%s436 + $0x2dc] sm:$0xf] %v797
              %v799 = vld [vmem:[%s435 + $0x2d4] sm:$0xf]
              %800 = vst [vmem:[%s436 + $0x2e0] sm:$0xf] %v799
              %v801 = vld [vmem:[%s435 + $0x2d8] sm:$0xf]
              %802 = vst [vmem:[%s436 + $0x2e4] sm:$0xf] %v801
              %v803 = vld [vmem:[%s435 + $0x2dc] sm:$0xf]
              %804 = vst [vmem:[%s436 + $0x2e8] sm:$0xf] %v803
              %v805 = vld [vmem:[%s435 + $0x2e0] sm:$0xf]
              %806 = vst [vmem:[%s436 + $0x2ec] sm:$0xf] %v805
              %v807 = vld [vmem:[%s435 + $0x2e4] sm:$0xf]
              %808 = vst [vmem:[%s436 + $0x2f0] sm:$0xf] %v807
              %v809 = vld [vmem:[%s435 + $0x2e8] sm:$0xf]
              %810 = vst [vmem:[%s436 + $0x2f4] sm:$0xf] %v809
              %v811 = vld [vmem:[%s435 + $0x2ec] sm:$0xf]
              %812 = vst [vmem:[%s436 + $0x2f8] sm:$0xf] %v811
              %v813 = vld [vmem:[%s435 + $0x2f0] sm:$0xf]
              %814 = vst [vmem:[%s436 + $0x2fc] sm:$0xf] %v813
              %v815 = vld [vmem:[%s435 + $0x2f4] sm:$0xf]
              %816 = vst [vmem:[%s436 + $0x300] sm:$0xf] %v815
              %v817 = vld [vmem:[%s435 + $0x2f8] sm:$0xf]
              %818 = vst [vmem:[%s436 + $0x304] sm:$0xf] %v817
              %v819 = vld [vmem:[%s435 + $0x2fc] sm:$0xf]
              %820 = vst [vmem:[%s436 + $0x308] sm:$0xf] %v819
              %v821 = vld [vmem:[%s435 + $0x300] sm:$0xf]
              %822 = vst [vmem:[%s436 + $0x30c] sm:$0xf] %v821
              %v823 = vld [vmem:[%s435 + $0x304] sm:$0xf]
              %824 = vst [vmem:[%s436 + $0x310] sm:$0xf] %v823
              %v825 = vld [vmem:[%s435 + $0x308] sm:$0xf]
              %826 = vst [vmem:[%s436 + $0x314] sm:$0xf] %v825
              %v827 = vld [vmem:[%s435 + $0x30c] sm:$0xf]
              %828 = vst [vmem:[%s436 + $0x318] sm:$0xf] %v827
            $region40: #{cnn_forward.3} parent=27 // loop_footer
              %s434 = sadd.s32 1, %s430
            $region41: #{cnn_forward.3} parent=27 // loop_footer_branch
              %429 = sbr.rel target = $region37
            $region42: #{cnn_forward.3} parent=27 // loop_exit
              _
          $region28: #{cnn_forward.3} parent=12 // pred_fallthru
            _
        $region13: #{cnn_forward.3} parent=8 // pred_fallthru
          _
        // Predicated region
        $region14: #{cnn_forward.3} parent=8 // pred_check
          _
        $region15: #{cnn_forward.3} parent=8 // pred_check_branch
          %16 = sbr.rel (0) target = $region17
        $region16: #{cnn_forward.3} parent=8 // pred_region
          loop: start=0, step=1, limit=1
          $region18: #{cnn_forward.3} parent=16 // loop_pre_header
            _
          $region19: #{cnn_forward.3} parent=16 // loop_header
            %s19 = sphi 0, %s23
            %p20 = scmp.ge.s32.totalorder %s19, 1
            %s24 = sphi %s0, %s0
            %s25 = sphi [#allocation2], [#allocation2]
          $region20: #{cnn_forward.3} parent=16 // loop_header_branch
            %22 = sbr.rel (%p20) target = $region24
          $region21: #{cnn_forward.3} parent=16 // loop_body
            %v26 = vld [vmem:[%s24] sm:$0xf]
            %27 = vst [vmem:[%s25] sm:$0xf] %v26
            %v28 = vld [vmem:[%s24 + $0x4] sm:$0xf]
            %29 = vst [vmem:[%s25 + $0x4] sm:$0xf] %v28
            %v30 = vld [vmem:[%s24 + $0x8] sm:$0xf]
            %31 = vst [vmem:[%s25 + $0x8] sm:$0xf] %v30
            %v32 = vld [vmem:[%s24 + $0xc] sm:$0xf]
            %33 = vst [vmem:[%s25 + $0xc] sm:$0xf] %v32
            %v34 = vld [vmem:[%s24 + $0x10] sm:$0xf]
            %35 = vst [vmem:[%s25 + $0x10] sm:$0xf] %v34
            %v36 = vld [vmem:[%s24 + $0x14] sm:$0xf]
            %37 = vst [vmem:[%s25 + $0x14] sm:$0xf] %v36
            %v38 = vld [vmem:[%s24 + $0x18] sm:$0xf]
            %39 = vst [vmem:[%s25 + $0x18] sm:$0xf] %v38
            %v40 = vld [vmem:[%s24 + $0x1c] sm:$0xf]
            %41 = vst [vmem:[%s25 + $0x1c] sm:$0xf] %v40
            %v42 = vld [vmem:[%s24 + $0x20] sm:$0xf]
            %43 = vst [vmem:[%s25 + $0x20] sm:$0xf] %v42
            %v44 = vld [vmem:[%s24 + $0x24] sm:$0xf]
            %45 = vst [vmem:[%s25 + $0x24] sm:$0xf] %v44
            %v46 = vld [vmem:[%s24 + $0x28] sm:$0xf]
            %47 = vst [vmem:[%s25 + $0x28] sm:$0xf] %v46
            %v48 = vld [vmem:[%s24 + $0x2c] sm:$0xf]
            %49 = vst [vmem:[%s25 + $0x2c] sm:$0xf] %v48
            %v50 = vld [vmem:[%s24 + $0x30] sm:$0xf]
            %51 = vst [vmem:[%s25 + $0x30] sm:$0xf] %v50
            %v52 = vld [vmem:[%s24 + $0x34] sm:$0xf]
            %53 = vst [vmem:[%s25 + $0x34] sm:$0xf] %v52
            %v54 = vld [vmem:[%s24 + $0x38] sm:$0xf]
            %55 = vst [vmem:[%s25 + $0x38] sm:$0xf] %v54
            %v56 = vld [vmem:[%s24 + $0x3c] sm:$0xf]
            %57 = vst [vmem:[%s25 + $0x3c] sm:$0xf] %v56
            %v58 = vld [vmem:[%s24 + $0x40] sm:$0xf]
            %59 = vst [vmem:[%s25 + $0x40] sm:$0xf] %v58
            %v60 = vld [vmem:[%s24 + $0x44] sm:$0xf]
            %61 = vst [vmem:[%s25 + $0x44] sm:$0xf] %v60
            %v62 = vld [vmem:[%s24 + $0x48] sm:$0xf]
            %63 = vst [vmem:[%s25 + $0x48] sm:$0xf] %v62
            %v64 = vld [vmem:[%s24 + $0x4c] sm:$0xf]
            %65 = vst [vmem:[%s25 + $0x4c] sm:$0xf] %v64
            %v66 = vld [vmem:[%s24 + $0x50] sm:$0xf]
            %67 = vst [vmem:[%s25 + $0x50] sm:$0xf] %v66
            %v68 = vld [vmem:[%s24 + $0x54] sm:$0xf]
            %69 = vst [vmem:[%s25 + $0x54] sm:$0xf] %v68
            %v70 = vld [vmem:[%s24 + $0x58] sm:$0xf]
            %71 = vst [vmem:[%s25 + $0x58] sm:$0xf] %v70
            %v72 = vld [vmem:[%s24 + $0x5c] sm:$0xf]
            %73 = vst [vmem:[%s25 + $0x5c] sm:$0xf] %v72
            %v74 = vld [vmem:[%s24 + $0x60] sm:$0xf]
            %75 = vst [vmem:[%s25 + $0x60] sm:$0xf] %v74
            %v76 = vld [vmem:[%s24 + $0x64] sm:$0xf]
            %77 = vst [vmem:[%s25 + $0x64] sm:$0xf] %v76
            %v78 = vld [vmem:[%s24 + $0x68] sm:$0xf]
            %79 = vst [vmem:[%s25 + $0x68] sm:$0xf] %v78
            %v80 = vld [vmem:[%s24 + $0x6c] sm:$0xf]
            %81 = vst [vmem:[%s25 + $0x6c] sm:$0xf] %v80
            %v82 = vld [vmem:[%s24 + $0x70] sm:$0xf]
            %83 = vst [vmem:[%s25 + $0x70] sm:$0xf] %v82
            %v84 = vld [vmem:[%s24 + $0x74] sm:$0xf]
            %85 = vst [vmem:[%s25 + $0x74] sm:$0xf] %v84
            %v86 = vld [vmem:[%s24 + $0x78] sm:$0xf]
            %87 = vst [vmem:[%s25 + $0x78] sm:$0xf] %v86
            %v88 = vld [vmem:[%s24 + $0x7c] sm:$0xf]
            %89 = vst [vmem:[%s25 + $0x7c] sm:$0xf] %v88
            %v90 = vld [vmem:[%s24 + $0x80] sm:$0xf]
            %91 = vst [vmem:[%s25 + $0x80] sm:$0xf] %v90
            %v92 = vld [vmem:[%s24 + $0x84] sm:$0xf]
            %93 = vst [vmem:[%s25 + $0x84] sm:$0xf] %v92
            %v94 = vld [vmem:[%s24 + $0x88] sm:$0xf]
            %95 = vst [vmem:[%s25 + $0x88] sm:$0xf] %v94
            %v96 = vld [vmem:[%s24 + $0x8c] sm:$0xf]
            %97 = vst [vmem:[%s25 + $0x8c] sm:$0xf] %v96
            %v98 = vld [vmem:[%s24 + $0x90] sm:$0xf]
            %99 = vst [vmem:[%s25 + $0x90] sm:$0xf] %v98
            %v100 = vld [vmem:[%s24 + $0x94] sm:$0xf]
            %101 = vst [vmem:[%s25 + $0x94] sm:$0xf] %v100
            %v102 = vld [vmem:[%s24 + $0x98] sm:$0xf]
            %103 = vst [vmem:[%s25 + $0x98] sm:$0xf] %v102
            %v104 = vld [vmem:[%s24 + $0x9c] sm:$0xf]
            %105 = vst [vmem:[%s25 + $0x9c] sm:$0xf] %v104
            %v106 = vld [vmem:[%s24 + $0xa0] sm:$0xf]
            %107 = vst [vmem:[%s25 + $0xa0] sm:$0xf] %v106
            %v108 = vld [vmem:[%s24 + $0xa4] sm:$0xf]
            %109 = vst [vmem:[%s25 + $0xa4] sm:$0xf] %v108
            %v110 = vld [vmem:[%s24 + $0xa8] sm:$0xf]
            %111 = vst [vmem:[%s25 + $0xa8] sm:$0xf] %v110
            %v112 = vld [vmem:[%s24 + $0xac] sm:$0xf]
            %113 = vst [vmem:[%s25 + $0xac] sm:$0xf] %v112
            %v114 = vld [vmem:[%s24 + $0xb0] sm:$0xf]
            %115 = vst [vmem:[%s25 + $0xb0] sm:$0xf] %v114
            %v116 = vld [vmem:[%s24 + $0xb4] sm:$0xf]
            %117 = vst [vmem:[%s25 + $0xb4] sm:$0xf] %v116
            %v118 = vld [vmem:[%s24 + $0xb8] sm:$0xf]
            %119 = vst [vmem:[%s25 + $0xb8] sm:$0xf] %v118
            %v120 = vld [vmem:[%s24 + $0xbc] sm:$0xf]
            %121 = vst [vmem:[%s25 + $0xbc] sm:$0xf] %v120
            %v122 = vld [vmem:[%s24 + $0xc0] sm:$0xf]
            %123 = vst [vmem:[%s25 + $0xc0] sm:$0xf] %v122
            %v124 = vld [vmem:[%s24 + $0xc4] sm:$0xf]
            %125 = vst [vmem:[%s25 + $0xc8] sm:$0xf] %v124
            %v126 = vld [vmem:[%s24 + $0xc8] sm:$0xf]
            %127 = vst [vmem:[%s25 + $0xcc] sm:$0xf] %v126
            %v128 = vld [vmem:[%s24 + $0xcc] sm:$0xf]
            %129 = vst [vmem:[%s25 + $0xd0] sm:$0xf] %v128
            %v130 = vld [vmem:[%s24 + $0xd0] sm:$0xf]
            %131 = vst [vmem:[%s25 + $0xd4] sm:$0xf] %v130
            %v132 = vld [vmem:[%s24 + $0xd4] sm:$0xf]
            %133 = vst [vmem:[%s25 + $0xd8] sm:$0xf] %v132
            %v134 = vld [vmem:[%s24 + $0xd8] sm:$0xf]
            %135 = vst [vmem:[%s25 + $0xdc] sm:$0xf] %v134
            %v136 = vld [vmem:[%s24 + $0xdc] sm:$0xf]
            %137 = vst [vmem:[%s25 + $0xe0] sm:$0xf] %v136
            %v138 = vld [vmem:[%s24 + $0xe0] sm:$0xf]
            %139 = vst [vmem:[%s25 + $0xe4] sm:$0xf] %v138
            %v140 = vld [vmem:[%s24 + $0xe4] sm:$0xf]
            %141 = vst [vmem:[%s25 + $0xe8] sm:$0xf] %v140
            %v142 = vld [vmem:[%s24 + $0xe8] sm:$0xf]
            %143 = vst [vmem:[%s25 + $0xec] sm:$0xf] %v142
            %v144 = vld [vmem:[%s24 + $0xec] sm:$0xf]
            %145 = vst [vmem:[%s25 + $0xf0] sm:$0xf] %v144
            %v146 = vld [vmem:[%s24 + $0xf0] sm:$0xf]
            %147 = vst [vmem:[%s25 + $0xf4] sm:$0xf] %v146
            %v148 = vld [vmem:[%s24 + $0xf4] sm:$0xf]
            %149 = vst [vmem:[%s25 + $0xf8] sm:$0xf] %v148
            %v150 = vld [vmem:[%s24 + $0xf8] sm:$0xf]
            %151 = vst [vmem:[%s25 + $0xfc] sm:$0xf] %v150
            %v152 = vld [vmem:[%s24 + $0xfc] sm:$0xf]
            %153 = vst [vmem:[%s25 + $0x100] sm:$0xf] %v152
            %v154 = vld [vmem:[%s24 + $0x100] sm:$0xf]
            %155 = vst [vmem:[%s25 + $0x104] sm:$0xf] %v154
            %v156 = vld [vmem:[%s24 + $0x104] sm:$0xf]
            %157 = vst [vmem:[%s25 + $0x108] sm:$0xf] %v156
            %v158 = vld [vmem:[%s24 + $0x108] sm:$0xf]
            %159 = vst [vmem:[%s25 + $0x10c] sm:$0xf] %v158
            %v160 = vld [vmem:[%s24 + $0x10c] sm:$0xf]
            %161 = vst [vmem:[%s25 + $0x110] sm:$0xf] %v160
            %v162 = vld [vmem:[%s24 + $0x110] sm:$0xf]
            %163 = vst [vmem:[%s25 + $0x114] sm:$0xf] %v162
            %v164 = vld [vmem:[%s24 + $0x114] sm:$0xf]
            %165 = vst [vmem:[%s25 + $0x118] sm:$0xf] %v164
            %v166 = vld [vmem:[%s24 + $0x118] sm:$0xf]
            %167 = vst [vmem:[%s25 + $0x11c] sm:$0xf] %v166
            %v168 = vld [vmem:[%s24 + $0x11c] sm:$0xf]
            %169 = vst [vmem:[%s25 + $0x120] sm:$0xf] %v168
            %v170 = vld [vmem:[%s24 + $0x120] sm:$0xf]
            %171 = vst [vmem:[%s25 + $0x124] sm:$0xf] %v170
            %v172 = vld [vmem:[%s24 + $0x124] sm:$0xf]
            %173 = vst [vmem:[%s25 + $0x128] sm:$0xf] %v172
            %v174 = vld [vmem:[%s24 + $0x128] sm:$0xf]
            %175 = vst [vmem:[%s25 + $0x12c] sm:$0xf] %v174
            %v176 = vld [vmem:[%s24 + $0x12c] sm:$0xf]
            %177 = vst [vmem:[%s25 + $0x130] sm:$0xf] %v176
            %v178 = vld [vmem:[%s24 + $0x130] sm:$0xf]
            %179 = vst [vmem:[%s25 + $0x134] sm:$0xf] %v178
            %v180 = vld [vmem:[%s24 + $0x134] sm:$0xf]
            %181 = vst [vmem:[%s25 + $0x138] sm:$0xf] %v180
            %v182 = vld [vmem:[%s24 + $0x138] sm:$0xf]
            %183 = vst [vmem:[%s25 + $0x13c] sm:$0xf] %v182
            %v184 = vld [vmem:[%s24 + $0x13c] sm:$0xf]
            %185 = vst [vmem:[%s25 + $0x140] sm:$0xf] %v184
            %v186 = vld [vmem:[%s24 + $0x140] sm:$0xf]
            %187 = vst [vmem:[%s25 + $0x144] sm:$0xf] %v186
            %v188 = vld [vmem:[%s24 + $0x144] sm:$0xf]
            %189 = vst [vmem:[%s25 + $0x148] sm:$0xf] %v188
            %v190 = vld [vmem:[%s24 + $0x148] sm:$0xf]
            %191 = vst [vmem:[%s25 + $0x14c] sm:$0xf] %v190
            %v192 = vld [vmem:[%s24 + $0x14c] sm:$0xf]
            %193 = vst [vmem:[%s25 + $0x150] sm:$0xf] %v192
            %v194 = vld [vmem:[%s24 + $0x150] sm:$0xf]
            %195 = vst [vmem:[%s25 + $0x154] sm:$0xf] %v194
            %v196 = vld [vmem:[%s24 + $0x154] sm:$0xf]
            %197 = vst [vmem:[%s25 + $0x158] sm:$0xf] %v196
            %v198 = vld [vmem:[%s24 + $0x158] sm:$0xf]
            %199 = vst [vmem:[%s25 + $0x15c] sm:$0xf] %v198
            %v200 = vld [vmem:[%s24 + $0x15c] sm:$0xf]
            %201 = vst [vmem:[%s25 + $0x160] sm:$0xf] %v200
            %v202 = vld [vmem:[%s24 + $0x160] sm:$0xf]
            %203 = vst [vmem:[%s25 + $0x164] sm:$0xf] %v202
            %v204 = vld [vmem:[%s24 + $0x164] sm:$0xf]
            %205 = vst [vmem:[%s25 + $0x168] sm:$0xf] %v204
            %v206 = vld [vmem:[%s24 + $0x168] sm:$0xf]
            %207 = vst [vmem:[%s25 + $0x16c] sm:$0xf] %v206
            %v208 = vld [vmem:[%s24 + $0x16c] sm:$0xf]
            %209 = vst [vmem:[%s25 + $0x170] sm:$0xf] %v208
            %v210 = vld [vmem:[%s24 + $0x170] sm:$0xf]
            %211 = vst [vmem:[%s25 + $0x174] sm:$0xf] %v210
            %v212 = vld [vmem:[%s24 + $0x174] sm:$0xf]
            %213 = vst [vmem:[%s25 + $0x178] sm:$0xf] %v212
            %v214 = vld [vmem:[%s24 + $0x178] sm:$0xf]
            %215 = vst [vmem:[%s25 + $0x17c] sm:$0xf] %v214
            %v216 = vld [vmem:[%s24 + $0x17c] sm:$0xf]
            %217 = vst [vmem:[%s25 + $0x180] sm:$0xf] %v216
            %v218 = vld [vmem:[%s24 + $0x180] sm:$0xf]
            %219 = vst [vmem:[%s25 + $0x184] sm:$0xf] %v218
            %v220 = vld [vmem:[%s24 + $0x184] sm:$0xf]
            %221 = vst [vmem:[%s25 + $0x188] sm:$0xf] %v220
            %v222 = vld [vmem:[%s24 + $0x188] sm:$0xf]
            %223 = vst [vmem:[%s25 + $0x190] sm:$0xf] %v222
            %v224 = vld [vmem:[%s24 + $0x18c] sm:$0xf]
            %225 = vst [vmem:[%s25 + $0x194] sm:$0xf] %v224
            %v226 = vld [vmem:[%s24 + $0x190] sm:$0xf]
            %227 = vst [vmem:[%s25 + $0x198] sm:$0xf] %v226
            %v228 = vld [vmem:[%s24 + $0x194] sm:$0xf]
            %229 = vst [vmem:[%s25 + $0x19c] sm:$0xf] %v228
            %v230 = vld [vmem:[%s24 + $0x198] sm:$0xf]
            %231 = vst [vmem:[%s25 + $0x1a0] sm:$0xf] %v230
            %v232 = vld [vmem:[%s24 + $0x19c] sm:$0xf]
            %233 = vst [vmem:[%s25 + $0x1a4] sm:$0xf] %v232
            %v234 = vld [vmem:[%s24 + $0x1a0] sm:$0xf]
            %235 = vst [vmem:[%s25 + $0x1a8] sm:$0xf] %v234
            %v236 = vld [vmem:[%s24 + $0x1a4] sm:$0xf]
            %237 = vst [vmem:[%s25 + $0x1ac] sm:$0xf] %v236
            %v238 = vld [vmem:[%s24 + $0x1a8] sm:$0xf]
            %239 = vst [vmem:[%s25 + $0x1b0] sm:$0xf] %v238
            %v240 = vld [vmem:[%s24 + $0x1ac] sm:$0xf]
            %241 = vst [vmem:[%s25 + $0x1b4] sm:$0xf] %v240
            %v242 = vld [vmem:[%s24 + $0x1b0] sm:$0xf]
            %243 = vst [vmem:[%s25 + $0x1b8] sm:$0xf] %v242
            %v244 = vld [vmem:[%s24 + $0x1b4] sm:$0xf]
            %245 = vst [vmem:[%s25 + $0x1bc] sm:$0xf] %v244
            %v246 = vld [vmem:[%s24 + $0x1b8] sm:$0xf]
            %247 = vst [vmem:[%s25 + $0x1c0] sm:$0xf] %v246
            %v248 = vld [vmem:[%s24 + $0x1bc] sm:$0xf]
            %249 = vst [vmem:[%s25 + $0x1c4] sm:$0xf] %v248
            %v250 = vld [vmem:[%s24 + $0x1c0] sm:$0xf]
            %251 = vst [vmem:[%s25 + $0x1c8] sm:$0xf] %v250
            %v252 = vld [vmem:[%s24 + $0x1c4] sm:$0xf]
            %253 = vst [vmem:[%s25 + $0x1cc] sm:$0xf] %v252
            %v254 = vld [vmem:[%s24 + $0x1c8] sm:$0xf]
            %255 = vst [vmem:[%s25 + $0x1d0] sm:$0xf] %v254
            %v256 = vld [vmem:[%s24 + $0x1cc] sm:$0xf]
            %257 = vst [vmem:[%s25 + $0x1d4] sm:$0xf] %v256
            %v258 = vld [vmem:[%s24 + $0x1d0] sm:$0xf]
            %259 = vst [vmem:[%s25 + $0x1d8] sm:$0xf] %v258
            %v260 = vld [vmem:[%s24 + $0x1d4] sm:$0xf]
            %261 = vst [vmem:[%s25 + $0x1dc] sm:$0xf] %v260
            %v262 = vld [vmem:[%s24 + $0x1d8] sm:$0xf]
            %263 = vst [vmem:[%s25 + $0x1e0] sm:$0xf] %v262
            %v264 = vld [vmem:[%s24 + $0x1dc] sm:$0xf]
            %265 = vst [vmem:[%s25 + $0x1e4] sm:$0xf] %v264
            %v266 = vld [vmem:[%s24 + $0x1e0] sm:$0xf]
            %267 = vst [vmem:[%s25 + $0x1e8] sm:$0xf] %v266
            %v268 = vld [vmem:[%s24 + $0x1e4] sm:$0xf]
            %269 = vst [vmem:[%s25 + $0x1ec] sm:$0xf] %v268
            %v270 = vld [vmem:[%s24 + $0x1e8] sm:$0xf]
            %271 = vst [vmem:[%s25 + $0x1f0] sm:$0xf] %v270
            %v272 = vld [vmem:[%s24 + $0x1ec] sm:$0xf]
            %273 = vst [vmem:[%s25 + $0x1f4] sm:$0xf] %v272
            %v274 = vld [vmem:[%s24 + $0x1f0] sm:$0xf]
            %275 = vst [vmem:[%s25 + $0x1f8] sm:$0xf] %v274
            %v276 = vld [vmem:[%s24 + $0x1f4] sm:$0xf]
            %277 = vst [vmem:[%s25 + $0x1fc] sm:$0xf] %v276
            %v278 = vld [vmem:[%s24 + $0x1f8] sm:$0xf]
            %279 = vst [vmem:[%s25 + $0x200] sm:$0xf] %v278
            %v280 = vld [vmem:[%s24 + $0x1fc] sm:$0xf]
            %281 = vst [vmem:[%s25 + $0x204] sm:$0xf] %v280
            %v282 = vld [vmem:[%s24 + $0x200] sm:$0xf]
            %283 = vst [vmem:[%s25 + $0x208] sm:$0xf] %v282
            %v284 = vld [vmem:[%s24 + $0x204] sm:$0xf]
            %285 = vst [vmem:[%s25 + $0x20c] sm:$0xf] %v284
            %v286 = vld [vmem:[%s24 + $0x208] sm:$0xf]
            %287 = vst [vmem:[%s25 + $0x210] sm:$0xf] %v286
            %v288 = vld [vmem:[%s24 + $0x20c] sm:$0xf]
            %289 = vst [vmem:[%s25 + $0x214] sm:$0xf] %v288
            %v290 = vld [vmem:[%s24 + $0x210] sm:$0xf]
            %291 = vst [vmem:[%s25 + $0x218] sm:$0xf] %v290
            %v292 = vld [vmem:[%s24 + $0x214] sm:$0xf]
            %293 = vst [vmem:[%s25 + $0x21c] sm:$0xf] %v292
            %v294 = vld [vmem:[%s24 + $0x218] sm:$0xf]
            %295 = vst [vmem:[%s25 + $0x220] sm:$0xf] %v294
            %v296 = vld [vmem:[%s24 + $0x21c] sm:$0xf]
            %297 = vst [vmem:[%s25 + $0x224] sm:$0xf] %v296
            %v298 = vld [vmem:[%s24 + $0x220] sm:$0xf]
            %299 = vst [vmem:[%s25 + $0x228] sm:$0xf] %v298
            %v300 = vld [vmem:[%s24 + $0x224] sm:$0xf]
            %301 = vst [vmem:[%s25 + $0x22c] sm:$0xf] %v300
            %v302 = vld [vmem:[%s24 + $0x228] sm:$0xf]
            %303 = vst [vmem:[%s25 + $0x230] sm:$0xf] %v302
            %v304 = vld [vmem:[%s24 + $0x22c] sm:$0xf]
            %305 = vst [vmem:[%s25 + $0x234] sm:$0xf] %v304
            %v306 = vld [vmem:[%s24 + $0x230] sm:$0xf]
            %307 = vst [vmem:[%s25 + $0x238] sm:$0xf] %v306
            %v308 = vld [vmem:[%s24 + $0x234] sm:$0xf]
            %309 = vst [vmem:[%s25 + $0x23c] sm:$0xf] %v308
            %v310 = vld [vmem:[%s24 + $0x238] sm:$0xf]
            %311 = vst [vmem:[%s25 + $0x240] sm:$0xf] %v310
            %v312 = vld [vmem:[%s24 + $0x23c] sm:$0xf]
            %313 = vst [vmem:[%s25 + $0x244] sm:$0xf] %v312
            %v314 = vld [vmem:[%s24 + $0x240] sm:$0xf]
            %315 = vst [vmem:[%s25 + $0x248] sm:$0xf] %v314
            %v316 = vld [vmem:[%s24 + $0x244] sm:$0xf]
            %317 = vst [vmem:[%s25 + $0x24c] sm:$0xf] %v316
            %v318 = vld [vmem:[%s24 + $0x248] sm:$0xf]
            %319 = vst [vmem:[%s25 + $0x250] sm:$0xf] %v318
            %v320 = vld [vmem:[%s24 + $0x24c] sm:$0xf]
            %321 = vst [vmem:[%s25 + $0x258] sm:$0xf] %v320
            %v322 = vld [vmem:[%s24 + $0x250] sm:$0xf]
            %323 = vst [vmem:[%s25 + $0x25c] sm:$0xf] %v322
            %v324 = vld [vmem:[%s24 + $0x254] sm:$0xf]
            %325 = vst [vmem:[%s25 + $0x260] sm:$0xf] %v324
            %v326 = vld [vmem:[%s24 + $0x258] sm:$0xf]
            %327 = vst [vmem:[%s25 + $0x264] sm:$0xf] %v326
            %v328 = vld [vmem:[%s24 + $0x25c] sm:$0xf]
            %329 = vst [vmem:[%s25 + $0x268] sm:$0xf] %v328
            %v330 = vld [vmem:[%s24 + $0x260] sm:$0xf]
            %331 = vst [vmem:[%s25 + $0x26c] sm:$0xf] %v330
            %v332 = vld [vmem:[%s24 + $0x264] sm:$0xf]
            %333 = vst [vmem:[%s25 + $0x270] sm:$0xf] %v332
            %v334 = vld [vmem:[%s24 + $0x268] sm:$0xf]
            %335 = vst [vmem:[%s25 + $0x274] sm:$0xf] %v334
            %v336 = vld [vmem:[%s24 + $0x26c] sm:$0xf]
            %337 = vst [vmem:[%s25 + $0x278] sm:$0xf] %v336
            %v338 = vld [vmem:[%s24 + $0x270] sm:$0xf]
            %339 = vst [vmem:[%s25 + $0x27c] sm:$0xf] %v338
            %v340 = vld [vmem:[%s24 + $0x274] sm:$0xf]
            %341 = vst [vmem:[%s25 + $0x280] sm:$0xf] %v340
            %v342 = vld [vmem:[%s24 + $0x278] sm:$0xf]
            %343 = vst [vmem:[%s25 + $0x284] sm:$0xf] %v342
            %v344 = vld [vmem:[%s24 + $0x27c] sm:$0xf]
            %345 = vst [vmem:[%s25 + $0x288] sm:$0xf] %v344
            %v346 = vld [vmem:[%s24 + $0x280] sm:$0xf]
            %347 = vst [vmem:[%s25 + $0x28c] sm:$0xf] %v346
            %v348 = vld [vmem:[%s24 + $0x284] sm:$0xf]
            %349 = vst [vmem:[%s25 + $0x290] sm:$0xf] %v348
            %v350 = vld [vmem:[%s24 + $0x288] sm:$0xf]
            %351 = vst [vmem:[%s25 + $0x294] sm:$0xf] %v350
            %v352 = vld [vmem:[%s24 + $0x28c] sm:$0xf]
            %353 = vst [vmem:[%s25 + $0x298] sm:$0xf] %v352
            %v354 = vld [vmem:[%s24 + $0x290] sm:$0xf]
            %355 = vst [vmem:[%s25 + $0x29c] sm:$0xf] %v354
            %v356 = vld [vmem:[%s24 + $0x294] sm:$0xf]
            %357 = vst [vmem:[%s25 + $0x2a0] sm:$0xf] %v356
            %v358 = vld [vmem:[%s24 + $0x298] sm:$0xf]
            %359 = vst [vmem:[%s25 + $0x2a4] sm:$0xf] %v358
            %v360 = vld [vmem:[%s24 + $0x29c] sm:$0xf]
            %361 = vst [vmem:[%s25 + $0x2a8] sm:$0xf] %v360
            %v362 = vld [vmem:[%s24 + $0x2a0] sm:$0xf]
            %363 = vst [vmem:[%s25 + $0x2ac] sm:$0xf] %v362
            %v364 = vld [vmem:[%s24 + $0x2a4] sm:$0xf]
            %365 = vst [vmem:[%s25 + $0x2b0] sm:$0xf] %v364
            %v366 = vld [vmem:[%s24 + $0x2a8] sm:$0xf]
            %367 = vst [vmem:[%s25 + $0x2b4] sm:$0xf] %v366
            %v368 = vld [vmem:[%s24 + $0x2ac] sm:$0xf]
            %369 = vst [vmem:[%s25 + $0x2b8] sm:$0xf] %v368
            %v370 = vld [vmem:[%s24 + $0x2b0] sm:$0xf]
            %371 = vst [vmem:[%s25 + $0x2bc] sm:$0xf] %v370
            %v372 = vld [vmem:[%s24 + $0x2b4] sm:$0xf]
            %373 = vst [vmem:[%s25 + $0x2c0] sm:$0xf] %v372
            %v374 = vld [vmem:[%s24 + $0x2b8] sm:$0xf]
            %375 = vst [vmem:[%s25 + $0x2c4] sm:$0xf] %v374
            %v376 = vld [vmem:[%s24 + $0x2bc] sm:$0xf]
            %377 = vst [vmem:[%s25 + $0x2c8] sm:$0xf] %v376
            %v378 = vld [vmem:[%s24 + $0x2c0] sm:$0xf]
            %379 = vst [vmem:[%s25 + $0x2cc] sm:$0xf] %v378
            %v380 = vld [vmem:[%s24 + $0x2c4] sm:$0xf]
            %381 = vst [vmem:[%s25 + $0x2d0] sm:$0xf] %v380
            %v382 = vld [vmem:[%s24 + $0x2c8] sm:$0xf]
            %383 = vst [vmem:[%s25 + $0x2d4] sm:$0xf] %v382
            %v384 = vld [vmem:[%s24 + $0x2cc] sm:$0xf]
            %385 = vst [vmem:[%s25 + $0x2d8] sm:$0xf] %v384
            %v386 = vld [vmem:[%s24 + $0x2d0] sm:$0xf]
            %387 = vst [vmem:[%s25 + $0x2dc] sm:$0xf] %v386
            %v388 = vld [vmem:[%s24 + $0x2d4] sm:$0xf]
            %389 = vst [vmem:[%s25 + $0x2e0] sm:$0xf] %v388
            %v390 = vld [vmem:[%s24 + $0x2d8] sm:$0xf]
            %391 = vst [vmem:[%s25 + $0x2e4] sm:$0xf] %v390
            %v392 = vld [vmem:[%s24 + $0x2dc] sm:$0xf]
            %393 = vst [vmem:[%s25 + $0x2e8] sm:$0xf] %v392
            %v394 = vld [vmem:[%s24 + $0x2e0] sm:$0xf]
            %395 = vst [vmem:[%s25 + $0x2ec] sm:$0xf] %v394
            %v396 = vld [vmem:[%s24 + $0x2e4] sm:$0xf]
            %397 = vst [vmem:[%s25 + $0x2f0] sm:$0xf] %v396
            %v398 = vld [vmem:[%s24 + $0x2e8] sm:$0xf]
            %399 = vst [vmem:[%s25 + $0x2f4] sm:$0xf] %v398
            %v400 = vld [vmem:[%s24 + $0x2ec] sm:$0xf]
            %401 = vst [vmem:[%s25 + $0x2f8] sm:$0xf] %v400
            %v402 = vld [vmem:[%s24 + $0x2f0] sm:$0xf]
            %403 = vst [vmem:[%s25 + $0x2fc] sm:$0xf] %v402
            %v404 = vld [vmem:[%s24 + $0x2f4] sm:$0xf]
            %405 = vst [vmem:[%s25 + $0x300] sm:$0xf] %v404
            %v406 = vld [vmem:[%s24 + $0x2f8] sm:$0xf]
            %407 = vst [vmem:[%s25 + $0x304] sm:$0xf] %v406
            %v408 = vld [vmem:[%s24 + $0x2fc] sm:$0xf]
            %409 = vst [vmem:[%s25 + $0x308] sm:$0xf] %v408
            %v410 = vld [vmem:[%s24 + $0x300] sm:$0xf]
            %411 = vst [vmem:[%s25 + $0x30c] sm:$0xf] %v410
            %v412 = vld [vmem:[%s24 + $0x304] sm:$0xf]
            %413 = vst [vmem:[%s25 + $0x310] sm:$0xf] %v412
            %v414 = vld [vmem:[%s24 + $0x308] sm:$0xf]
            %415 = vst [vmem:[%s25 + $0x314] sm:$0xf] %v414
            %v416 = vld [vmem:[%s24 + $0x30c] sm:$0xf]
            %417 = vst [vmem:[%s25 + $0x318] sm:$0xf] %v416
          $region22: #{cnn_forward.3} parent=16 // loop_footer
            %s23 = sadd.s32 1, %s19
          $region23: #{cnn_forward.3} parent=16 // loop_footer_branch
            %18 = sbr.rel target = $region19
          $region24: #{cnn_forward.3} parent=16 // loop_exit
            _
        $region17: #{cnn_forward.3} parent=8 // pred_fallthru
          _
      $region9: #{cnn_forward.3} parent=4 // pred_fallthru
        _
      %829 = vnop
    $region5: #{cnn_forward.3} parent=1 // pred_fallthru
      _
    // Predicated region
    $region43: #{cnn_forward.3} parent=1 // pred_check
      _
    $region44: #{cnn_forward.3} parent=1 // pred_check_branch
      %831 = sbr.rel (0) target = $region46
    $region45: #{cnn_forward.3} parent=1 // pred_region
      _
    $region46: #{cnn_forward.3} parent=1 // pred_fallthru
      _
    // Predicated region
    $region47: #{cnn_forward.3} parent=1 // pred_check
      _
    $region48: #{cnn_forward.3} parent=1 // pred_check_branch
      %833 = sbr.rel (0) target = $region50
    $region49: #{cnn_forward.3} parent=1 // pred_region
      _
    $region50: #{cnn_forward.3} parent=1 // pred_fallthru
      _
    // Predicated region
    $region51: #{cnn_forward.3} parent=1 // pred_check
      _
    $region52: #{cnn_forward.3} parent=1 // pred_check_branch
      %835 = sbr.rel (0) target = $region54
    $region53: #{cnn_forward.3} parent=1 // pred_region
      _
    $region54: #{cnn_forward.3} parent=1 // pred_fallthru
      _
    // Predicated region
    $region55: #{cnn_forward.3} parent=1 // pred_check
      _
    $region56: #{cnn_forward.3} parent=1 // pred_check_branch
      %837 = sbr.rel (0) target = $region58
    $region57: #{cnn_forward.3} parent=1 // pred_region
      _
    $region58: #{cnn_forward.3} parent=1 // pred_fallthru
      _
    %v839 = vld [vmem:[#allocation2] sm:$0xf]
    %v840 = vld [vmem:[#allocation2 + $0x4] sm:$0xf]
    %v841 = vld [vmem:[#allocation2 + $0x8] sm:$0xf]
    %v842 = vld [vmem:[#allocation2 + $0xc] sm:$0xf]
    %v843 = vld [vmem:[#allocation2 + $0x10] sm:$0xf]
    %v844 = vld [vmem:[#allocation2 + $0x14] sm:$0xf]
    %v845 = vld [vmem:[#allocation2 + $0x18] sm:$0xf]
    %v846 = vld [vmem:[#allocation2 + $0x1c] sm:$0xf]
    %v847 = vld [vmem:[#allocation2 + $0x20] sm:$0xf]
    %v848 = vld [vmem:[#allocation2 + $0x24] sm:$0xf]
    %v849 = vld [vmem:[#allocation2 + $0x28] sm:$0xf]
    %v850 = vld [vmem:[#allocation2 + $0x2c] sm:$0xf]
    %v851 = vld [vmem:[#allocation2 + $0x30] sm:$0xf]
    %v852 = vld [vmem:[#allocation2 + $0x34] sm:$0xf]
    %v853 = vld [vmem:[#allocation2 + $0x38] sm:$0xf]
    %v854 = vld [vmem:[#allocation2 + $0x3c] sm:$0xf]
    %v855 = vld [vmem:[#allocation2 + $0x40] sm:$0xf]
    %v856 = vld [vmem:[#allocation2 + $0x44] sm:$0xf]
    %v857 = vld [vmem:[#allocation2 + $0x48] sm:$0xf]
    %v858 = vld [vmem:[#allocation2 + $0x4c] sm:$0xf]
    %v859 = vld [vmem:[#allocation2 + $0x50] sm:$0xf]
    %v860 = vld [vmem:[#allocation2 + $0x54] sm:$0xf]
    %v861 = vld [vmem:[#allocation2 + $0x58] sm:$0xf]
    %v862 = vld [vmem:[#allocation2 + $0x5c] sm:$0xf]
    %v863 = vld [vmem:[#allocation2 + $0x60] sm:$0xf]
    %v864 = vld [vmem:[#allocation2 + $0x64] sm:$0xf]
    %v865 = vld [vmem:[#allocation2 + $0x68] sm:$0xf]
    %v866 = vld [vmem:[#allocation2 + $0x6c] sm:$0xf]
    %v867 = vld [vmem:[#allocation2 + $0x70] sm:$0xf]
    %v868 = vld [vmem:[#allocation2 + $0x74] sm:$0xf]
    %v869 = vld [vmem:[#allocation2 + $0x78] sm:$0xf]
    %v870 = vld [vmem:[#allocation2 + $0x7c] sm:$0xf]
    %v871 = vld [vmem:[#allocation2 + $0x80] sm:$0xf]
    %v872 = vld [vmem:[#allocation2 + $0x84] sm:$0xf]
    %v873 = vld [vmem:[#allocation2 + $0x88] sm:$0xf]
    %v874 = vld [vmem:[#allocation2 + $0x8c] sm:$0xf]
    %v875 = vld [vmem:[#allocation2 + $0x90] sm:$0xf]
    %v876 = vld [vmem:[#allocation2 + $0x94] sm:$0xf]
    %v877 = vld [vmem:[#allocation2 + $0x98] sm:$0xf]
    %v878 = vld [vmem:[#allocation2 + $0x9c] sm:$0xf]
    %v879 = vld [vmem:[#allocation2 + $0xa0] sm:$0xf]
    %v880 = vld [vmem:[#allocation2 + $0xa4] sm:$0xf]
    %v881 = vld [vmem:[#allocation2 + $0xa8] sm:$0xf]
    %v882 = vld [vmem:[#allocation2 + $0xac] sm:$0xf]
    %v883 = vld [vmem:[#allocation2 + $0xb0] sm:$0xf]
    %v884 = vld [vmem:[#allocation2 + $0xb4] sm:$0xf]
    %v885 = vld [vmem:[#allocation2 + $0xb8] sm:$0xf]
    %v886 = vld [vmem:[#allocation2 + $0xbc] sm:$0xf]
    %v887 = vld [vmem:[#allocation2 + $0xc0] sm:$0xf]
    %v888 = vld [vmem:[#allocation2 + $0xc4] sm:$0xf]
    %s889 = scalar_lea.vmem [#allocation2], 200
    %v890 = vld [vmem:[%s889] sm:$0xf]
    %v891 = vld [vmem:[%s889 + $0x4] sm:$0xf]
    %v892 = vld [vmem:[%s889 + $0x8] sm:$0xf]
    %v893 = vld [vmem:[%s889 + $0xc] sm:$0xf]
    %v894 = vld [vmem:[%s889 + $0x10] sm:$0xf]
    %v895 = vld [vmem:[%s889 + $0x14] sm:$0xf]
    %v896 = vld [vmem:[%s889 + $0x18] sm:$0xf]
    %v897 = vld [vmem:[%s889 + $0x1c] sm:$0xf]
    %v898 = vld [vmem:[%s889 + $0x20] sm:$0xf]
    %v899 = vld [vmem:[%s889 + $0x24] sm:$0xf]
    %v900 = vld [vmem:[%s889 + $0x28] sm:$0xf]
    %v901 = vld [vmem:[%s889 + $0x2c] sm:$0xf]
    %v902 = vld [vmem:[%s889 + $0x30] sm:$0xf]
    %v903 = vld [vmem:[%s889 + $0x34] sm:$0xf]
    %v904 = vld [vmem:[%s889 + $0x38] sm:$0xf]
    %v905 = vld [vmem:[%s889 + $0x3c] sm:$0xf]
    %v906 = vld [vmem:[%s889 + $0x40] sm:$0xf]
    %v907 = vld [vmem:[%s889 + $0x44] sm:$0xf]
    %v908 = vld [vmem:[%s889 + $0x48] sm:$0xf]
    %v909 = vld [vmem:[%s889 + $0x4c] sm:$0xf]
    %v910 = vld [vmem:[%s889 + $0x50] sm:$0xf]
    %v911 = vld [vmem:[%s889 + $0x54] sm:$0xf]
    %v912 = vld [vmem:[%s889 + $0x58] sm:$0xf]
    %v913 = vld [vmem:[%s889 + $0x5c] sm:$0xf]
    %v914 = vld [vmem:[%s889 + $0x60] sm:$0xf]
    %v915 = vld [vmem:[%s889 + $0x64] sm:$0xf]
    %v916 = vld [vmem:[%s889 + $0x68] sm:$0xf]
    %v917 = vld [vmem:[%s889 + $0x6c] sm:$0xf]
    %v918 = vld [vmem:[%s889 + $0x70] sm:$0xf]
    %v919 = vld [vmem:[%s889 + $0x74] sm:$0xf]
    %v920 = vld [vmem:[%s889 + $0x78] sm:$0xf]
    %v921 = vld [vmem:[%s889 + $0x7c] sm:$0xf]
    %v922 = vld [vmem:[%s889 + $0x80] sm:$0xf]
    %v923 = vld [vmem:[%s889 + $0x84] sm:$0xf]
    %v924 = vld [vmem:[%s889 + $0x88] sm:$0xf]
    %v925 = vld [vmem:[%s889 + $0x8c] sm:$0xf]
    %v926 = vld [vmem:[%s889 + $0x90] sm:$0xf]
    %v927 = vld [vmem:[%s889 + $0x94] sm:$0xf]
    %v928 = vld [vmem:[%s889 + $0x98] sm:$0xf]
    %v929 = vld [vmem:[%s889 + $0x9c] sm:$0xf]
    %v930 = vld [vmem:[%s889 + $0xa0] sm:$0xf]
    %v931 = vld [vmem:[%s889 + $0xa4] sm:$0xf]
    %v932 = vld [vmem:[%s889 + $0xa8] sm:$0xf]
    %v933 = vld [vmem:[%s889 + $0xac] sm:$0xf]
    %v934 = vld [vmem:[%s889 + $0xb0] sm:$0xf]
    %v935 = vld [vmem:[%s889 + $0xb4] sm:$0xf]
    %v936 = vld [vmem:[%s889 + $0xb8] sm:$0xf]
    %v937 = vld [vmem:[%s889 + $0xbc] sm:$0xf]
    %v938 = vld [vmem:[%s889 + $0xc0] sm:$0xf]
    %v939 = vld [vmem:[%s889 + $0xc4] sm:$0xf]
    %s940 = scalar_lea.vmem [#allocation2], 400
    %v941 = vld [vmem:[%s940] sm:$0xf]
    %v942 = vld [vmem:[%s940 + $0x4] sm:$0xf]
    %v943 = vld [vmem:[%s940 + $0x8] sm:$0xf]
    %v944 = vld [vmem:[%s940 + $0xc] sm:$0xf]
    %v945 = vld [vmem:[%s940 + $0x10] sm:$0xf]
    %v946 = vld [vmem:[%s940 + $0x14] sm:$0xf]
    %v947 = vld [vmem:[%s940 + $0x18] sm:$0xf]
    %v948 = vld [vmem:[%s940 + $0x1c] sm:$0xf]
    %v949 = vld [vmem:[%s940 + $0x20] sm:$0xf]
    %v950 = vld [vmem:[%s940 + $0x24] sm:$0xf]
    %v951 = vld [vmem:[%s940 + $0x28] sm:$0xf]
    %v952 = vld [vmem:[%s940 + $0x2c] sm:$0xf]
    %v953 = vld [vmem:[%s940 + $0x30] sm:$0xf]
    %v954 = vld [vmem:[%s940 + $0x34] sm:$0xf]
    %v955 = vld [vmem:[%s940 + $0x38] sm:$0xf]
    %v956 = vld [vmem:[%s940 + $0x3c] sm:$0xf]
    %v957 = vld [vmem:[%s940 + $0x40] sm:$0xf]
    %v958 = vld [vmem:[%s940 + $0x44] sm:$0xf]
    %v959 = vld [vmem:[%s940 + $0x48] sm:$0xf]
    %v960 = vld [vmem:[%s940 + $0x4c] sm:$0xf]
    %v961 = vld [vmem:[%s940 + $0x50] sm:$0xf]
    %v962 = vld [vmem:[%s940 + $0x54] sm:$0xf]
    %v963 = vld [vmem:[%s940 + $0x58] sm:$0xf]
    %v964 = vld [vmem:[%s940 + $0x5c] sm:$0xf]
    %v965 = vld [vmem:[%s940 + $0x60] sm:$0xf]
    %v966 = vld [vmem:[%s940 + $0x64] sm:$0xf]
    %v967 = vld [vmem:[%s940 + $0x68] sm:$0xf]
    %v968 = vld [vmem:[%s940 + $0x6c] sm:$0xf]
    %v969 = vld [vmem:[%s940 + $0x70] sm:$0xf]
    %v970 = vld [vmem:[%s940 + $0x74] sm:$0xf]
    %v971 = vld [vmem:[%s940 + $0x78] sm:$0xf]
    %v972 = vld [vmem:[%s940 + $0x7c] sm:$0xf]
    %v973 = vld [vmem:[%s940 + $0x80] sm:$0xf]
    %v974 = vld [vmem:[%s940 + $0x84] sm:$0xf]
    %v975 = vld [vmem:[%s940 + $0x88] sm:$0xf]
    %v976 = vld [vmem:[%s940 + $0x8c] sm:$0xf]
    %v977 = vld [vmem:[%s940 + $0x90] sm:$0xf]
    %v978 = vld [vmem:[%s940 + $0x94] sm:$0xf]
    %v979 = vld [vmem:[%s940 + $0x98] sm:$0xf]
    %v980 = vld [vmem:[%s940 + $0x9c] sm:$0xf]
    %v981 = vld [vmem:[%s940 + $0xa0] sm:$0xf]
    %v982 = vld [vmem:[%s940 + $0xa4] sm:$0xf]
    %v983 = vld [vmem:[%s940 + $0xa8] sm:$0xf]
    %v984 = vld [vmem:[%s940 + $0xac] sm:$0xf]
    %v985 = vld [vmem:[%s940 + $0xb0] sm:$0xf]
    %v986 = vld [vmem:[%s940 + $0xb4] sm:$0xf]
    %v987 = vld [vmem:[%s940 + $0xb8] sm:$0xf]
    %v988 = vld [vmem:[%s940 + $0xbc] sm:$0xf]
    %v989 = vld [vmem:[%s940 + $0xc0] sm:$0xf]
    %v990 = vld [vmem:[%s940 + $0xc4] sm:$0xf]
    %s991 = scalar_lea.vmem [#allocation2], 600
    %v992 = vld [vmem:[%s991] sm:$0xf]
    %v993 = vld [vmem:[%s991 + $0x4] sm:$0xf]
    %v994 = vld [vmem:[%s991 + $0x8] sm:$0xf]
    %v995 = vld [vmem:[%s991 + $0xc] sm:$0xf]
    %v996 = vld [vmem:[%s991 + $0x10] sm:$0xf]
    %v997 = vld [vmem:[%s991 + $0x14] sm:$0xf]
    %v998 = vld [vmem:[%s991 + $0x18] sm:$0xf]
    %v999 = vld [vmem:[%s991 + $0x1c] sm:$0xf]
    %v1000 = vld [vmem:[%s991 + $0x20] sm:$0xf]
    %v1001 = vld [vmem:[%s991 + $0x24] sm:$0xf]
    %v1002 = vld [vmem:[%s991 + $0x28] sm:$0xf]
    %v1003 = vld [vmem:[%s991 + $0x2c] sm:$0xf]
    %v1004 = vld [vmem:[%s991 + $0x30] sm:$0xf]
    %v1005 = vld [vmem:[%s991 + $0x34] sm:$0xf]
    %v1006 = vld [vmem:[%s991 + $0x38] sm:$0xf]
    %v1007 = vld [vmem:[%s991 + $0x3c] sm:$0xf]
    %v1008 = vld [vmem:[%s991 + $0x40] sm:$0xf]
    %v1009 = vld [vmem:[%s991 + $0x44] sm:$0xf]
    %v1010 = vld [vmem:[%s991 + $0x48] sm:$0xf]
    %v1011 = vld [vmem:[%s991 + $0x4c] sm:$0xf]
    %v1012 = vld [vmem:[%s991 + $0x50] sm:$0xf]
    %v1013 = vld [vmem:[%s991 + $0x54] sm:$0xf]
    %v1014 = vld [vmem:[%s991 + $0x58] sm:$0xf]
    %v1015 = vld [vmem:[%s991 + $0x5c] sm:$0xf]
    %v1016 = vld [vmem:[%s991 + $0x60] sm:$0xf]
    %v1017 = vld [vmem:[%s991 + $0x64] sm:$0xf]
    %v1018 = vld [vmem:[%s991 + $0x68] sm:$0xf]
    %v1019 = vld [vmem:[%s991 + $0x6c] sm:$0xf]
    %v1020 = vld [vmem:[%s991 + $0x70] sm:$0xf]
    %v1021 = vld [vmem:[%s991 + $0x74] sm:$0xf]
    %v1022 = vld [vmem:[%s991 + $0x78] sm:$0xf]
    %v1023 = vld [vmem:[%s991 + $0x7c] sm:$0xf]
    %v1024 = vld [vmem:[%s991 + $0x80] sm:$0xf]
    %v1025 = vld [vmem:[%s991 + $0x84] sm:$0xf]
    %v1026 = vld [vmem:[%s991 + $0x88] sm:$0xf]
    %v1027 = vld [vmem:[%s991 + $0x8c] sm:$0xf]
    %v1028 = vld [vmem:[%s991 + $0x90] sm:$0xf]
    %v1029 = vld [vmem:[%s991 + $0x94] sm:$0xf]
    %v1030 = vld [vmem:[%s991 + $0x98] sm:$0xf]
    %v1031 = vld [vmem:[%s991 + $0x9c] sm:$0xf]
    %v1032 = vld [vmem:[%s991 + $0xa0] sm:$0xf]
    %v1033 = vld [vmem:[%s991 + $0xa4] sm:$0xf]
    %v1034 = vld [vmem:[%s991 + $0xa8] sm:$0xf]
    %v1035 = vld [vmem:[%s991 + $0xac] sm:$0xf]
    %v1036 = vld [vmem:[%s991 + $0xb0] sm:$0xf]
    %v1037 = vld [vmem:[%s991 + $0xb4] sm:$0xf]
    %v1038 = vld [vmem:[%s991 + $0xb8] sm:$0xf]
    %v1039 = vld [vmem:[%s991 + $0xbc] sm:$0xf]
    %v1040 = vld [vmem:[%s991 + $0xc0] sm:$0xf]
    %v1041 = vld [vmem:[%s991 + $0xc4] sm:$0xf]
    %v1092 = vunpack.c.l.b16 %v839
    %v1093 = vunpack.c.l.b16 %v840
    %v1094 = vunpack.c.l.b16 %v841
    %v1095 = vunpack.c.l.b16 %v842
    %v1096 = vunpack.c.l.b16 %v843
    %v1097 = vunpack.c.l.b16 %v844
    %v1098 = vunpack.c.l.b16 %v845
    %v1099 = vunpack.c.l.b16 %v846
    %v1100 = vunpack.c.l.b16 %v847
    %v1101 = vunpack.c.l.b16 %v848
    %v1102 = vunpack.c.l.b16 %v849
    %v1103 = vunpack.c.l.b16 %v850
    %v1104 = vunpack.c.l.b16 %v851
    %v1105 = vunpack.c.l.b16 %v852
    %v1106 = vunpack.c.l.b16 %v853
    %v1107 = vunpack.c.l.b16 %v854
    %v1108 = vunpack.c.l.b16 %v855
    %v1109 = vunpack.c.l.b16 %v856
    %v1110 = vunpack.c.l.b16 %v857
    %v1111 = vunpack.c.l.b16 %v858
    %v1112 = vunpack.c.l.b16 %v859
    %v1113 = vunpack.c.l.b16 %v860
    %v1114 = vunpack.c.l.b16 %v861
    %v1115 = vunpack.c.l.b16 %v862
    %v1116 = vunpack.c.l.b16 %v863
    %v1117 = vunpack.c.l.b16 %v864
    %v1118 = vunpack.c.l.b16 %v865
    %v1119 = vunpack.c.l.b16 %v866
    %v1120 = vunpack.c.l.b16 %v867
    %v1121 = vunpack.c.l.b16 %v868
    %v1122 = vunpack.c.l.b16 %v869
    %v1123 = vunpack.c.l.b16 %v870
    %v1124 = vunpack.c.l.b16 %v871
    %v1125 = vunpack.c.l.b16 %v872
    %v1126 = vunpack.c.l.b16 %v873
    %v1127 = vunpack.c.l.b16 %v874
    %v1128 = vunpack.c.l.b16 %v875
    %v1129 = vunpack.c.l.b16 %v876
    %v1130 = vunpack.c.l.b16 %v877
    %v1131 = vunpack.c.l.b16 %v878
    %v1132 = vunpack.c.l.b16 %v879
    %v1133 = vunpack.c.l.b16 %v880
    %v1134 = vunpack.c.l.b16 %v881
    %v1135 = vunpack.c.l.b16 %v882
    %v1136 = vunpack.c.l.b16 %v883
    %v1137 = vunpack.c.l.b16 %v884
    %v1138 = vunpack.c.l.b16 %v885
    %v1139 = vunpack.c.l.b16 %v886
    %v1140 = vunpack.c.l.b16 %v887
    %v1141 = vunpack.c.l.b16 %v888
    %v1142 = vpack.c.b16 %v1093, %v1092
    %v1143 = vpack.c.b16 %v1095, %v1094
    %v1144 = vpack.c.b16 %v1097, %v1096
    %v1145 = vpack.c.b16 %v1099, %v1098
    %v1146 = vpack.c.b16 %v1101, %v1100
    %v1147 = vpack.c.b16 %v1103, %v1102
    %v1148 = vpack.c.b16 %v1105, %v1104
    %v1149 = vpack.c.b16 %v1107, %v1106
    %v1150 = vpack.c.b16 %v1109, %v1108
    %v1151 = vpack.c.b16 %v1111, %v1110
    %v1152 = vpack.c.b16 %v1113, %v1112
    %v1153 = vpack.c.b16 %v1115, %v1114
    %v1154 = vpack.c.b16 %v1117, %v1116
    %v1155 = vpack.c.b16 %v1119, %v1118
    %v1156 = vpack.c.b16 %v1121, %v1120
    %v1157 = vpack.c.b16 %v1123, %v1122
    %v1158 = vpack.c.b16 %v1125, %v1124
    %v1159 = vpack.c.b16 %v1127, %v1126
    %v1160 = vpack.c.b16 %v1129, %v1128
    %v1161 = vpack.c.b16 %v1131, %v1130
    %v1162 = vpack.c.b16 %v1133, %v1132
    %v1163 = vpack.c.b16 %v1135, %v1134
    %v1164 = vpack.c.b16 %v1137, %v1136
    %v1165 = vpack.c.b16 %v1139, %v1138
    %v1166 = vpack.c.b16 %v1141, %v1140
    %v1217 = vunpack.c.l.b16 %v890
    %v1218 = vunpack.c.l.b16 %v891
    %v1219 = vunpack.c.l.b16 %v892
    %v1220 = vunpack.c.l.b16 %v893
    %v1221 = vunpack.c.l.b16 %v894
    %v1222 = vunpack.c.l.b16 %v895
    %v1223 = vunpack.c.l.b16 %v896
    %v1224 = vunpack.c.l.b16 %v897
    %v1225 = vunpack.c.l.b16 %v898
    %v1226 = vunpack.c.l.b16 %v899
    %v1227 = vunpack.c.l.b16 %v900
    %v1228 = vunpack.c.l.b16 %v901
    %v1229 = vunpack.c.l.b16 %v902
    %v1230 = vunpack.c.l.b16 %v903
    %v1231 = vunpack.c.l.b16 %v904
    %v1232 = vunpack.c.l.b16 %v905
    %v1233 = vunpack.c.l.b16 %v906
    %v1234 = vunpack.c.l.b16 %v907
    %v1235 = vunpack.c.l.b16 %v908
    %v1236 = vunpack.c.l.b16 %v909
    %v1237 = vunpack.c.l.b16 %v910
    %v1238 = vunpack.c.l.b16 %v911
    %v1239 = vunpack.c.l.b16 %v912
    %v1240 = vunpack.c.l.b16 %v913
    %v1241 = vunpack.c.l.b16 %v914
    %v1242 = vunpack.c.l.b16 %v915
    %v1243 = vunpack.c.l.b16 %v916
    %v1244 = vunpack.c.l.b16 %v917
    %v1245 = vunpack.c.l.b16 %v918
    %v1246 = vunpack.c.l.b16 %v919
    %v1247 = vunpack.c.l.b16 %v920
    %v1248 = vunpack.c.l.b16 %v921
    %v1249 = vunpack.c.l.b16 %v922
    %v1250 = vunpack.c.l.b16 %v923
    %v1251 = vunpack.c.l.b16 %v924
    %v1252 = vunpack.c.l.b16 %v925
    %v1253 = vunpack.c.l.b16 %v926
    %v1254 = vunpack.c.l.b16 %v927
    %v1255 = vunpack.c.l.b16 %v928
    %v1256 = vunpack.c.l.b16 %v929
    %v1257 = vunpack.c.l.b16 %v930
    %v1258 = vunpack.c.l.b16 %v931
    %v1259 = vunpack.c.l.b16 %v932
    %v1260 = vunpack.c.l.b16 %v933
    %v1261 = vunpack.c.l.b16 %v934
    %v1262 = vunpack.c.l.b16 %v935
    %v1263 = vunpack.c.l.b16 %v936
    %v1264 = vunpack.c.l.b16 %v937
    %v1265 = vunpack.c.l.b16 %v938
    %v1266 = vunpack.c.l.b16 %v939
    %v1267 = vpack.c.b16 %v1218, %v1217
    %v1268 = vpack.c.b16 %v1220, %v1219
    %v1269 = vpack.c.b16 %v1222, %v1221
    %v1270 = vpack.c.b16 %v1224, %v1223
    %v1271 = vpack.c.b16 %v1226, %v1225
    %v1272 = vpack.c.b16 %v1228, %v1227
    %v1273 = vpack.c.b16 %v1230, %v1229
    %v1274 = vpack.c.b16 %v1232, %v1231
    %v1275 = vpack.c.b16 %v1234, %v1233
    %v1276 = vpack.c.b16 %v1236, %v1235
    %v1277 = vpack.c.b16 %v1238, %v1237
    %v1278 = vpack.c.b16 %v1240, %v1239
    %v1279 = vpack.c.b16 %v1242, %v1241
    %v1280 = vpack.c.b16 %v1244, %v1243
    %v1281 = vpack.c.b16 %v1246, %v1245
    %v1282 = vpack.c.b16 %v1248, %v1247
    %v1283 = vpack.c.b16 %v1250, %v1249
    %v1284 = vpack.c.b16 %v1252, %v1251
    %v1285 = vpack.c.b16 %v1254, %v1253
    %v1286 = vpack.c.b16 %v1256, %v1255
    %v1287 = vpack.c.b16 %v1258, %v1257
    %v1288 = vpack.c.b16 %v1260, %v1259
    %v1289 = vpack.c.b16 %v1262, %v1261
    %v1290 = vpack.c.b16 %v1264, %v1263
    %v1291 = vpack.c.b16 %v1266, %v1265
    %v1342 = vunpack.c.l.b16 %v941
    %v1343 = vunpack.c.l.b16 %v942
    %v1344 = vunpack.c.l.b16 %v943
    %v1345 = vunpack.c.l.b16 %v944
    %v1346 = vunpack.c.l.b16 %v945
    %v1347 = vunpack.c.l.b16 %v946
    %v1348 = vunpack.c.l.b16 %v947
    %v1349 = vunpack.c.l.b16 %v948
    %v1350 = vunpack.c.l.b16 %v949
    %v1351 = vunpack.c.l.b16 %v950
    %v1352 = vunpack.c.l.b16 %v951
    %v1353 = vunpack.c.l.b16 %v952
    %v1354 = vunpack.c.l.b16 %v953
    %v1355 = vunpack.c.l.b16 %v954
    %v1356 = vunpack.c.l.b16 %v955
    %v1357 = vunpack.c.l.b16 %v956
    %v1358 = vunpack.c.l.b16 %v957
    %v1359 = vunpack.c.l.b16 %v958
    %v1360 = vunpack.c.l.b16 %v959
    %v1361 = vunpack.c.l.b16 %v960
    %v1362 = vunpack.c.l.b16 %v961
    %v1363 = vunpack.c.l.b16 %v962
    %v1364 = vunpack.c.l.b16 %v963
    %v1365 = vunpack.c.l.b16 %v964
    %v1366 = vunpack.c.l.b16 %v965
    %v1367 = vunpack.c.l.b16 %v966
    %v1368 = vunpack.c.l.b16 %v967
    %v1369 = vunpack.c.l.b16 %v968
    %v1370 = vunpack.c.l.b16 %v969
    %v1371 = vunpack.c.l.b16 %v970
    %v1372 = vunpack.c.l.b16 %v971
    %v1373 = vunpack.c.l.b16 %v972
    %v1374 = vunpack.c.l.b16 %v973
    %v1375 = vunpack.c.l.b16 %v974
    %v1376 = vunpack.c.l.b16 %v975
    %v1377 = vunpack.c.l.b16 %v976
    %v1378 = vunpack.c.l.b16 %v977
    %v1379 = vunpack.c.l.b16 %v978
    %v1380 = vunpack.c.l.b16 %v979
    %v1381 = vunpack.c.l.b16 %v980
    %v1382 = vunpack.c.l.b16 %v981
    %v1383 = vunpack.c.l.b16 %v982
    %v1384 = vunpack.c.l.b16 %v983
    %v1385 = vunpack.c.l.b16 %v984
    %v1386 = vunpack.c.l.b16 %v985
    %v1387 = vunpack.c.l.b16 %v986
    %v1388 = vunpack.c.l.b16 %v987
    %v1389 = vunpack.c.l.b16 %v988
    %v1390 = vunpack.c.l.b16 %v989
    %v1391 = vunpack.c.l.b16 %v990
    %v1392 = vpack.c.b16 %v1343, %v1342
    %v1393 = vpack.c.b16 %v1345, %v1344
    %v1394 = vpack.c.b16 %v1347, %v1346
    %v1395 = vpack.c.b16 %v1349, %v1348
    %v1396 = vpack.c.b16 %v1351, %v1350
    %v1397 = vpack.c.b16 %v1353, %v1352
    %v1398 = vpack.c.b16 %v1355, %v1354
    %v1399 = vpack.c.b16 %v1357, %v1356
    %v1400 = vpack.c.b16 %v1359, %v1358
    %v1401 = vpack.c.b16 %v1361, %v1360
    %v1402 = vpack.c.b16 %v1363, %v1362
    %v1403 = vpack.c.b16 %v1365, %v1364
    %v1404 = vpack.c.b16 %v1367, %v1366
    %v1405 = vpack.c.b16 %v1369, %v1368
    %v1406 = vpack.c.b16 %v1371, %v1370
    %v1407 = vpack.c.b16 %v1373, %v1372
    %v1408 = vpack.c.b16 %v1375, %v1374
    %v1409 = vpack.c.b16 %v1377, %v1376
    %v1410 = vpack.c.b16 %v1379, %v1378
    %v1411 = vpack.c.b16 %v1381, %v1380
    %v1412 = vpack.c.b16 %v1383, %v1382
    %v1413 = vpack.c.b16 %v1385, %v1384
    %v1414 = vpack.c.b16 %v1387, %v1386
    %v1415 = vpack.c.b16 %v1389, %v1388
    %v1416 = vpack.c.b16 %v1391, %v1390
    %v1467 = vunpack.c.l.b16 %v992
    %v1468 = vunpack.c.l.b16 %v993
    %v1469 = vunpack.c.l.b16 %v994
    %v1470 = vunpack.c.l.b16 %v995
    %v1471 = vunpack.c.l.b16 %v996
    %v1472 = vunpack.c.l.b16 %v997
    %v1473 = vunpack.c.l.b16 %v998
    %v1474 = vunpack.c.l.b16 %v999
    %v1475 = vunpack.c.l.b16 %v1000
    %v1476 = vunpack.c.l.b16 %v1001
    %v1477 = vunpack.c.l.b16 %v1002
    %v1478 = vunpack.c.l.b16 %v1003
    %v1479 = vunpack.c.l.b16 %v1004
    %v1480 = vunpack.c.l.b16 %v1005
    %v1481 = vunpack.c.l.b16 %v1006
    %v1482 = vunpack.c.l.b16 %v1007
    %v1483 = vunpack.c.l.b16 %v1008
    %v1484 = vunpack.c.l.b16 %v1009
    %v1485 = vunpack.c.l.b16 %v1010
    %v1486 = vunpack.c.l.b16 %v1011
    %v1487 = vunpack.c.l.b16 %v1012
    %v1488 = vunpack.c.l.b16 %v1013
    %v1489 = vunpack.c.l.b16 %v1014
    %v1490 = vunpack.c.l.b16 %v1015
    %v1491 = vunpack.c.l.b16 %v1016
    %v1492 = vunpack.c.l.b16 %v1017
    %v1493 = vunpack.c.l.b16 %v1018
    %v1494 = vunpack.c.l.b16 %v1019
    %v1495 = vunpack.c.l.b16 %v1020
    %v1496 = vunpack.c.l.b16 %v1021
    %v1497 = vunpack.c.l.b16 %v1022
    %v1498 = vunpack.c.l.b16 %v1023
    %v1499 = vunpack.c.l.b16 %v1024
    %v1500 = vunpack.c.l.b16 %v1025
    %v1501 = vunpack.c.l.b16 %v1026
    %v1502 = vunpack.c.l.b16 %v1027
    %v1503 = vunpack.c.l.b16 %v1028
    %v1504 = vunpack.c.l.b16 %v1029
    %v1505 = vunpack.c.l.b16 %v1030
    %v1506 = vunpack.c.l.b16 %v1031
    %v1507 = vunpack.c.l.b16 %v1032
    %v1508 = vunpack.c.l.b16 %v1033
    %v1509 = vunpack.c.l.b16 %v1034
    %v1510 = vunpack.c.l.b16 %v1035
    %v1511 = vunpack.c.l.b16 %v1036
    %v1512 = vunpack.c.l.b16 %v1037
    %v1513 = vunpack.c.l.b16 %v1038
    %v1514 = vunpack.c.l.b16 %v1039
    %v1515 = vunpack.c.l.b16 %v1040
    %v1516 = vunpack.c.l.b16 %v1041
    %v1517 = vpack.c.b16 %v1468, %v1467
    %v1518 = vpack.c.b16 %v1470, %v1469
    %v1519 = vpack.c.b16 %v1472, %v1471
    %v1520 = vpack.c.b16 %v1474, %v1473
    %v1521 = vpack.c.b16 %v1476, %v1475
    %v1522 = vpack.c.b16 %v1478, %v1477
    %v1523 = vpack.c.b16 %v1480, %v1479
    %v1524 = vpack.c.b16 %v1482, %v1481
    %v1525 = vpack.c.b16 %v1484, %v1483
    %v1526 = vpack.c.b16 %v1486, %v1485
    %v1527 = vpack.c.b16 %v1488, %v1487
    %v1528 = vpack.c.b16 %v1490, %v1489
    %v1529 = vpack.c.b16 %v1492, %v1491
    %v1530 = vpack.c.b16 %v1494, %v1493
    %v1531 = vpack.c.b16 %v1496, %v1495
    %v1532 = vpack.c.b16 %v1498, %v1497
    %v1533 = vpack.c.b16 %v1500, %v1499
    %v1534 = vpack.c.b16 %v1502, %v1501
    %v1535 = vpack.c.b16 %v1504, %v1503
    %v1536 = vpack.c.b16 %v1506, %v1505
    %v1537 = vpack.c.b16 %v1508, %v1507
    %v1538 = vpack.c.b16 %v1510, %v1509
    %v1539 = vpack.c.b16 %v1512, %v1511
    %v1540 = vpack.c.b16 %v1514, %v1513
    %v1541 = vpack.c.b16 %v1516, %v1515
    %v1542 = vld [vmem:[%s1] sm:$0xf]
    %v1543 = vld [vmem:[%s1 + $0x4] sm:$0x1]
    %v1546 = vunpack.c.l.b16 %v1542
    %v1547 = vunpack.c.l.b16 %v1543
    %v1548 = vpack.c.b16 %v1547, %v1546
    %vm1549 = vcmask 72704
    %v1551 = vsel %vm1549, %v1142, 0
    %v1554 = vsel %vm1549, %v1143, 0
    %v1557 = vsel %vm1549, %v1144, 0
    %v1560 = vsel %vm1549, %v1145, 0
    %v1563 = vsel %vm1549, %v1146, 0
    %v1566 = vsel %vm1549, %v1147, 0
    %v1569 = vsel %vm1549, %v1148, 0
    %v1572 = vsel %vm1549, %v1149, 0
    %v1575 = vsel %vm1549, %v1150, 0
    %v1578 = vsel %vm1549, %v1151, 0
    %v1581 = vsel %vm1549, %v1152, 0
    %v1584 = vsel %vm1549, %v1153, 0
    %v1587 = vsel %vm1549, %v1154, 0
    %v1590 = vsel %vm1549, %v1155, 0
    %v1593 = vsel %vm1549, %v1156, 0
    %v1596 = vsel %vm1549, %v1157, 0
    %v1599 = vsel %vm1549, %v1158, 0
    %v1602 = vsel %vm1549, %v1159, 0
    %v1605 = vsel %vm1549, %v1160, 0
    %v1608 = vsel %vm1549, %v1161, 0
    %v1611 = vsel %vm1549, %v1162, 0
    %v1614 = vsel %vm1549, %v1163, 0
    %v1617 = vsel %vm1549, %v1164, 0
    %v1620 = vsel %vm1549, %v1165, 0
    %v1623 = vsel %vm1549, %v1166, 0
    %v1626 = vsel %vm1549, %v1267, 0
    %v1629 = vsel %vm1549, %v1268, 0
    %v1632 = vsel %vm1549, %v1269, 0
    %v1635 = vsel %vm1549, %v1270, 0
    %v1638 = vsel %vm1549, %v1271, 0
    %v1641 = vsel %vm1549, %v1272, 0
    %v1644 = vsel %vm1549, %v1273, 0
    %v1647 = vsel %vm1549, %v1274, 0
    %v1650 = vsel %vm1549, %v1275, 0
    %v1653 = vsel %vm1549, %v1276, 0
    %v1656 = vsel %vm1549, %v1277, 0
    %v1659 = vsel %vm1549, %v1278, 0
    %v1662 = vsel %vm1549, %v1279, 0
    %v1665 = vsel %vm1549, %v1280, 0
    %v1668 = vsel %vm1549, %v1281, 0
    %v1671 = vsel %vm1549, %v1282, 0
    %v1674 = vsel %vm1549, %v1283, 0
    %v1677 = vsel %vm1549, %v1284, 0
    %v1680 = vsel %vm1549, %v1285, 0
    %v1683 = vsel %vm1549, %v1286, 0
    %v1686 = vsel %vm1549, %v1287, 0
    %v1689 = vsel %vm1549, %v1288, 0
    %v1692 = vsel %vm1549, %v1289, 0
    %v1695 = vsel %vm1549, %v1290, 0
    %v1698 = vsel %vm1549, %v1291, 0
    %v1701 = vsel %vm1549, %v1392, 0
    %v1704 = vsel %vm1549, %v1393, 0
    %v1707 = vsel %vm1549, %v1394, 0
    %v1710 = vsel %vm1549, %v1395, 0
    %v1713 = vsel %vm1549, %v1396, 0
    %v1716 = vsel %vm1549, %v1397, 0
    %v1719 = vsel %vm1549, %v1398, 0
    %v1722 = vsel %vm1549, %v1399, 0
    %v1725 = vsel %vm1549, %v1400, 0
    %v1728 = vsel %vm1549, %v1401, 0
    %v1731 = vsel %vm1549, %v1402, 0
    %v1734 = vsel %vm1549, %v1403, 0
    %v1737 = vsel %vm1549, %v1404, 0
    %v1740 = vsel %vm1549, %v1405, 0
    %v1743 = vsel %vm1549, %v1406, 0
    %v1746 = vsel %vm1549, %v1407, 0
    %v1749 = vsel %vm1549, %v1408, 0
    %v1752 = vsel %vm1549, %v1409, 0
    %v1755 = vsel %vm1549, %v1410, 0
    %v1758 = vsel %vm1549, %v1411, 0
    %v1761 = vsel %vm1549, %v1412, 0
    %v1764 = vsel %vm1549, %v1413, 0
    %v1767 = vsel %vm1549, %v1414, 0
    %v1770 = vsel %vm1549, %v1415, 0
    %v1773 = vsel %vm1549, %v1416, 0
    %v1776 = vsel %vm1549, %v1517, 0
    %v1779 = vsel %vm1549, %v1518, 0
    %v1782 = vsel %vm1549, %v1519, 0
    %v1785 = vsel %vm1549, %v1520, 0
    %v1788 = vsel %vm1549, %v1521, 0
    %v1791 = vsel %vm1549, %v1522, 0
    %v1794 = vsel %vm1549, %v1523, 0
    %v1797 = vsel %vm1549, %v1524, 0
    %v1800 = vsel %vm1549, %v1525, 0
    %v1803 = vsel %vm1549, %v1526, 0
    %v1806 = vsel %vm1549, %v1527, 0
    %v1809 = vsel %vm1549, %v1528, 0
    %v1812 = vsel %vm1549, %v1529, 0
    %v1815 = vsel %vm1549, %v1530, 0
    %v1818 = vsel %vm1549, %v1531, 0
    %v1821 = vsel %vm1549, %v1532, 0
    %v1824 = vsel %vm1549, %v1533, 0
    %v1827 = vsel %vm1549, %v1534, 0
    %v1830 = vsel %vm1549, %v1535, 0
    %v1833 = vsel %vm1549, %v1536, 0
    %v1836 = vsel %vm1549, %v1537, 0
    %v1839 = vsel %vm1549, %v1538, 0
    %v1842 = vsel %vm1549, %v1539, 0
    %v1845 = vsel %vm1549, %v1540, 0
    %v1848 = vsel %vm1549, %v1541, 0
    %vm1850 = vcmask 1043456
    %vm1851 = vcmask 1044480
    %v1852 = vsel %vm1850, 4294967295, 65535
    %v1853 = vsel %vm1851, %v1852, 0
    %v1855 = vand.u32 %v1548, %v1853
    %1857 = vmatprep.subr.bf16.mxu0 0
    %1858 = vmatpush1.bf16.msra.mxu0 %v1855
    %1859 = vmatprep.subr.bf16.mxu0 0
    %1860 = vmatpush1.bf16.msra.mxu0 0
    %1861 = vmatprep.subr.bf16.mxu0 0
    %1862 = vmatpush1.bf16.msra.mxu0 0
    %1863 = vmatprep.subr.bf16.mxu0 0
    %1864 = vmatpush1.bf16.msra.mxu0 0
    %1865 = vmatprep.subr.bf16.mxu0 0
    %1866 = vmatpush1.bf16.msra.mxu0 0
    %1867 = vmatprep.subr.bf16.mxu0 0
    %1868 = vmatpush1.bf16.msra.mxu0 0
    %1869 = vmatprep.subr.bf16.mxu0 0
    %1870 = vmatpush1.bf16.msra.mxu0 0
    %1871 = vmatprep.subr.bf16.mxu0 0
    %1872 = vmatpush1.bf16.msra.mxu0 0
    %1873 = vmatprep.subr.bf16.mxu0 0
    %1874 = vmatpush1.bf16.msra.mxu0 0
    %1875 = vmatprep.subr.bf16.mxu0 0
    %1876 = vmatpush1.bf16.msra.mxu0 0
    %1877 = vmatprep.subr.bf16.mxu0 0
    %1878 = vmatpush1.bf16.msra.mxu0 0
    %1879 = vmatprep.subr.bf16.mxu0 0
    %1880 = vmatpush1.bf16.msra.mxu0 0
    %1881 = vmatprep.subr.bf16.mxu0 0
    %1882 = vmatpush1.bf16.msra.mxu0 0
    %1883 = vmatprep.subr.bf16.mxu0 0
    %1884 = vmatpush1.bf16.msra.mxu0 0
    %1885 = vmatprep.subr.bf16.mxu0 0
    %1886 = vmatpush1.bf16.msra.mxu0 0
    %1887 = vmatprep.subr.bf16.mxu0 0
    %1888 = vmatpush1.bf16.msra.mxu0 0
    %1889 = vmatprep.mubr.bf16.mxu0 0
    %1890 = vmatmul.mubr.bf16.gmra.mrb[0].mxu0 %v1551
    %v1891 = vpop.f32.mrb[0].mxu0
    %v1892 = vadd.f32 0.0, %v1891
    %v1893 = vpop.f32.mrb[0].mxu0
    %v1894 = vpop.f32.mrb[0].mxu0
    %v1895 = vadd.f32 0.0, %v1894
    %v1896 = vpop.f32.mrb[0].mxu0
    %1897 = vmatprep.mubr.bf16.mxu0 0
    %1898 = vmatmul.mubr.bf16.gmra.mrb[0].mxu0 %v1554
    %v1899 = vpop.f32.mrb[0].mxu0
    %v1900 = vadd.f32 0.0, %v1899
    %v1901 = vpop.f32.mrb[0].mxu0
    %v1902 = vpop.f32.mrb[0].mxu0
    %v1903 = vadd.f32 0.0, %v1902
    %v1904 = vpop.f32.mrb[0].mxu0
    %1905 = vmatprep.mubr.bf16.mxu0 0
    %1906 = vmatmul.mubr.bf16.gmra.mrb[0].mxu0 %v1557
    %v1907 = vpop.f32.mrb[0].mxu0
    %v1908 = vadd.f32 0.0, %v1907
    %v1909 = vpop.f32.mrb[0].mxu0
    %v1910 = vpop.f32.mrb[0].mxu0
    %v1911 = vadd.f32 0.0, %v1910
    %v1912 = vpop.f32.mrb[0].mxu0
    %1913 = vmatprep.mubr.bf16.mxu0 0
    %1914 = vmatmul.mubr.bf16.gmra.mrb[0].mxu0 %v1560
    %v1915 = vpop.f32.mrb[0].mxu0
    %v1916 = vadd.f32 0.0, %v1915
    %v1917 = vpop.f32.mrb[0].mxu0
    %v1918 = vpop.f32.mrb[0].mxu0
    %v1919 = vadd.f32 0.0, %v1918
    %v1920 = vpop.f32.mrb[0].mxu0
    %1921 = vmatprep.mubr.bf16.mxu0 0
    %1922 = vmatmul.mubr.bf16.gmra.mrb[0].mxu0 %v1563
    %v1923 = vpop.f32.mrb[0].mxu0
    %v1924 = vadd.f32 0.0, %v1923
    %v1925 = vpop.f32.mrb[0].mxu0
    %v1926 = vpop.f32.mrb[0].mxu0
    %v1927 = vadd.f32 0.0, %v1926
    %v1928 = vpop.f32.mrb[0].mxu0
    %1929 = vmatprep.mubr.bf16.mxu0 0
    %1930 = vmatmul.mubr.bf16.gmra.mrb[0].mxu0 %v1566
    %v1931 = vpop.f32.mrb[0].mxu0
    %v1932 = vadd.f32 0.0, %v1931
    %v1933 = vpop.f32.mrb[0].mxu0
    %v1934 = vpop.f32.mrb[0].mxu0
    %v1935 = vadd.f32 0.0, %v1934
    %v1936 = vpop.f32.mrb[0].mxu0
    %1937 = vmatprep.mubr.bf16.mxu0 0
    %1938 = vmatmul.mubr.bf16.gmra.mrb[0].mxu0 %v1569
    %v1939 = vpop.f32.mrb[0].mxu0
    %v1940 = vadd.f32 0.0, %v1939
    %v1941 = vpop.f32.mrb[0].mxu0
    %v1942 = vpop.f32.mrb[0].mxu0
    %v1943 = vadd.f32 0.0, %v1942
    %v1944 = vpop.f32.mrb[0].mxu0
    %1945 = vmatprep.mubr.bf16.mxu0 0
    %1946 = vmatmul.mubr.bf16.gmra.mrb[0].mxu0 %v1572
    %v1947 = vpop.f32.mrb[0].mxu0
    %v1948 = vadd.f32 0.0, %v1947
    %v1949 = vpop.f32.mrb[0].mxu0
    %v1950 = vpop.f32.mrb[0].mxu0
    %v1951 = vadd.f32 0.0, %v1950
    %v1952 = vpop.f32.mrb[0].mxu0
    %1953 = vmatprep.mubr.bf16.mxu0 0
    %1954 = vmatmul.mubr.bf16.gmra.mrb[0].mxu0 %v1575
    %v1955 = vpop.f32.mrb[0].mxu0
    %v1956 = vadd.f32 0.0, %v1955
    %v1957 = vpop.f32.mrb[0].mxu0
    %v1958 = vpop.f32.mrb[0].mxu0
    %v1959 = vadd.f32 0.0, %v1958
    %v1960 = vpop.f32.mrb[0].mxu0
    %1961 = vmatprep.mubr.bf16.mxu0 0
    %1962 = vmatmul.mubr.bf16.gmra.mrb[0].mxu0 %v1578
    %v1963 = vpop.f32.mrb[0].mxu0
    %v1964 = vadd.f32 0.0, %v1963
    %v1965 = vpop.f32.mrb[0].mxu0
    %v1966 = vpop.f32.mrb[0].mxu0
    %v1967 = vadd.f32 0.0, %v1966
    %v1968 = vpop.f32.mrb[0].mxu0
    %1969 = vmatprep.mubr.bf16.mxu0 0
    %1970 = vmatmul.mubr.bf16.gmra.mrb[0].mxu0 %v1581
    %v1971 = vpop.f32.mrb[0].mxu0
    %v1972 = vadd.f32 0.0, %v1971
    %v1973 = vpop.f32.mrb[0].mxu0
    %v1974 = vpop.f32.mrb[0].mxu0
    %v1975 = vadd.f32 0.0, %v1974
    %v1976 = vpop.f32.mrb[0].mxu0
    %1977 = vmatprep.mubr.bf16.mxu0 0
    %1978 = vmatmul.mubr.bf16.gmra.mrb[0].mxu0 %v1584
    %v1979 = vpop.f32.mrb[0].mxu0
    %v1980 = vadd.f32 0.0, %v1979
    %v1981 = vpop.f32.mrb[0].mxu0
    %v1982 = vpop.f32.mrb[0].mxu0
    %v1983 = vadd.f32 0.0, %v1982
    %v1984 = vpop.f32.mrb[0].mxu0
    %1985 = vmatprep.mubr.bf16.mxu0 0
    %1986 = vmatmul.mubr.bf16.gmra.mrb[0].mxu0 %v1587
    %v1987 = vpop.f32.mrb[0].mxu0
    %v1988 = vadd.f32 0.0, %v1987
    %v1989 = vpop.f32.mrb[0].mxu0
    %v1990 = vpop.f32.mrb[0].mxu0
    %v1991 = vadd.f32 0.0, %v1990
    %v1992 = vpop.f32.mrb[0].mxu0
    %1993 = vmatprep.mubr.bf16.mxu0 0
    %1994 = vmatmul.mubr.bf16.gmra.mrb[0].mxu0 %v1590
    %v1995 = vpop.f32.mrb[0].mxu0
    %v1996 = vadd.f32 0.0, %v1995
    %v1997 = vpop.f32.mrb[0].mxu0
    %v1998 = vpop.f32.mrb[0].mxu0
    %v1999 = vadd.f32 0.0, %v1998
    %v2000 = vpop.f32.mrb[0].mxu0
    %2001 = vmatprep.mubr.bf16.mxu0 0
    %2002 = vmatmul.mubr.bf16.gmra.mrb[0].mxu0 %v1593
    %v2003 = vpop.f32.mrb[0].mxu0
    %v2004 = vadd.f32 0.0, %v2003
    %v2005 = vpop.f32.mrb[0].mxu0
    %v2006 = vpop.f32.mrb[0].mxu0
    %v2007 = vadd.f32 0.0, %v2006
    %v2008 = vpop.f32.mrb[0].mxu0
    %2009 = vmatprep.mubr.bf16.mxu0 0
    %2010 = vmatmul.mubr.bf16.gmra.mrb[0].mxu0 %v1596
    %v2011 = vpop.f32.mrb[0].mxu0
    %v2012 = vadd.f32 0.0, %v2011
    %v2013 = vpop.f32.mrb[0].mxu0
    %v2014 = vpop.f32.mrb[0].mxu0
    %v2015 = vadd.f32 0.0, %v2014
    %v2016 = vpop.f32.mrb[0].mxu0
    %2017 = vmatprep.mubr.bf16.mxu0 0
    %2018 = vmatmul.mubr.bf16.gmra.mrb[0].mxu0 %v1599
    %v2019 = vpop.f32.mrb[0].mxu0
    %v2020 = vadd.f32 0.0, %v2019
    %v2021 = vpop.f32.mrb[0].mxu0
    %v2022 = vpop.f32.mrb[0].mxu0
    %v2023 = vadd.f32 0.0, %v2022
    %v2024 = vpop.f32.mrb[0].mxu0
    %2025 = vmatprep.mubr.bf16.mxu0 0
    %2026 = vmatmul.mubr.bf16.gmra.mrb[0].mxu0 %v1602
    %v2027 = vpop.f32.mrb[0].mxu0
    %v2028 = vadd.f32 0.0, %v2027
    %v2029 = vpop.f32.mrb[0].mxu0
    %v2030 = vpop.f32.mrb[0].mxu0
    %v2031 = vadd.f32 0.0, %v2030
    %v2032 = vpop.f32.mrb[0].mxu0
    %2033 = vmatprep.mubr.bf16.mxu0 0
    %2034 = vmatmul.mubr.bf16.gmra.mrb[0].mxu0 %v1605
    %v2035 = vpop.f32.mrb[0].mxu0
    %v2036 = vadd.f32 0.0, %v2035
    %v2037 = vpop.f32.mrb[0].mxu0
    %v2038 = vpop.f32.mrb[0].mxu0
    %v2039 = vadd.f32 0.0, %v2038
    %v2040 = vpop.f32.mrb[0].mxu0
    %2041 = vmatprep.mubr.bf16.mxu0 0
    %2042 = vmatmul.mubr.bf16.gmra.mrb[0].mxu0 %v1608
    %v2043 = vpop.f32.mrb[0].mxu0
    %v2044 = vadd.f32 0.0, %v2043
    %v2045 = vpop.f32.mrb[0].mxu0
    %v2046 = vpop.f32.mrb[0].mxu0
    %v2047 = vadd.f32 0.0, %v2046
    %v2048 = vpop.f32.mrb[0].mxu0
    %2049 = vmatprep.mubr.bf16.mxu0 0
    %2050 = vmatmul.mubr.bf16.gmra.mrb[0].mxu0 %v1611
    %v2051 = vpop.f32.mrb[0].mxu0
    %v2052 = vadd.f32 0.0, %v2051
    %v2053 = vpop.f32.mrb[0].mxu0
    %v2054 = vpop.f32.mrb[0].mxu0
    %v2055 = vadd.f32 0.0, %v2054
    %v2056 = vpop.f32.mrb[0].mxu0
    %2057 = vmatprep.mubr.bf16.mxu0 0
    %2058 = vmatmul.mubr.bf16.gmra.mrb[0].mxu0 %v1614
    %v2059 = vpop.f32.mrb[0].mxu0
    %v2060 = vadd.f32 0.0, %v2059
    %v2061 = vpop.f32.mrb[0].mxu0
    %v2062 = vpop.f32.mrb[0].mxu0
    %v2063 = vadd.f32 0.0, %v2062
    %v2064 = vpop.f32.mrb[0].mxu0
    %2065 = vmatprep.mubr.bf16.mxu0 0
    %2066 = vmatmul.mubr.bf16.gmra.mrb[0].mxu0 %v1617
    %v2067 = vpop.f32.mrb[0].mxu0
    %v2068 = vadd.f32 0.0, %v2067
    %v2069 = vpop.f32.mrb[0].mxu0
    %v2070 = vpop.f32.mrb[0].mxu0
    %v2071 = vadd.f32 0.0, %v2070
    %v2072 = vpop.f32.mrb[0].mxu0
    %2073 = vmatprep.mubr.bf16.mxu0 0
    %2074 = vmatmul.mubr.bf16.gmra.mrb[0].mxu0 %v1620
    %v2075 = vpop.f32.mrb[0].mxu0
    %v2076 = vadd.f32 0.0, %v2075
    %v2077 = vpop.f32.mrb[0].mxu0
    %v2078 = vpop.f32.mrb[0].mxu0
    %v2079 = vadd.f32 0.0, %v2078
    %v2080 = vpop.f32.mrb[0].mxu0
    %2081 = vmatprep.mubr.bf16.mxu0 0
    %2082 = vmatmul.mubr.bf16.gmra.mrb[0].mxu0 %v1623
    %v2083 = vpop.f32.mrb[0].mxu0
    %v2084 = vadd.f32 0.0, %v2083
    %v2085 = vpop.f32.mrb[0].mxu0
    %v2086 = vpop.f32.mrb[0].mxu0
    %v2087 = vadd.f32 0.0, %v2086
    %v2088 = vpop.f32.mrb[0].mxu0
    %2089 = vmatprep.mubr.bf16.mxu0 0
    %2090 = vmatmul.mubr.bf16.gmra.mrb[0].mxu0 %v1626
    %v2091 = vpop.f32.mrb[0].mxu0
    %v2092 = vadd.f32 0.0, %v2091
    %v2093 = vpop.f32.mrb[0].mxu0
    %v2094 = vpop.f32.mrb[0].mxu0
    %v2095 = vadd.f32 0.0, %v2094
    %v2096 = vpop.f32.mrb[0].mxu0
    %2097 = vmatprep.mubr.bf16.mxu0 0
    %2098 = vmatmul.mubr.bf16.gmra.mrb[0].mxu0 %v1629
    %v2099 = vpop.f32.mrb[0].mxu0
    %v2100 = vadd.f32 0.0, %v2099
    %v2101 = vpop.f32.mrb[0].mxu0
    %v2102 = vpop.f32.mrb[0].mxu0
    %v2103 = vadd.f32 0.0, %v2102
    %v2104 = vpop.f32.mrb[0].mxu0
    %2105 = vmatprep.mubr.bf16.mxu0 0
    %2106 = vmatmul.mubr.bf16.gmra.mrb[0].mxu0 %v1632
    %v2107 = vpop.f32.mrb[0].mxu0
    %v2108 = vadd.f32 0.0, %v2107
    %v2109 = vpop.f32.mrb[0].mxu0
    %v2110 = vpop.f32.mrb[0].mxu0
    %v2111 = vadd.f32 0.0, %v2110
    %v2112 = vpop.f32.mrb[0].mxu0
    %2113 = vmatprep.mubr.bf16.mxu0 0
    %2114 = vmatmul.mubr.bf16.gmra.mrb[0].mxu0 %v1635
    %v2115 = vpop.f32.mrb[0].mxu0
    %v2116 = vadd.f32 0.0, %v2115
    %v2117 = vpop.f32.mrb[0].mxu0
    %v2118 = vpop.f32.mrb[0].mxu0
    %v2119 = vadd.f32 0.0, %v2118
    %v2120 = vpop.f32.mrb[0].mxu0
    %2121 = vmatprep.mubr.bf16.mxu0 0
    %2122 = vmatmul.mubr.bf16.gmra.mrb[0].mxu0 %v1638
    %v2123 = vpop.f32.mrb[0].mxu0
    %v2124 = vadd.f32 0.0, %v2123
    %v2125 = vpop.f32.mrb[0].mxu0
    %v2126 = vpop.f32.mrb[0].mxu0
    %v2127 = vadd.f32 0.0, %v2126
    %v2128 = vpop.f32.mrb[0].mxu0
    %2129 = vmatprep.mubr.bf16.mxu0 0
    %2130 = vmatmul.mubr.bf16.gmra.mrb[0].mxu0 %v1641
    %v2131 = vpop.f32.mrb[0].mxu0
    %v2132 = vadd.f32 0.0, %v2131
    %v2133 = vpop.f32.mrb[0].mxu0
    %v2134 = vpop.f32.mrb[0].mxu0
    %v2135 = vadd.f32 0.0, %v2134
    %v2136 = vpop.f32.mrb[0].mxu0
    %2137 = vmatprep.mubr.bf16.mxu0 0
    %2138 = vmatmul.mubr.bf16.gmra.mrb[0].mxu0 %v1644
    %v2139 = vpop.f32.mrb[0].mxu0
    %v2140 = vadd.f32 0.0, %v2139
    %v2141 = vpop.f32.mrb[0].mxu0
    %v2142 = vpop.f32.mrb[0].mxu0
    %v2143 = vadd.f32 0.0, %v2142
    %v2144 = vpop.f32.mrb[0].mxu0
    %2145 = vmatprep.mubr.bf16.mxu0 0
    %2146 = vmatmul.mubr.bf16.gmra.mrb[0].mxu0 %v1647
    %v2147 = vpop.f32.mrb[0].mxu0
    %v2148 = vadd.f32 0.0, %v2147
    %v2149 = vpop.f32.mrb[0].mxu0
    %v2150 = vpop.f32.mrb[0].mxu0
    %v2151 = vadd.f32 0.0, %v2150
    %v2152 = vpop.f32.mrb[0].mxu0
    %2153 = vmatprep.mubr.bf16.mxu0 0
    %2154 = vmatmul.mubr.bf16.gmra.mrb[0].mxu0 %v1650
    %v2155 = vpop.f32.mrb[0].mxu0
    %v2156 = vadd.f32 0.0, %v2155
    %v2157 = vpop.f32.mrb[0].mxu0
    %v2158 = vpop.f32.mrb[0].mxu0
    %v2159 = vadd.f32 0.0, %v2158
    %v2160 = vpop.f32.mrb[0].mxu0
    %2161 = vmatprep.mubr.bf16.mxu0 0
    %2162 = vmatmul.mubr.bf16.gmra.mrb[0].mxu0 %v1653
    %v2163 = vpop.f32.mrb[0].mxu0
    %v2164 = vadd.f32 0.0, %v2163
    %v2165 = vpop.f32.mrb[0].mxu0
    %v2166 = vpop.f32.mrb[0].mxu0
    %v2167 = vadd.f32 0.0, %v2166
    %v2168 = vpop.f32.mrb[0].mxu0
    %2169 = vmatprep.mubr.bf16.mxu0 0
    %2170 = vmatmul.mubr.bf16.gmra.mrb[0].mxu0 %v1656
    %v2171 = vpop.f32.mrb[0].mxu0
    %v2172 = vadd.f32 0.0, %v2171
    %v2173 = vpop.f32.mrb[0].mxu0
    %v2174 = vpop.f32.mrb[0].mxu0
    %v2175 = vadd.f32 0.0, %v2174
    %v2176 = vpop.f32.mrb[0].mxu0
    %2177 = vmatprep.mubr.bf16.mxu0 0
    %2178 = vmatmul.mubr.bf16.gmra.mrb[0].mxu0 %v1659
    %v2179 = vpop.f32.mrb[0].mxu0
    %v2180 = vadd.f32 0.0, %v2179
    %v2181 = vpop.f32.mrb[0].mxu0
    %v2182 = vpop.f32.mrb[0].mxu0
    %v2183 = vadd.f32 0.0, %v2182
    %v2184 = vpop.f32.mrb[0].mxu0
    %2185 = vmatprep.mubr.bf16.mxu0 0
    %2186 = vmatmul.mubr.bf16.gmra.mrb[0].mxu0 %v1662
    %v2187 = vpop.f32.mrb[0].mxu0
    %v2188 = vadd.f32 0.0, %v2187
    %v2189 = vpop.f32.mrb[0].mxu0
    %v2190 = vpop.f32.mrb[0].mxu0
    %v2191 = vadd.f32 0.0, %v2190
    %v2192 = vpop.f32.mrb[0].mxu0
    %2193 = vmatprep.mubr.bf16.mxu0 0
    %2194 = vmatmul.mubr.bf16.gmra.mrb[0].mxu0 %v1665
    %v2195 = vpop.f32.mrb[0].mxu0
    %v2196 = vadd.f32 0.0, %v2195
    %v2197 = vpop.f32.mrb[0].mxu0
    %v2198 = vpop.f32.mrb[0].mxu0
    %v2199 = vadd.f32 0.0, %v2198
    %v2200 = vpop.f32.mrb[0].mxu0
    %2201 = vmatprep.mubr.bf16.mxu0 0
    %2202 = vmatmul.mubr.bf16.gmra.mrb[0].mxu0 %v1668
    %v2203 = vpop.f32.mrb[0].mxu0
    %v2204 = vadd.f32 0.0, %v2203
    %v2205 = vpop.f32.mrb[0].mxu0
    %v2206 = vpop.f32.mrb[0].mxu0
    %v2207 = vadd.f32 0.0, %v2206
    %v2208 = vpop.f32.mrb[0].mxu0
    %2209 = vmatprep.mubr.bf16.mxu0 0
    %2210 = vmatmul.mubr.bf16.gmra.mrb[0].mxu0 %v1671
    %v2211 = vpop.f32.mrb[0].mxu0
    %v2212 = vadd.f32 0.0, %v2211
    %v2213 = vpop.f32.mrb[0].mxu0
    %v2214 = vpop.f32.mrb[0].mxu0
    %v2215 = vadd.f32 0.0, %v2214
    %v2216 = vpop.f32.mrb[0].mxu0
    %2217 = vmatprep.mubr.bf16.mxu0 0
    %2218 = vmatmul.mubr.bf16.gmra.mrb[0].mxu0 %v1674
    %v2219 = vpop.f32.mrb[0].mxu0
    %v2220 = vadd.f32 0.0, %v2219
    %v2221 = vpop.f32.mrb[0].mxu0
    %v2222 = vpop.f32.mrb[0].mxu0
    %v2223 = vadd.f32 0.0, %v2222
    %v2224 = vpop.f32.mrb[0].mxu0
    %2225 = vmatprep.mubr.bf16.mxu0 0
    %2226 = vmatmul.mubr.bf16.gmra.mrb[0].mxu0 %v1677
    %v2227 = vpop.f32.mrb[0].mxu0
    %v2228 = vadd.f32 0.0, %v2227
    %v2229 = vpop.f32.mrb[0].mxu0
    %v2230 = vpop.f32.mrb[0].mxu0
    %v2231 = vadd.f32 0.0, %v2230
    %v2232 = vpop.f32.mrb[0].mxu0
    %2233 = vmatprep.mubr.bf16.mxu0 0
    %2234 = vmatmul.mubr.bf16.gmra.mrb[0].mxu0 %v1680
    %v2235 = vpop.f32.mrb[0].mxu0
    %v2236 = vadd.f32 0.0, %v2235
    %v2237 = vpop.f32.mrb[0].mxu0
    %v2238 = vpop.f32.mrb[0].mxu0
    %v2239 = vadd.f32 0.0, %v2238
    %v2240 = vpop.f32.mrb[0].mxu0
    %2241 = vmatprep.mubr.bf16.mxu0 0
    %2242 = vmatmul.mubr.bf16.gmra.mrb[0].mxu0 %v1683
    %v2243 = vpop.f32.mrb[0].mxu0
    %v2244 = vadd.f32 0.0, %v2243
    %v2245 = vpop.f32.mrb[0].mxu0
    %v2246 = vpop.f32.mrb[0].mxu0
    %v2247 = vadd.f32 0.0, %v2246
    %v2248 = vpop.f32.mrb[0].mxu0
    %2249 = vmatprep.mubr.bf16.mxu0 0
    %2250 = vmatmul.mubr.bf16.gmra.mrb[0].mxu0 %v1686
    %v2251 = vpop.f32.mrb[0].mxu0
    %v2252 = vadd.f32 0.0, %v2251
    %v2253 = vpop.f32.mrb[0].mxu0
    %v2254 = vpop.f32.mrb[0].mxu0
    %v2255 = vadd.f32 0.0, %v2254
    %v2256 = vpop.f32.mrb[0].mxu0
    %2257 = vmatprep.mubr.bf16.mxu0 0
    %2258 = vmatmul.mubr.bf16.gmra.mrb[0].mxu0 %v1689
    %v2259 = vpop.f32.mrb[0].mxu0
    %v2260 = vadd.f32 0.0, %v2259
    %v2261 = vpop.f32.mrb[0].mxu0
    %v2262 = vpop.f32.mrb[0].mxu0
    %v2263 = vadd.f32 0.0, %v2262
    %v2264 = vpop.f32.mrb[0].mxu0
    %2265 = vmatprep.mubr.bf16.mxu0 0
    %2266 = vmatmul.mubr.bf16.gmra.mrb[0].mxu0 %v1692
    %v2267 = vpop.f32.mrb[0].mxu0
    %v2268 = vadd.f32 0.0, %v2267
    %v2269 = vpop.f32.mrb[0].mxu0
    %v2270 = vpop.f32.mrb[0].mxu0
    %v2271 = vadd.f32 0.0, %v2270
    %v2272 = vpop.f32.mrb[0].mxu0
    %2273 = vmatprep.mubr.bf16.mxu0 0
    %2274 = vmatmul.mubr.bf16.gmra.mrb[0].mxu0 %v1695
    %v2275 = vpop.f32.mrb[0].mxu0
    %v2276 = vadd.f32 0.0, %v2275
    %v2277 = vpop.f32.mrb[0].mxu0
    %v2278 = vpop.f32.mrb[0].mxu0
    %v2279 = vadd.f32 0.0, %v2278
    %v2280 = vpop.f32.mrb[0].mxu0
    %2281 = vmatprep.mubr.bf16.mxu0 0
    %2282 = vmatmul.mubr.bf16.gmra.mrb[0].mxu0 %v1698
    %v2283 = vpop.f32.mrb[0].mxu0
    %v2284 = vadd.f32 0.0, %v2283
    %v2285 = vpop.f32.mrb[0].mxu0
    %v2286 = vpop.f32.mrb[0].mxu0
    %v2287 = vadd.f32 0.0, %v2286
    %v2288 = vpop.f32.mrb[0].mxu0
    %2289 = vmatprep.mubr.bf16.mxu0 0
    %2290 = vmatmul.mubr.bf16.gmra.mrb[0].mxu0 %v1701
    %v2291 = vpop.f32.mrb[0].mxu0
    %v2292 = vadd.f32 0.0, %v2291
    %v2293 = vpop.f32.mrb[0].mxu0
    %v2294 = vpop.f32.mrb[0].mxu0
    %v2295 = vadd.f32 0.0, %v2294
    %v2296 = vpop.f32.mrb[0].mxu0
    %2297 = vmatprep.mubr.bf16.mxu0 0
    %2298 = vmatmul.mubr.bf16.gmra.mrb[0].mxu0 %v1704
    %v2299 = vpop.f32.mrb[0].mxu0
    %v2300 = vadd.f32 0.0, %v2299
    %v2301 = vpop.f32.mrb[0].mxu0
    %v2302 = vpop.f32.mrb[0].mxu0
    %v2303 = vadd.f32 0.0, %v2302
    %v2304 = vpop.f32.mrb[0].mxu0
    %2305 = vmatprep.mubr.bf16.mxu0 0
    %2306 = vmatmul.mubr.bf16.gmra.mrb[0].mxu0 %v1707
    %v2307 = vpop.f32.mrb[0].mxu0
    %v2308 = vadd.f32 0.0, %v2307
    %v2309 = vpop.f32.mrb[0].mxu0
    %v2310 = vpop.f32.mrb[0].mxu0
    %v2311 = vadd.f32 0.0, %v2310
    %v2312 = vpop.f32.mrb[0].mxu0
    %2313 = vmatprep.mubr.bf16.mxu0 0
    %2314 = vmatmul.mubr.bf16.gmra.mrb[0].mxu0 %v1710
    %v2315 = vpop.f32.mrb[0].mxu0
    %v2316 = vadd.f32 0.0, %v2315
    %v2317 = vpop.f32.mrb[0].mxu0
    %v2318 = vpop.f32.mrb[0].mxu0
    %v2319 = vadd.f32 0.0, %v2318
    %v2320 = vpop.f32.mrb[0].mxu0
    %2321 = vmatprep.mubr.bf16.mxu0 0
    %2322 = vmatmul.mubr.bf16.gmra.mrb[0].mxu0 %v1713
    %v2323 = vpop.f32.mrb[0].mxu0
    %v2324 = vadd.f32 0.0, %v2323
    %v2325 = vpop.f32.mrb[0].mxu0
    %v2326 = vpop.f32.mrb[0].mxu0
    %v2327 = vadd.f32 0.0, %v2326
    %v2328 = vpop.f32.mrb[0].mxu0
    %2329 = vmatprep.mubr.bf16.mxu0 0
    %2330 = vmatmul.mubr.bf16.gmra.mrb[0].mxu0 %v1716
    %v2331 = vpop.f32.mrb[0].mxu0
    %v2332 = vadd.f32 0.0, %v2331
    %v2333 = vpop.f32.mrb[0].mxu0
    %v2334 = vpop.f32.mrb[0].mxu0
    %v2335 = vadd.f32 0.0, %v2334
    %v2336 = vpop.f32.mrb[0].mxu0
    %2337 = vmatprep.mubr.bf16.mxu0 0
    %2338 = vmatmul.mubr.bf16.gmra.mrb[0].mxu0 %v1719
    %v2339 = vpop.f32.mrb[0].mxu0
    %v2340 = vadd.f32 0.0, %v2339
    %v2341 = vpop.f32.mrb[0].mxu0
    %v2342 = vpop.f32.mrb[0].mxu0
    %v2343 = vadd.f32 0.0, %v2342
    %v2344 = vpop.f32.mrb[0].mxu0
    %2345 = vmatprep.mubr.bf16.mxu0 0
    %2346 = vmatmul.mubr.bf16.gmra.mrb[0].mxu0 %v1722
    %v2347 = vpop.f32.mrb[0].mxu0
    %v2348 = vadd.f32 0.0, %v2347
    %v2349 = vpop.f32.mrb[0].mxu0
    %v2350 = vpop.f32.mrb[0].mxu0
    %v2351 = vadd.f32 0.0, %v2350
    %v2352 = vpop.f32.mrb[0].mxu0
    %2353 = vmatprep.mubr.bf16.mxu0 0
    %2354 = vmatmul.mubr.bf16.gmra.mrb[0].mxu0 %v1725
    %v2355 = vpop.f32.mrb[0].mxu0
    %v2356 = vadd.f32 0.0, %v2355
    %v2357 = vpop.f32.mrb[0].mxu0
    %v2358 = vpop.f32.mrb[0].mxu0
    %v2359 = vadd.f32 0.0, %v2358
    %v2360 = vpop.f32.mrb[0].mxu0
    %2361 = vmatprep.mubr.bf16.mxu0 0
    %2362 = vmatmul.mubr.bf16.gmra.mrb[0].mxu0 %v1728
    %v2363 = vpop.f32.mrb[0].mxu0
    %v2364 = vadd.f32 0.0, %v2363
    %v2365 = vpop.f32.mrb[0].mxu0
    %v2366 = vpop.f32.mrb[0].mxu0
    %v2367 = vadd.f32 0.0, %v2366
    %v2368 = vpop.f32.mrb[0].mxu0
    %2369 = vmatprep.mubr.bf16.mxu0 0
    %2370 = vmatmul.mubr.bf16.gmra.mrb[0].mxu0 %v1731
    %v2371 = vpop.f32.mrb[0].mxu0
    %v2372 = vadd.f32 0.0, %v2371
    %v2373 = vpop.f32.mrb[0].mxu0
    %v2374 = vpop.f32.mrb[0].mxu0
    %v2375 = vadd.f32 0.0, %v2374
    %v2376 = vpop.f32.mrb[0].mxu0
    %2377 = vmatprep.mubr.bf16.mxu0 0
    %2378 = vmatmul.mubr.bf16.gmra.mrb[0].mxu0 %v1734
    %v2379 = vpop.f32.mrb[0].mxu0
    %v2380 = vadd.f32 0.0, %v2379
    %v2381 = vpop.f32.mrb[0].mxu0
    %v2382 = vpop.f32.mrb[0].mxu0
    %v2383 = vadd.f32 0.0, %v2382
    %v2384 = vpop.f32.mrb[0].mxu0
    %2385 = vmatprep.mubr.bf16.mxu0 0
    %2386 = vmatmul.mubr.bf16.gmra.mrb[0].mxu0 %v1737
    %v2387 = vpop.f32.mrb[0].mxu0
    %v2388 = vadd.f32 0.0, %v2387
    %v2389 = vpop.f32.mrb[0].mxu0
    %v2390 = vpop.f32.mrb[0].mxu0
    %v2391 = vadd.f32 0.0, %v2390
    %v2392 = vpop.f32.mrb[0].mxu0
    %2393 = vmatprep.mubr.bf16.mxu0 0
    %2394 = vmatmul.mubr.bf16.gmra.mrb[0].mxu0 %v1740
    %v2395 = vpop.f32.mrb[0].mxu0
    %v2396 = vadd.f32 0.0, %v2395
    %v2397 = vpop.f32.mrb[0].mxu0
    %v2398 = vpop.f32.mrb[0].mxu0
    %v2399 = vadd.f32 0.0, %v2398
    %v2400 = vpop.f32.mrb[0].mxu0
    %2401 = vmatprep.mubr.bf16.mxu0 0
    %2402 = vmatmul.mubr.bf16.gmra.mrb[0].mxu0 %v1743
    %v2403 = vpop.f32.mrb[0].mxu0
    %v2404 = vadd.f32 0.0, %v2403
    %v2405 = vpop.f32.mrb[0].mxu0
    %v2406 = vpop.f32.mrb[0].mxu0
    %v2407 = vadd.f32 0.0, %v2406
    %v2408 = vpop.f32.mrb[0].mxu0
    %2409 = vmatprep.mubr.bf16.mxu0 0
    %2410 = vmatmul.mubr.bf16.gmra.mrb[0].mxu0 %v1746
    %v2411 = vpop.f32.mrb[0].mxu0
    %v2412 = vadd.f32 0.0, %v2411
    %v2413 = vpop.f32.mrb[0].mxu0
    %v2414 = vpop.f32.mrb[0].mxu0
    %v2415 = vadd.f32 0.0, %v2414
    %v2416 = vpop.f32.mrb[0].mxu0
    %2417 = vmatprep.mubr.bf16.mxu0 0
    %2418 = vmatmul.mubr.bf16.gmra.mrb[0].mxu0 %v1749
    %v2419 = vpop.f32.mrb[0].mxu0
    %v2420 = vadd.f32 0.0, %v2419
    %v2421 = vpop.f32.mrb[0].mxu0
    %v2422 = vpop.f32.mrb[0].mxu0
    %v2423 = vadd.f32 0.0, %v2422
    %v2424 = vpop.f32.mrb[0].mxu0
    %2425 = vmatprep.mubr.bf16.mxu0 0
    %2426 = vmatmul.mubr.bf16.gmra.mrb[0].mxu0 %v1752
    %v2427 = vpop.f32.mrb[0].mxu0
    %v2428 = vadd.f32 0.0, %v2427
    %v2429 = vpop.f32.mrb[0].mxu0
    %v2430 = vpop.f32.mrb[0].mxu0
    %v2431 = vadd.f32 0.0, %v2430
    %v2432 = vpop.f32.mrb[0].mxu0
    %2433 = vmatprep.mubr.bf16.mxu0 0
    %2434 = vmatmul.mubr.bf16.gmra.mrb[0].mxu0 %v1755
    %v2435 = vpop.f32.mrb[0].mxu0
    %v2436 = vadd.f32 0.0, %v2435
    %v2437 = vpop.f32.mrb[0].mxu0
    %v2438 = vpop.f32.mrb[0].mxu0
    %v2439 = vadd.f32 0.0, %v2438
    %v2440 = vpop.f32.mrb[0].mxu0
    %2441 = vmatprep.mubr.bf16.mxu0 0
    %2442 = vmatmul.mubr.bf16.gmra.mrb[0].mxu0 %v1758
    %v2443 = vpop.f32.mrb[0].mxu0
    %v2444 = vadd.f32 0.0, %v2443
    %v2445 = vpop.f32.mrb[0].mxu0
    %v2446 = vpop.f32.mrb[0].mxu0
    %v2447 = vadd.f32 0.0, %v2446
    %v2448 = vpop.f32.mrb[0].mxu0
    %2449 = vmatprep.mubr.bf16.mxu0 0
    %2450 = vmatmul.mubr.bf16.gmra.mrb[0].mxu0 %v1761
    %v2451 = vpop.f32.mrb[0].mxu0
    %v2452 = vadd.f32 0.0, %v2451
    %v2453 = vpop.f32.mrb[0].mxu0
    %v2454 = vpop.f32.mrb[0].mxu0
    %v2455 = vadd.f32 0.0, %v2454
    %v2456 = vpop.f32.mrb[0].mxu0
    %2457 = vmatprep.mubr.bf16.mxu0 0
    %2458 = vmatmul.mubr.bf16.gmra.mrb[0].mxu0 %v1764
    %v2459 = vpop.f32.mrb[0].mxu0
    %v2460 = vadd.f32 0.0, %v2459
    %v2461 = vpop.f32.mrb[0].mxu0
    %v2462 = vpop.f32.mrb[0].mxu0
    %v2463 = vadd.f32 0.0, %v2462
    %v2464 = vpop.f32.mrb[0].mxu0
    %2465 = vmatprep.mubr.bf16.mxu0 0
    %2466 = vmatmul.mubr.bf16.gmra.mrb[0].mxu0 %v1767
    %v2467 = vpop.f32.mrb[0].mxu0
    %v2468 = vadd.f32 0.0, %v2467
    %v2469 = vpop.f32.mrb[0].mxu0
    %v2470 = vpop.f32.mrb[0].mxu0
    %v2471 = vadd.f32 0.0, %v2470
    %v2472 = vpop.f32.mrb[0].mxu0
    %2473 = vmatprep.mubr.bf16.mxu0 0
    %2474 = vmatmul.mubr.bf16.gmra.mrb[0].mxu0 %v1770
    %v2475 = vpop.f32.mrb[0].mxu0
    %v2476 = vadd.f32 0.0, %v2475
    %v2477 = vpop.f32.mrb[0].mxu0
    %v2478 = vpop.f32.mrb[0].mxu0
    %v2479 = vadd.f32 0.0, %v2478
    %v2480 = vpop.f32.mrb[0].mxu0
    %2481 = vmatprep.mubr.bf16.mxu0 0
    %2482 = vmatmul.mubr.bf16.gmra.mrb[0].mxu0 %v1773
    %v2483 = vpop.f32.mrb[0].mxu0
    %v2484 = vadd.f32 0.0, %v2483
    %v2485 = vpop.f32.mrb[0].mxu0
    %v2486 = vpop.f32.mrb[0].mxu0
    %v2487 = vadd.f32 0.0, %v2486
    %v2488 = vpop.f32.mrb[0].mxu0
    %2489 = vmatprep.mubr.bf16.mxu0 0
    %2490 = vmatmul.mubr.bf16.gmra.mrb[0].mxu0 %v1776
    %v2491 = vpop.f32.mrb[0].mxu0
    %v2492 = vadd.f32 0.0, %v2491
    %v2493 = vpop.f32.mrb[0].mxu0
    %v2494 = vpop.f32.mrb[0].mxu0
    %v2495 = vadd.f32 0.0, %v2494
    %v2496 = vpop.f32.mrb[0].mxu0
    %2497 = vmatprep.mubr.bf16.mxu0 0
    %2498 = vmatmul.mubr.bf16.gmra.mrb[0].mxu0 %v1779
    %v2499 = vpop.f32.mrb[0].mxu0
    %v2500 = vadd.f32 0.0, %v2499
    %v2501 = vpop.f32.mrb[0].mxu0
    %v2502 = vpop.f32.mrb[0].mxu0
    %v2503 = vadd.f32 0.0, %v2502
    %v2504 = vpop.f32.mrb[0].mxu0
    %2505 = vmatprep.mubr.bf16.mxu0 0
    %2506 = vmatmul.mubr.bf16.gmra.mrb[0].mxu0 %v1782
    %v2507 = vpop.f32.mrb[0].mxu0
    %v2508 = vadd.f32 0.0, %v2507
    %v2509 = vpop.f32.mrb[0].mxu0
    %v2510 = vpop.f32.mrb[0].mxu0
    %v2511 = vadd.f32 0.0, %v2510
    %v2512 = vpop.f32.mrb[0].mxu0
    %2513 = vmatprep.mubr.bf16.mxu0 0
    %2514 = vmatmul.mubr.bf16.gmra.mrb[0].mxu0 %v1785
    %v2515 = vpop.f32.mrb[0].mxu0
    %v2516 = vadd.f32 0.0, %v2515
    %v2517 = vpop.f32.mrb[0].mxu0
    %v2518 = vpop.f32.mrb[0].mxu0
    %v2519 = vadd.f32 0.0, %v2518
    %v2520 = vpop.f32.mrb[0].mxu0
    %2521 = vmatprep.mubr.bf16.mxu0 0
    %2522 = vmatmul.mubr.bf16.gmra.mrb[0].mxu0 %v1788
    %v2523 = vpop.f32.mrb[0].mxu0
    %v2524 = vadd.f32 0.0, %v2523
    %v2525 = vpop.f32.mrb[0].mxu0
    %v2526 = vpop.f32.mrb[0].mxu0
    %v2527 = vadd.f32 0.0, %v2526
    %v2528 = vpop.f32.mrb[0].mxu0
    %2529 = vmatprep.mubr.bf16.mxu0 0
    %2530 = vmatmul.mubr.bf16.gmra.mrb[0].mxu0 %v1791
    %v2531 = vpop.f32.mrb[0].mxu0
    %v2532 = vadd.f32 0.0, %v2531
    %v2533 = vpop.f32.mrb[0].mxu0
    %v2534 = vpop.f32.mrb[0].mxu0
    %v2535 = vadd.f32 0.0, %v2534
    %v2536 = vpop.f32.mrb[0].mxu0
    %2537 = vmatprep.mubr.bf16.mxu0 0
    %2538 = vmatmul.mubr.bf16.gmra.mrb[0].mxu0 %v1794
    %v2539 = vpop.f32.mrb[0].mxu0
    %v2540 = vadd.f32 0.0, %v2539
    %v2541 = vpop.f32.mrb[0].mxu0
    %v2542 = vpop.f32.mrb[0].mxu0
    %v2543 = vadd.f32 0.0, %v2542
    %v2544 = vpop.f32.mrb[0].mxu0
    %2545 = vmatprep.mubr.bf16.mxu0 0
    %2546 = vmatmul.mubr.bf16.gmra.mrb[0].mxu0 %v1797
    %v2547 = vpop.f32.mrb[0].mxu0
    %v2548 = vadd.f32 0.0, %v2547
    %v2549 = vpop.f32.mrb[0].mxu0
    %v2550 = vpop.f32.mrb[0].mxu0
    %v2551 = vadd.f32 0.0, %v2550
    %v2552 = vpop.f32.mrb[0].mxu0
    %2553 = vmatprep.mubr.bf16.mxu0 0
    %2554 = vmatmul.mubr.bf16.gmra.mrb[0].mxu0 %v1800
    %v2555 = vpop.f32.mrb[0].mxu0
    %v2556 = vadd.f32 0.0, %v2555
    %v2557 = vpop.f32.mrb[0].mxu0
    %v2558 = vpop.f32.mrb[0].mxu0
    %v2559 = vadd.f32 0.0, %v2558
    %v2560 = vpop.f32.mrb[0].mxu0
    %2561 = vmatprep.mubr.bf16.mxu0 0
    %2562 = vmatmul.mubr.bf16.gmra.mrb[0].mxu0 %v1803
    %v2563 = vpop.f32.mrb[0].mxu0
    %v2564 = vadd.f32 0.0, %v2563
    %v2565 = vpop.f32.mrb[0].mxu0
    %v2566 = vpop.f32.mrb[0].mxu0
    %v2567 = vadd.f32 0.0, %v2566
    %v2568 = vpop.f32.mrb[0].mxu0
    %2569 = vmatprep.mubr.bf16.mxu0 0
    %2570 = vmatmul.mubr.bf16.gmra.mrb[0].mxu0 %v1806
    %v2571 = vpop.f32.mrb[0].mxu0
    %v2572 = vadd.f32 0.0, %v2571
    %v2573 = vpop.f32.mrb[0].mxu0
    %v2574 = vpop.f32.mrb[0].mxu0
    %v2575 = vadd.f32 0.0, %v2574
    %v2576 = vpop.f32.mrb[0].mxu0
    %2577 = vmatprep.mubr.bf16.mxu0 0
    %2578 = vmatmul.mubr.bf16.gmra.mrb[0].mxu0 %v1809
    %v2579 = vpop.f32.mrb[0].mxu0
    %v2580 = vadd.f32 0.0, %v2579
    %v2581 = vpop.f32.mrb[0].mxu0
    %v2582 = vpop.f32.mrb[0].mxu0
    %v2583 = vadd.f32 0.0, %v2582
    %v2584 = vpop.f32.mrb[0].mxu0
    %2585 = vmatprep.mubr.bf16.mxu0 0
    %2586 = vmatmul.mubr.bf16.gmra.mrb[0].mxu0 %v1812
    %v2587 = vpop.f32.mrb[0].mxu0
    %v2588 = vadd.f32 0.0, %v2587
    %v2589 = vpop.f32.mrb[0].mxu0
    %v2590 = vpop.f32.mrb[0].mxu0
    %v2591 = vadd.f32 0.0, %v2590
    %v2592 = vpop.f32.mrb[0].mxu0
    %2593 = vmatprep.mubr.bf16.mxu0 0
    %2594 = vmatmul.mubr.bf16.gmra.mrb[0].mxu0 %v1815
    %v2595 = vpop.f32.mrb[0].mxu0
    %v2596 = vadd.f32 0.0, %v2595
    %v2597 = vpop.f32.mrb[0].mxu0
    %v2598 = vpop.f32.mrb[0].mxu0
    %v2599 = vadd.f32 0.0, %v2598
    %v2600 = vpop.f32.mrb[0].mxu0
    %2601 = vmatprep.mubr.bf16.mxu0 0
    %2602 = vmatmul.mubr.bf16.gmra.mrb[0].mxu0 %v1818
    %v2603 = vpop.f32.mrb[0].mxu0
    %v2604 = vadd.f32 0.0, %v2603
    %v2605 = vpop.f32.mrb[0].mxu0
    %v2606 = vpop.f32.mrb[0].mxu0
    %v2607 = vadd.f32 0.0, %v2606
    %v2608 = vpop.f32.mrb[0].mxu0
    %2609 = vmatprep.mubr.bf16.mxu0 0
    %2610 = vmatmul.mubr.bf16.gmra.mrb[0].mxu0 %v1821
    %v2611 = vpop.f32.mrb[0].mxu0
    %v2612 = vadd.f32 0.0, %v2611
    %v2613 = vpop.f32.mrb[0].mxu0
    %v2614 = vpop.f32.mrb[0].mxu0
    %v2615 = vadd.f32 0.0, %v2614
    %v2616 = vpop.f32.mrb[0].mxu0
    %2617 = vmatprep.mubr.bf16.mxu0 0
    %2618 = vmatmul.mubr.bf16.gmra.mrb[0].mxu0 %v1824
    %v2619 = vpop.f32.mrb[0].mxu0
    %v2620 = vadd.f32 0.0, %v2619
    %v2621 = vpop.f32.mrb[0].mxu0
    %v2622 = vpop.f32.mrb[0].mxu0
    %v2623 = vadd.f32 0.0, %v2622
    %v2624 = vpop.f32.mrb[0].mxu0
    %2625 = vmatprep.mubr.bf16.mxu0 0
    %2626 = vmatmul.mubr.bf16.gmra.mrb[0].mxu0 %v1827
    %v2627 = vpop.f32.mrb[0].mxu0
    %v2628 = vadd.f32 0.0, %v2627
    %v2629 = vpop.f32.mrb[0].mxu0
    %v2630 = vpop.f32.mrb[0].mxu0
    %v2631 = vadd.f32 0.0, %v2630
    %v2632 = vpop.f32.mrb[0].mxu0
    %2633 = vmatprep.mubr.bf16.mxu0 0
    %2634 = vmatmul.mubr.bf16.gmra.mrb[0].mxu0 %v1830
    %v2635 = vpop.f32.mrb[0].mxu0
    %v2636 = vadd.f32 0.0, %v2635
    %v2637 = vpop.f32.mrb[0].mxu0
    %v2638 = vpop.f32.mrb[0].mxu0
    %v2639 = vadd.f32 0.0, %v2638
    %v2640 = vpop.f32.mrb[0].mxu0
    %2641 = vmatprep.mubr.bf16.mxu0 0
    %2642 = vmatmul.mubr.bf16.gmra.mrb[0].mxu0 %v1833
    %v2643 = vpop.f32.mrb[0].mxu0
    %v2644 = vadd.f32 0.0, %v2643
    %v2645 = vpop.f32.mrb[0].mxu0
    %v2646 = vpop.f32.mrb[0].mxu0
    %v2647 = vadd.f32 0.0, %v2646
    %v2648 = vpop.f32.mrb[0].mxu0
    %2649 = vmatprep.mubr.bf16.mxu0 0
    %2650 = vmatmul.mubr.bf16.gmra.mrb[0].mxu0 %v1836
    %v2651 = vpop.f32.mrb[0].mxu0
    %v2652 = vadd.f32 0.0, %v2651
    %v2653 = vpop.f32.mrb[0].mxu0
    %v2654 = vpop.f32.mrb[0].mxu0
    %v2655 = vadd.f32 0.0, %v2654
    %v2656 = vpop.f32.mrb[0].mxu0
    %2657 = vmatprep.mubr.bf16.mxu0 0
    %2658 = vmatmul.mubr.bf16.gmra.mrb[0].mxu0 %v1839
    %v2659 = vpop.f32.mrb[0].mxu0
    %v2660 = vadd.f32 0.0, %v2659
    %v2661 = vpop.f32.mrb[0].mxu0
    %v2662 = vpop.f32.mrb[0].mxu0
    %v2663 = vadd.f32 0.0, %v2662
    %v2664 = vpop.f32.mrb[0].mxu0
    %2665 = vmatprep.mubr.bf16.mxu0 0
    %2666 = vmatmul.mubr.bf16.gmra.mrb[0].mxu0 %v1842
    %v2667 = vpop.f32.mrb[0].mxu0
    %v2668 = vadd.f32 0.0, %v2667
    %v2669 = vpop.f32.mrb[0].mxu0
    %v2670 = vpop.f32.mrb[0].mxu0
    %v2671 = vadd.f32 0.0, %v2670
    %v2672 = vpop.f32.mrb[0].mxu0
    %2673 = vmatprep.mubr.bf16.mxu0 0
    %2674 = vmatmul.mubr.bf16.gmra.mrb[0].mxu0 %v1845
    %v2675 = vpop.f32.mrb[0].mxu0
    %v2676 = vadd.f32 0.0, %v2675
    %v2677 = vpop.f32.mrb[0].mxu0
    %v2678 = vpop.f32.mrb[0].mxu0
    %v2679 = vadd.f32 0.0, %v2678
    %v2680 = vpop.f32.mrb[0].mxu0
    %2681 = vmatprep.mubr.bf16.mxu0 0
    %2682 = vmatmul.mubr.bf16.gmra.mrb[0].mxu0 %v1848
    %v2683 = vpop.f32.mrb[0].mxu0
    %v2684 = vadd.f32 0.0, %v2683
    %v2685 = vpop.f32.mrb[0].mxu0
    %v2686 = vpop.f32.mrb[0].mxu0
    %v2687 = vadd.f32 0.0, %v2686
    %v2688 = vpop.f32.mrb[0].mxu0
    %2689 = vdwg.mxu0
    %v2690 = vmax.f32 %v1892, %v2092
    %v2691 = vmax.f32 %v1895, %v2095
    %v2692 = vmax.f32 %v1900, %v2100
    %v2693 = vmax.f32 %v1903, %v2103
    %v2694 = vmax.f32 %v1908, %v2108
    %v2695 = vmax.f32 %v1911, %v2111
    %v2696 = vmax.f32 %v1916, %v2116
    %v2697 = vmax.f32 %v1919, %v2119
    %v2698 = vmax.f32 %v1924, %v2124
    %v2699 = vmax.f32 %v1927, %v2127
    %v2700 = vmax.f32 %v1932, %v2132
    %v2701 = vmax.f32 %v1935, %v2135
    %v2702 = vmax.f32 %v1940, %v2140
    %v2703 = vmax.f32 %v1943, %v2143
    %v2704 = vmax.f32 %v1948, %v2148
    %v2705 = vmax.f32 %v1951, %v2151
    %v2706 = vmax.f32 %v1956, %v2156
    %v2707 = vmax.f32 %v1959, %v2159
    %v2708 = vmax.f32 %v1964, %v2164
    %v2709 = vmax.f32 %v1967, %v2167
    %v2710 = vmax.f32 %v1972, %v2172
    %v2711 = vmax.f32 %v1975, %v2175
    %v2712 = vmax.f32 %v1980, %v2180
    %v2713 = vmax.f32 %v1983, %v2183
    %v2714 = vmax.f32 %v1988, %v2188
    %v2715 = vmax.f32 %v1991, %v2191
    %v2716 = vmax.f32 %v1996, %v2196
    %v2717 = vmax.f32 %v1999, %v2199
    %v2718 = vmax.f32 %v2004, %v2204
    %v2719 = vmax.f32 %v2007, %v2207
    %v2720 = vmax.f32 %v2012, %v2212
    %v2721 = vmax.f32 %v2015, %v2215
    %v2722 = vmax.f32 %v2020, %v2220
    %v2723 = vmax.f32 %v2023, %v2223
    %v2724 = vmax.f32 %v2028, %v2228
    %v2725 = vmax.f32 %v2031, %v2231
    %v2726 = vmax.f32 %v2036, %v2236
    %v2727 = vmax.f32 %v2039, %v2239
    %v2728 = vmax.f32 %v2044, %v2244
    %v2729 = vmax.f32 %v2047, %v2247
    %v2730 = vmax.f32 %v2052, %v2252
    %v2731 = vmax.f32 %v2055, %v2255
    %v2732 = vmax.f32 %v2060, %v2260
    %v2733 = vmax.f32 %v2063, %v2263
    %v2734 = vmax.f32 %v2068, %v2268
    %v2735 = vmax.f32 %v2071, %v2271
    %v2736 = vmax.f32 %v2076, %v2276
    %v2737 = vmax.f32 %v2079, %v2279
    %v2738 = vmax.f32 %v2084, %v2284
    %v2739 = vmax.f32 %v2087, %v2287
    %v2740 = vmax.f32 %v2292, %v2492
    %v2741 = vmax.f32 %v2295, %v2495
    %v2742 = vmax.f32 %v2300, %v2500
    %v2743 = vmax.f32 %v2303, %v2503
    %v2744 = vmax.f32 %v2308, %v2508
    %v2745 = vmax.f32 %v2311, %v2511
    %v2746 = vmax.f32 %v2316, %v2516
    %v2747 = vmax.f32 %v2319, %v2519
    %v2748 = vmax.f32 %v2324, %v2524
    %v2749 = vmax.f32 %v2327, %v2527
    %v2750 = vmax.f32 %v2332, %v2532
    %v2751 = vmax.f32 %v2335, %v2535
    %v2752 = vmax.f32 %v2340, %v2540
    %v2753 = vmax.f32 %v2343, %v2543
    %v2754 = vmax.f32 %v2348, %v2548
    %v2755 = vmax.f32 %v2351, %v2551
    %v2756 = vmax.f32 %v2356, %v2556
    %v2757 = vmax.f32 %v2359, %v2559
    %v2758 = vmax.f32 %v2364, %v2564
    %v2759 = vmax.f32 %v2367, %v2567
    %v2760 = vmax.f32 %v2372, %v2572
    %v2761 = vmax.f32 %v2375, %v2575
    %v2762 = vmax.f32 %v2380, %v2580
    %v2763 = vmax.f32 %v2383, %v2583
    %v2764 = vmax.f32 %v2388, %v2588
    %v2765 = vmax.f32 %v2391, %v2591
    %v2766 = vmax.f32 %v2396, %v2596
    %v2767 = vmax.f32 %v2399, %v2599
    %v2768 = vmax.f32 %v2404, %v2604
    %v2769 = vmax.f32 %v2407, %v2607
    %v2770 = vmax.f32 %v2412, %v2612
    %v2771 = vmax.f32 %v2415, %v2615
    %v2772 = vmax.f32 %v2420, %v2620
    %v2773 = vmax.f32 %v2423, %v2623
    %v2774 = vmax.f32 %v2428, %v2628
    %v2775 = vmax.f32 %v2431, %v2631
    %v2776 = vmax.f32 %v2436, %v2636
    %v2777 = vmax.f32 %v2439, %v2639
    %v2778 = vmax.f32 %v2444, %v2644
    %v2779 = vmax.f32 %v2447, %v2647
    %v2780 = vmax.f32 %v2452, %v2652
    %v2781 = vmax.f32 %v2455, %v2655
    %v2782 = vmax.f32 %v2460, %v2660
    %v2783 = vmax.f32 %v2463, %v2663
    %v2784 = vmax.f32 %v2468, %v2668
    %v2785 = vmax.f32 %v2471, %v2671
    %v2786 = vmax.f32 %v2476, %v2676
    %v2787 = vmax.f32 %v2479, %v2679
    %v2788 = vmax.f32 %v2484, %v2684
    %v2789 = vmax.f32 %v2487, %v2687
    %v2790 = vmax.f32 %v2690, %v2740
    %v2791 = vmax.f32 %v2691, %v2741
    %v2792 = vmax.f32 %v2692, %v2742
    %v2793 = vmax.f32 %v2693, %v2743
    %v2794 = vmax.f32 %v2694, %v2744
    %v2795 = vmax.f32 %v2695, %v2745
    %v2796 = vmax.f32 %v2696, %v2746
    %v2797 = vmax.f32 %v2697, %v2747
    %v2798 = vmax.f32 %v2698, %v2748
    %v2799 = vmax.f32 %v2699, %v2749
    %v2800 = vmax.f32 %v2700, %v2750
    %v2801 = vmax.f32 %v2701, %v2751
    %v2802 = vmax.f32 %v2702, %v2752
    %v2803 = vmax.f32 %v2703, %v2753
    %v2804 = vmax.f32 %v2704, %v2754
    %v2805 = vmax.f32 %v2705, %v2755
    %v2806 = vmax.f32 %v2706, %v2756
    %v2807 = vmax.f32 %v2707, %v2757
    %v2808 = vmax.f32 %v2708, %v2758
    %v2809 = vmax.f32 %v2709, %v2759
    %v2810 = vmax.f32 %v2710, %v2760
    %v2811 = vmax.f32 %v2711, %v2761
    %v2812 = vmax.f32 %v2712, %v2762
    %v2813 = vmax.f32 %v2713, %v2763
    %v2814 = vmax.f32 %v2714, %v2764
    %v2815 = vmax.f32 %v2715, %v2765
    %v2816 = vmax.f32 %v2716, %v2766
    %v2817 = vmax.f32 %v2717, %v2767
    %v2818 = vmax.f32 %v2718, %v2768
    %v2819 = vmax.f32 %v2719, %v2769
    %v2820 = vmax.f32 %v2720, %v2770
    %v2821 = vmax.f32 %v2721, %v2771
    %v2822 = vmax.f32 %v2722, %v2772
    %v2823 = vmax.f32 %v2723, %v2773
    %v2824 = vmax.f32 %v2724, %v2774
    %v2825 = vmax.f32 %v2725, %v2775
    %v2826 = vmax.f32 %v2726, %v2776
    %v2827 = vmax.f32 %v2727, %v2777
    %v2828 = vmax.f32 %v2728, %v2778
    %v2829 = vmax.f32 %v2729, %v2779
    %v2830 = vmax.f32 %v2730, %v2780
    %v2831 = vmax.f32 %v2731, %v2781
    %v2832 = vmax.f32 %v2732, %v2782
    %v2833 = vmax.f32 %v2733, %v2783
    %v2834 = vmax.f32 %v2734, %v2784
    %v2835 = vmax.f32 %v2735, %v2785
    %v2836 = vmax.f32 %v2736, %v2786
    %v2837 = vmax.f32 %v2737, %v2787
    %v2838 = vmax.f32 %v2738, %v2788
    %v2839 = vmax.f32 %v2739, %v2789
    %v2840 = vld [vmem:[%s2] sm:$0x1]
    %v2842 = vlaneseq
    %v2843 = vshrl.u32 %v2842, 7
    %v2844 = vsub.s32 0, %v2843
    %v2845 = vrot.slane %v2840, %v2844
    %v2847 = vadd.f32 %v2790, %v2845
    %v2848 = vadd.f32 %v2791, %v2845
    %v2849 = vadd.f32 %v2792, %v2845
    %v2850 = vadd.f32 %v2793, %v2845
    %v2851 = vadd.f32 %v2794, %v2845
    %v2852 = vadd.f32 %v2795, %v2845
    %v2853 = vadd.f32 %v2796, %v2845
    %v2854 = vadd.f32 %v2797, %v2845
    %v2855 = vadd.f32 %v2798, %v2845
    %v2856 = vadd.f32 %v2799, %v2845
    %v2857 = vadd.f32 %v2800, %v2845
    %v2858 = vadd.f32 %v2801, %v2845
    %v2859 = vadd.f32 %v2802, %v2845
    %v2860 = vadd.f32 %v2803, %v2845
    %v2861 = vadd.f32 %v2804, %v2845
    %v2862 = vadd.f32 %v2805, %v2845
    %v2863 = vadd.f32 %v2806, %v2845
    %v2864 = vadd.f32 %v2807, %v2845
    %v2865 = vadd.f32 %v2808, %v2845
    %v2866 = vadd.f32 %v2809, %v2845
    %v2867 = vadd.f32 %v2810, %v2845
    %v2868 = vadd.f32 %v2811, %v2845
    %v2869 = vadd.f32 %v2812, %v2845
    %v2870 = vadd.f32 %v2813, %v2845
    %v2871 = vadd.f32 %v2814, %v2845
    %v2872 = vadd.f32 %v2815, %v2845
    %v2873 = vadd.f32 %v2816, %v2845
    %v2874 = vadd.f32 %v2817, %v2845
    %v2875 = vadd.f32 %v2818, %v2845
    %v2876 = vadd.f32 %v2819, %v2845
    %v2877 = vadd.f32 %v2820, %v2845
    %v2878 = vadd.f32 %v2821, %v2845
    %v2879 = vadd.f32 %v2822, %v2845
    %v2880 = vadd.f32 %v2823, %v2845
    %v2881 = vadd.f32 %v2824, %v2845
    %v2882 = vadd.f32 %v2825, %v2845
    %v2883 = vadd.f32 %v2826, %v2845
    %v2884 = vadd.f32 %v2827, %v2845
    %v2885 = vadd.f32 %v2828, %v2845
    %v2886 = vadd.f32 %v2829, %v2845
    %v2887 = vadd.f32 %v2830, %v2845
    %v2888 = vadd.f32 %v2831, %v2845
    %v2889 = vadd.f32 %v2832, %v2845
    %v2890 = vadd.f32 %v2833, %v2845
    %v2891 = vadd.f32 %v2834, %v2845
    %v2892 = vadd.f32 %v2835, %v2845
    %v2893 = vadd.f32 %v2836, %v2845
    %v2894 = vadd.f32 %v2837, %v2845
    %v2895 = vadd.f32 %v2838, %v2845
    %v2896 = vadd.f32 %v2839, %v2845
    %v2897 = vmax.f32 %v2847, 0.0
    %v2898 = vmax.f32 %v2848, 0.0
    %v2899 = vmax.f32 %v2849, 0.0
    %v2900 = vmax.f32 %v2850, 0.0
    %v2901 = vmax.f32 %v2851, 0.0
    %v2902 = vmax.f32 %v2852, 0.0
    %v2903 = vmax.f32 %v2853, 0.0
    %v2904 = vmax.f32 %v2854, 0.0
    %v2905 = vmax.f32 %v2855, 0.0
    %v2906 = vmax.f32 %v2856, 0.0
    %v2907 = vmax.f32 %v2857, 0.0
    %v2908 = vmax.f32 %v2858, 0.0
    %v2909 = vmax.f32 %v2859, 0.0
    %v2910 = vmax.f32 %v2860, 0.0
    %v2911 = vmax.f32 %v2861, 0.0
    %v2912 = vmax.f32 %v2862, 0.0
    %v2913 = vmax.f32 %v2863, 0.0
    %v2914 = vmax.f32 %v2864, 0.0
    %v2915 = vmax.f32 %v2865, 0.0
    %v2916 = vmax.f32 %v2866, 0.0
    %v2917 = vmax.f32 %v2867, 0.0
    %v2918 = vmax.f32 %v2868, 0.0
    %v2919 = vmax.f32 %v2869, 0.0
    %v2920 = vmax.f32 %v2870, 0.0
    %v2921 = vmax.f32 %v2871, 0.0
    %v2922 = vmax.f32 %v2872, 0.0
    %v2923 = vmax.f32 %v2873, 0.0
    %v2924 = vmax.f32 %v2874, 0.0
    %v2925 = vmax.f32 %v2875, 0.0
    %v2926 = vmax.f32 %v2876, 0.0
    %v2927 = vmax.f32 %v2877, 0.0
    %v2928 = vmax.f32 %v2878, 0.0
    %v2929 = vmax.f32 %v2879, 0.0
    %v2930 = vmax.f32 %v2880, 0.0
    %v2931 = vmax.f32 %v2881, 0.0
    %v2932 = vmax.f32 %v2882, 0.0
    %v2933 = vmax.f32 %v2883, 0.0
    %v2934 = vmax.f32 %v2884, 0.0
    %v2935 = vmax.f32 %v2885, 0.0
    %v2936 = vmax.f32 %v2886, 0.0
    %v2937 = vmax.f32 %v2887, 0.0
    %v2938 = vmax.f32 %v2888, 0.0
    %v2939 = vmax.f32 %v2889, 0.0
    %v2940 = vmax.f32 %v2890, 0.0
    %v2941 = vmax.f32 %v2891, 0.0
    %v2942 = vmax.f32 %v2892, 0.0
    %v2943 = vmax.f32 %v2893, 0.0
    %v2944 = vmax.f32 %v2894, 0.0
    %v2945 = vmax.f32 %v2895, 0.0
    %v2946 = vmax.f32 %v2896, 0.0
    %v2947 = vld [vmem:[%s3] sm:$0x1]
    %v2949 = vlaneseq
    %v2950 = vshrl.u32 %v2949, 7
    %v2951 = vsub.s32 0, %v2950
    %v2952 = vrot.slane %v2947, %v2951
    %v2954 = vadd.f32 %v2897, %v2952
    %v2955 = vadd.f32 %v2898, %v2952
    %v2956 = vadd.f32 %v2899, %v2952
    %v2957 = vadd.f32 %v2900, %v2952
    %v2958 = vadd.f32 %v2901, %v2952
    %v2959 = vadd.f32 %v2902, %v2952
    %v2960 = vadd.f32 %v2903, %v2952
    %v2961 = vadd.f32 %v2904, %v2952
    %v2962 = vadd.f32 %v2905, %v2952
    %v2963 = vadd.f32 %v2906, %v2952
    %v2964 = vadd.f32 %v2907, %v2952
    %v2965 = vadd.f32 %v2908, %v2952
    %v2966 = vadd.f32 %v2909, %v2952
    %v2967 = vadd.f32 %v2910, %v2952
    %v2968 = vadd.f32 %v2911, %v2952
    %v2969 = vadd.f32 %v2912, %v2952
    %v2970 = vadd.f32 %v2913, %v2952
    %v2971 = vadd.f32 %v2914, %v2952
    %v2972 = vadd.f32 %v2915, %v2952
    %v2973 = vadd.f32 %v2916, %v2952
    %v2974 = vadd.f32 %v2917, %v2952
    %v2975 = vadd.f32 %v2918, %v2952
    %v2976 = vadd.f32 %v2919, %v2952
    %v2977 = vadd.f32 %v2920, %v2952
    %v2978 = vadd.f32 %v2921, %v2952
    %v2979 = vadd.f32 %v2922, %v2952
    %v2980 = vadd.f32 %v2923, %v2952
    %v2981 = vadd.f32 %v2924, %v2952
    %v2982 = vadd.f32 %v2925, %v2952
    %v2983 = vadd.f32 %v2926, %v2952
    %v2984 = vadd.f32 %v2927, %v2952
    %v2985 = vadd.f32 %v2928, %v2952
    %v2986 = vadd.f32 %v2929, %v2952
    %v2987 = vadd.f32 %v2930, %v2952
    %v2988 = vadd.f32 %v2931, %v2952
    %v2989 = vadd.f32 %v2932, %v2952
    %v2990 = vadd.f32 %v2933, %v2952
    %v2991 = vadd.f32 %v2934, %v2952
    %v2992 = vadd.f32 %v2935, %v2952
    %v2993 = vadd.f32 %v2936, %v2952
    %v2994 = vadd.f32 %v2937, %v2952
    %v2995 = vadd.f32 %v2938, %v2952
    %v2996 = vadd.f32 %v2939, %v2952
    %v2997 = vadd.f32 %v2940, %v2952
    %v2998 = vadd.f32 %v2941, %v2952
    %v2999 = vadd.f32 %v2942, %v2952
    %v3000 = vadd.f32 %v2943, %v2952
    %v3001 = vadd.f32 %v2944, %v2952
    %v3002 = vadd.f32 %v2945, %v2952
    %v3003 = vadd.f32 %v2946, %v2952
    %v3004 = vpack.c.bf16 %v2955, %v2954
    %v3005 = vpack.c.bf16 %v2957, %v2956
    %v3006 = vpack.c.bf16 %v2959, %v2958
    %v3007 = vpack.c.bf16 %v2961, %v2960
    %v3008 = vpack.c.bf16 %v2963, %v2962
    %v3009 = vpack.c.bf16 %v2965, %v2964
    %v3010 = vpack.c.bf16 %v2967, %v2966
    %v3011 = vpack.c.bf16 %v2969, %v2968
    %v3012 = vpack.c.bf16 %v2971, %v2970
    %v3013 = vpack.c.bf16 %v2973, %v2972
    %v3014 = vpack.c.bf16 %v2975, %v2974
    %v3015 = vpack.c.bf16 %v2977, %v2976
    %v3016 = vpack.c.bf16 %v2979, %v2978
    %v3017 = vpack.c.bf16 %v2981, %v2980
    %v3018 = vpack.c.bf16 %v2983, %v2982
    %v3019 = vpack.c.bf16 %v2985, %v2984
    %v3020 = vpack.c.bf16 %v2987, %v2986
    %v3021 = vpack.c.bf16 %v2989, %v2988
    %v3022 = vpack.c.bf16 %v2991, %v2990
    %v3023 = vpack.c.bf16 %v2993, %v2992
    %v3024 = vpack.c.bf16 %v2995, %v2994
    %v3025 = vpack.c.bf16 %v2997, %v2996
    %v3026 = vpack.c.bf16 %v2999, %v2998
    %v3027 = vpack.c.bf16 %v3001, %v3000
    %v3028 = vpack.c.bf16 %v3003, %v3002
    %v3054 = vunpack.c.l.b16 %v3004
    %v3055 = vunpack.c.h.b16 %v3004
    %v3056 = vunpack.c.l.b16 %v3005
    %v3057 = vunpack.c.h.b16 %v3005
    %v3058 = vunpack.c.l.b16 %v3006
    %v3059 = vunpack.c.h.b16 %v3006
    %v3060 = vunpack.c.l.b16 %v3007
    %v3061 = vunpack.c.h.b16 %v3007
    %v3062 = vunpack.c.l.b16 %v3008
    %v3063 = vunpack.c.h.b16 %v3008
    %v3064 = vunpack.c.l.b16 %v3009
    %v3065 = vunpack.c.h.b16 %v3009
    %v3066 = vunpack.c.l.b16 %v3010
    %v3067 = vunpack.c.h.b16 %v3010
    %v3068 = vunpack.c.l.b16 %v3011
    %v3069 = vunpack.c.h.b16 %v3011
    %v3070 = vunpack.c.l.b16 %v3012
    %v3071 = vunpack.c.h.b16 %v3012
    %v3072 = vunpack.c.l.b16 %v3013
    %v3073 = vunpack.c.h.b16 %v3013
    %v3074 = vunpack.c.l.b16 %v3014
    %v3075 = vunpack.c.h.b16 %v3014
    %v3076 = vunpack.c.l.b16 %v3015
    %v3077 = vunpack.c.h.b16 %v3015
    %v3078 = vunpack.c.l.b16 %v3016
    %v3079 = vunpack.c.h.b16 %v3016
    %v3080 = vunpack.c.l.b16 %v3017
    %v3081 = vunpack.c.h.b16 %v3017
    %v3082 = vunpack.c.l.b16 %v3018
    %v3083 = vunpack.c.h.b16 %v3018
    %v3084 = vunpack.c.l.b16 %v3019
    %v3085 = vunpack.c.h.b16 %v3019
    %v3086 = vunpack.c.l.b16 %v3020
    %v3087 = vunpack.c.h.b16 %v3020
    %v3088 = vunpack.c.l.b16 %v3021
    %v3089 = vunpack.c.h.b16 %v3021
    %v3090 = vunpack.c.l.b16 %v3022
    %v3091 = vunpack.c.h.b16 %v3022
    %v3092 = vunpack.c.l.b16 %v3023
    %v3093 = vunpack.c.h.b16 %v3023
    %v3094 = vunpack.c.l.b16 %v3024
    %v3095 = vunpack.c.h.b16 %v3024
    %v3096 = vunpack.c.l.b16 %v3025
    %v3097 = vunpack.c.h.b16 %v3025
    %v3098 = vunpack.c.l.b16 %v3026
    %v3099 = vunpack.c.h.b16 %v3026
    %v3100 = vunpack.c.l.b16 %v3027
    %v3101 = vunpack.c.h.b16 %v3027
    %v3102 = vunpack.c.l.b16 %v3028
    %v3103 = vunpack.c.h.b16 %v3028
    %v3104 = vpack.c.b16 %v3054, %v3054
    %v3105 = vpack.c.b16 %v3055, %v3055
    %v3106 = vpack.c.b16 %v3056, %v3056
    %v3107 = vpack.c.b16 %v3057, %v3057
    %v3108 = vpack.c.b16 %v3058, %v3058
    %v3109 = vpack.c.b16 %v3059, %v3059
    %v3110 = vpack.c.b16 %v3060, %v3060
    %v3111 = vpack.c.b16 %v3061, %v3061
    %v3112 = vpack.c.b16 %v3062, %v3062
    %v3113 = vpack.c.b16 %v3063, %v3063
    %v3114 = vpack.c.b16 %v3064, %v3064
    %v3115 = vpack.c.b16 %v3065, %v3065
    %v3116 = vpack.c.b16 %v3066, %v3066
    %v3117 = vpack.c.b16 %v3067, %v3067
    %v3118 = vpack.c.b16 %v3068, %v3068
    %v3119 = vpack.c.b16 %v3069, %v3069
    %v3120 = vpack.c.b16 %v3070, %v3070
    %v3121 = vpack.c.b16 %v3071, %v3071
    %v3122 = vpack.c.b16 %v3072, %v3072
    %v3123 = vpack.c.b16 %v3073, %v3073
    %v3124 = vpack.c.b16 %v3074, %v3074
    %v3125 = vpack.c.b16 %v3075, %v3075
    %v3126 = vpack.c.b16 %v3076, %v3076
    %v3127 = vpack.c.b16 %v3077, %v3077
    %v3128 = vpack.c.b16 %v3078, %v3078
    %v3129 = vpack.c.b16 %v3079, %v3079
    %v3130 = vpack.c.b16 %v3080, %v3080
    %v3131 = vpack.c.b16 %v3081, %v3081
    %v3132 = vpack.c.b16 %v3082, %v3082
    %v3133 = vpack.c.b16 %v3083, %v3083
    %v3134 = vpack.c.b16 %v3084, %v3084
    %v3135 = vpack.c.b16 %v3085, %v3085
    %v3136 = vpack.c.b16 %v3086, %v3086
    %v3137 = vpack.c.b16 %v3087, %v3087
    %v3138 = vpack.c.b16 %v3088, %v3088
    %v3139 = vpack.c.b16 %v3089, %v3089
    %v3140 = vpack.c.b16 %v3090, %v3090
    %v3141 = vpack.c.b16 %v3091, %v3091
    %v3142 = vpack.c.b16 %v3092, %v3092
    %v3143 = vpack.c.b16 %v3093, %v3093
    %v3144 = vpack.c.b16 %v3094, %v3094
    %v3145 = vpack.c.b16 %v3095, %v3095
    %v3146 = vpack.c.b16 %v3096, %v3096
    %v3147 = vpack.c.b16 %v3097, %v3097
    %v3148 = vpack.c.b16 %v3098, %v3098
    %v3149 = vpack.c.b16 %v3099, %v3099
    %v3150 = vpack.c.b16 %v3100, %v3100
    %v3151 = vpack.c.b16 %v3101, %v3101
    %v3152 = vpack.c.b16 %v3102, %v3102
    %v3153 = vpack.c.b16 %v3103, %v3103
    %vm3204 = vcmask 125952
    %3205 = vst.msk [vmem:[#allocation3] sm:$0xf] %vm3204, %v3104
    %3206 = vst.msk [vmem:[#allocation3 + $0x4] sm:$0xf] %vm3204, %v3105
    %3207 = vst.msk [vmem:[#allocation3 + $0x8] sm:$0xf] %vm3204, %v3106
    %3208 = vst.msk [vmem:[#allocation3 + $0xc] sm:$0xf] %vm3204, %v3107
    %3209 = vst.msk [vmem:[#allocation3 + $0x10] sm:$0xf] %vm3204, %v3108
    %3210 = vst.msk [vmem:[#allocation3 + $0x14] sm:$0xf] %vm3204, %v3109
    %3211 = vst.msk [vmem:[#allocation3 + $0x18] sm:$0xf] %vm3204, %v3110
    %3212 = vst.msk [vmem:[#allocation3 + $0x1c] sm:$0xf] %vm3204, %v3111
    %3213 = vst.msk [vmem:[#allocation3 + $0x20] sm:$0xf] %vm3204, %v3112
    %3214 = vst.msk [vmem:[#allocation3 + $0x24] sm:$0xf] %vm3204, %v3113
    %3215 = vst.msk [vmem:[#allocation3 + $0x28] sm:$0xf] %vm3204, %v3114
    %3216 = vst.msk [vmem:[#allocation3 + $0x2c] sm:$0xf] %vm3204, %v3115
    %3217 = vst.msk [vmem:[#allocation3 + $0x30] sm:$0xf] %vm3204, %v3116
    %3218 = vst.msk [vmem:[#allocation3 + $0x34] sm:$0xf] %vm3204, %v3117
    %3219 = vst.msk [vmem:[#allocation3 + $0x38] sm:$0xf] %vm3204, %v3118
    %3220 = vst.msk [vmem:[#allocation3 + $0x3c] sm:$0xf] %vm3204, %v3119
    %3221 = vst.msk [vmem:[#allocation3 + $0x40] sm:$0xf] %vm3204, %v3120
    %3222 = vst.msk [vmem:[#allocation3 + $0x44] sm:$0xf] %vm3204, %v3121
    %3223 = vst.msk [vmem:[#allocation3 + $0x48] sm:$0xf] %vm3204, %v3122
    %3224 = vst.msk [vmem:[#allocation3 + $0x4c] sm:$0xf] %vm3204, %v3123
    %3225 = vst.msk [vmem:[#allocation3 + $0x50] sm:$0xf] %vm3204, %v3124
    %3226 = vst.msk [vmem:[#allocation3 + $0x54] sm:$0xf] %vm3204, %v3125
    %3227 = vst.msk [vmem:[#allocation3 + $0x58] sm:$0xf] %vm3204, %v3126
    %3228 = vst.msk [vmem:[#allocation3 + $0x5c] sm:$0xf] %vm3204, %v3127
    %3229 = vst.msk [vmem:[#allocation3 + $0x60] sm:$0xf] %vm3204, %v3128
    %3230 = vst.msk [vmem:[#allocation3 + $0x64] sm:$0xf] %vm3204, %v3129
    %3231 = vst.msk [vmem:[#allocation3 + $0x68] sm:$0xf] %vm3204, %v3130
    %3232 = vst.msk [vmem:[#allocation3 + $0x6c] sm:$0xf] %vm3204, %v3131
    %3233 = vst.msk [vmem:[#allocation3 + $0x70] sm:$0xf] %vm3204, %v3132
    %3234 = vst.msk [vmem:[#allocation3 + $0x74] sm:$0xf] %vm3204, %v3133
    %3235 = vst.msk [vmem:[#allocation3 + $0x78] sm:$0xf] %vm3204, %v3134
    %3236 = vst.msk [vmem:[#allocation3 + $0x7c] sm:$0xf] %vm3204, %v3135
    %3237 = vst.msk [vmem:[#allocation3 + $0x80] sm:$0xf] %vm3204, %v3136
    %3238 = vst.msk [vmem:[#allocation3 + $0x84] sm:$0xf] %vm3204, %v3137
    %3239 = vst.msk [vmem:[#allocation3 + $0x88] sm:$0xf] %vm3204, %v3138
    %3240 = vst.msk [vmem:[#allocation3 + $0x8c] sm:$0xf] %vm3204, %v3139
    %3241 = vst.msk [vmem:[#allocation3 + $0x90] sm:$0xf] %vm3204, %v3140
    %3242 = vst.msk [vmem:[#allocation3 + $0x94] sm:$0xf] %vm3204, %v3141
    %3243 = vst.msk [vmem:[#allocation3 + $0x98] sm:$0xf] %vm3204, %v3142
    %3244 = vst.msk [vmem:[#allocation3 + $0x9c] sm:$0xf] %vm3204, %v3143
    %3245 = vst.msk [vmem:[#allocation3 + $0xa0] sm:$0xf] %vm3204, %v3144
    %3246 = vst.msk [vmem:[#allocation3 + $0xa4] sm:$0xf] %vm3204, %v3145
    %3247 = vst.msk [vmem:[#allocation3 + $0xa8] sm:$0xf] %vm3204, %v3146
    %3248 = vst.msk [vmem:[#allocation3 + $0xac] sm:$0xf] %vm3204, %v3147
    %3249 = vst.msk [vmem:[#allocation3 + $0xb0] sm:$0xf] %vm3204, %v3148
    %3250 = vst.msk [vmem:[#allocation3 + $0xb4] sm:$0xf] %vm3204, %v3149
    %3251 = vst.msk [vmem:[#allocation3 + $0xb8] sm:$0xf] %vm3204, %v3150
    %3252 = vst.msk [vmem:[#allocation3 + $0xbc] sm:$0xf] %vm3204, %v3151
    %3253 = vst.msk [vmem:[#allocation3 + $0xc0] sm:$0xf] %vm3204, %v3152
    %3254 = vst.msk [vmem:[#allocation3 + $0xc4] sm:$0xf] %vm3204, %v3153
    // Predicated region
    $region59: #{cnn_forward.3} parent=1 // pred_check
      _
    $region60: #{cnn_forward.3} parent=1 // pred_check_branch
      %3256 = sbr.rel (0) target = $region62
    $region61: #{cnn_forward.3} parent=1 // pred_region
      // Predicated region
      $region63: #{cnn_forward.3} parent=61 // pred_check
        _
      $region64: #{cnn_forward.3} parent=61 // pred_check_branch
        %3258 = sbr.rel (0) target = $region66
      $region65: #{cnn_forward.3} parent=61 // pred_region
        // Predicated region
        $region67: #{cnn_forward.3} parent=65 // pred_check
          _
        $region68: #{cnn_forward.3} parent=65 // pred_check_branch
          %3260 = sbr.rel target = $region70
        $region69: #{cnn_forward.3} parent=65 // pred_region
          // Predicated region
          $region82: #{cnn_forward.3} parent=69 // pred_check
            _
          $region83: #{cnn_forward.3} parent=69 // pred_check_branch
            %3371 = sbr.rel (0) target = $region85
          $region84: #{cnn_forward.3} parent=69 // pred_region
            loop: start=0, step=1, limit=1
            $region86: #{cnn_forward.3} parent=84 // loop_pre_header
              _
            $region87: #{cnn_forward.3} parent=84 // loop_header
              %s3373 = sphi 0, %s3377
              %p3374 = scmp.ge.s32.totalorder %s3373, 1
              %s3378 = sphi [#allocation3], [#allocation3]
              %s3379 = sphi %s4, %s4
            $region88: #{cnn_forward.3} parent=84 // loop_header_branch
              %3376 = sbr.rel (%p3374) target = $region92
            $region89: #{cnn_forward.3} parent=84 // loop_body
              _
            $region90: #{cnn_forward.3} parent=84 // loop_footer
              %s3377 = sadd.s32 1, %s3373
            $region91: #{cnn_forward.3} parent=84 // loop_footer_branch
              %3372 = sbr.rel target = $region87
            $region92: #{cnn_forward.3} parent=84 // loop_exit
              _
            loop: start=0, step=1, limit=1
            $region93: #{cnn_forward.3} parent=84 // loop_pre_header
              _
            $region94: #{cnn_forward.3} parent=84 // loop_header
              %s3382 = sphi 0, %s3386
              %p3383 = scmp.ge.s32.totalorder %s3382, 1
              %s3387 = sphi [#allocation3], [#allocation3]
              %s3388 = sphi %s4, %s4
            $region95: #{cnn_forward.3} parent=84 // loop_header_branch
              %3385 = sbr.rel (%p3383) target = $region99
            $region96: #{cnn_forward.3} parent=84 // loop_body
              %v3389 = vld [vmem:[%s3387] sm:$0xf]
              %3390 = vst [vmem:[%s3388] sm:$0xf] %v3389
              %v3391 = vld [vmem:[%s3387 + $0x4] sm:$0xf]
              %3392 = vst [vmem:[%s3388 + $0x4] sm:$0xf] %v3391
              %v3393 = vld [vmem:[%s3387 + $0x8] sm:$0xf]
              %3394 = vst [vmem:[%s3388 + $0x8] sm:$0xf] %v3393
              %v3395 = vld [vmem:[%s3387 + $0xc] sm:$0xf]
              %3396 = vst [vmem:[%s3388 + $0xc] sm:$0xf] %v3395
              %v3397 = vld [vmem:[%s3387 + $0x10] sm:$0xf]
              %3398 = vst [vmem:[%s3388 + $0x10] sm:$0xf] %v3397
              %v3399 = vld [vmem:[%s3387 + $0x14] sm:$0xf]
              %3400 = vst [vmem:[%s3388 + $0x14] sm:$0xf] %v3399
              %v3401 = vld [vmem:[%s3387 + $0x18] sm:$0xf]
              %3402 = vst [vmem:[%s3388 + $0x18] sm:$0xf] %v3401
              %v3403 = vld [vmem:[%s3387 + $0x1c] sm:$0xf]
              %3404 = vst [vmem:[%s3388 + $0x1c] sm:$0xf] %v3403
              %v3405 = vld [vmem:[%s3387 + $0x20] sm:$0xf]
              %3406 = vst [vmem:[%s3388 + $0x20] sm:$0xf] %v3405
              %v3407 = vld [vmem:[%s3387 + $0x24] sm:$0xf]
              %3408 = vst [vmem:[%s3388 + $0x24] sm:$0xf] %v3407
              %v3409 = vld [vmem:[%s3387 + $0x28] sm:$0xf]
              %3410 = vst [vmem:[%s3388 + $0x28] sm:$0xf] %v3409
              %v3411 = vld [vmem:[%s3387 + $0x2c] sm:$0xf]
              %3412 = vst [vmem:[%s3388 + $0x2c] sm:$0xf] %v3411
              %v3413 = vld [vmem:[%s3387 + $0x30] sm:$0xf]
              %3414 = vst [vmem:[%s3388 + $0x30] sm:$0xf] %v3413
              %v3415 = vld [vmem:[%s3387 + $0x34] sm:$0xf]
              %3416 = vst [vmem:[%s3388 + $0x34] sm:$0xf] %v3415
              %v3417 = vld [vmem:[%s3387 + $0x38] sm:$0xf]
              %3418 = vst [vmem:[%s3388 + $0x38] sm:$0xf] %v3417
              %v3419 = vld [vmem:[%s3387 + $0x3c] sm:$0xf]
              %3420 = vst [vmem:[%s3388 + $0x3c] sm:$0xf] %v3419
              %v3421 = vld [vmem:[%s3387 + $0x40] sm:$0xf]
              %3422 = vst [vmem:[%s3388 + $0x40] sm:$0xf] %v3421
              %v3423 = vld [vmem:[%s3387 + $0x44] sm:$0xf]
              %3424 = vst [vmem:[%s3388 + $0x44] sm:$0xf] %v3423
              %v3425 = vld [vmem:[%s3387 + $0x48] sm:$0xf]
              %3426 = vst [vmem:[%s3388 + $0x48] sm:$0xf] %v3425
              %v3427 = vld [vmem:[%s3387 + $0x4c] sm:$0xf]
              %3428 = vst [vmem:[%s3388 + $0x4c] sm:$0xf] %v3427
              %v3429 = vld [vmem:[%s3387 + $0x50] sm:$0xf]
              %3430 = vst [vmem:[%s3388 + $0x50] sm:$0xf] %v3429
              %v3431 = vld [vmem:[%s3387 + $0x54] sm:$0xf]
              %3432 = vst [vmem:[%s3388 + $0x54] sm:$0xf] %v3431
              %v3433 = vld [vmem:[%s3387 + $0x58] sm:$0xf]
              %3434 = vst [vmem:[%s3388 + $0x58] sm:$0xf] %v3433
              %v3435 = vld [vmem:[%s3387 + $0x5c] sm:$0xf]
              %3436 = vst [vmem:[%s3388 + $0x5c] sm:$0xf] %v3435
              %v3437 = vld [vmem:[%s3387 + $0x60] sm:$0xf]
              %3438 = vst [vmem:[%s3388 + $0x60] sm:$0xf] %v3437
              %v3439 = vld [vmem:[%s3387 + $0x64] sm:$0xf]
              %3440 = vst [vmem:[%s3388 + $0x64] sm:$0xf] %v3439
              %v3441 = vld [vmem:[%s3387 + $0x68] sm:$0xf]
              %3442 = vst [vmem:[%s3388 + $0x68] sm:$0xf] %v3441
              %v3443 = vld [vmem:[%s3387 + $0x6c] sm:$0xf]
              %3444 = vst [vmem:[%s3388 + $0x6c] sm:$0xf] %v3443
              %v3445 = vld [vmem:[%s3387 + $0x70] sm:$0xf]
              %3446 = vst [vmem:[%s3388 + $0x70] sm:$0xf] %v3445
              %v3447 = vld [vmem:[%s3387 + $0x74] sm:$0xf]
              %3448 = vst [vmem:[%s3388 + $0x74] sm:$0xf] %v3447
              %v3449 = vld [vmem:[%s3387 + $0x78] sm:$0xf]
              %3450 = vst [vmem:[%s3388 + $0x78] sm:$0xf] %v3449
              %v3451 = vld [vmem:[%s3387 + $0x7c] sm:$0xf]
              %3452 = vst [vmem:[%s3388 + $0x7c] sm:$0xf] %v3451
              %v3453 = vld [vmem:[%s3387 + $0x80] sm:$0xf]
              %3454 = vst [vmem:[%s3388 + $0x80] sm:$0xf] %v3453
              %v3455 = vld [vmem:[%s3387 + $0x84] sm:$0xf]
              %3456 = vst [vmem:[%s3388 + $0x84] sm:$0xf] %v3455
              %v3457 = vld [vmem:[%s3387 + $0x88] sm:$0xf]
              %3458 = vst [vmem:[%s3388 + $0x88] sm:$0xf] %v3457
              %v3459 = vld [vmem:[%s3387 + $0x8c] sm:$0xf]
              %3460 = vst [vmem:[%s3388 + $0x8c] sm:$0xf] %v3459
              %v3461 = vld [vmem:[%s3387 + $0x90] sm:$0xf]
              %3462 = vst [vmem:[%s3388 + $0x90] sm:$0xf] %v3461
              %v3463 = vld [vmem:[%s3387 + $0x94] sm:$0xf]
              %3464 = vst [vmem:[%s3388 + $0x94] sm:$0xf] %v3463
              %v3465 = vld [vmem:[%s3387 + $0x98] sm:$0xf]
              %3466 = vst [vmem:[%s3388 + $0x98] sm:$0xf] %v3465
              %v3467 = vld [vmem:[%s3387 + $0x9c] sm:$0xf]
              %3468 = vst [vmem:[%s3388 + $0x9c] sm:$0xf] %v3467
              %v3469 = vld [vmem:[%s3387 + $0xa0] sm:$0xf]
              %3470 = vst [vmem:[%s3388 + $0xa0] sm:$0xf] %v3469
              %v3471 = vld [vmem:[%s3387 + $0xa4] sm:$0xf]
              %3472 = vst [vmem:[%s3388 + $0xa4] sm:$0xf] %v3471
              %v3473 = vld [vmem:[%s3387 + $0xa8] sm:$0xf]
              %3474 = vst [vmem:[%s3388 + $0xa8] sm:$0xf] %v3473
              %v3475 = vld [vmem:[%s3387 + $0xac] sm:$0xf]
              %3476 = vst [vmem:[%s3388 + $0xac] sm:$0xf] %v3475
              %v3477 = vld [vmem:[%s3387 + $0xb0] sm:$0xf]
              %3478 = vst [vmem:[%s3388 + $0xb0] sm:$0xf] %v3477
              %v3479 = vld [vmem:[%s3387 + $0xb4] sm:$0xf]
              %3480 = vst [vmem:[%s3388 + $0xb4] sm:$0xf] %v3479
              %v3481 = vld [vmem:[%s3387 + $0xb8] sm:$0xf]
              %3482 = vst [vmem:[%s3388 + $0xb8] sm:$0xf] %v3481
              %v3483 = vld [vmem:[%s3387 + $0xbc] sm:$0xf]
              %3484 = vst [vmem:[%s3388 + $0xbc] sm:$0xf] %v3483
              %v3485 = vld [vmem:[%s3387 + $0xc0] sm:$0xf]
              %3486 = vst [vmem:[%s3388 + $0xc0] sm:$0xf] %v3485
            $region97: #{cnn_forward.3} parent=84 // loop_footer
              %s3386 = sadd.s32 1, %s3382
            $region98: #{cnn_forward.3} parent=84 // loop_footer_branch
              %3381 = sbr.rel target = $region94
            $region99: #{cnn_forward.3} parent=84 // loop_exit
              _
          $region85: #{cnn_forward.3} parent=69 // pred_fallthru
            _
        $region70: #{cnn_forward.3} parent=65 // pred_fallthru
          _
        // Predicated region
        $region71: #{cnn_forward.3} parent=65 // pred_check
          _
        $region72: #{cnn_forward.3} parent=65 // pred_check_branch
          %3262 = sbr.rel (0) target = $region74
        $region73: #{cnn_forward.3} parent=65 // pred_region
          loop: start=0, step=1, limit=1
          $region75: #{cnn_forward.3} parent=73 // loop_pre_header
            _
          $region76: #{cnn_forward.3} parent=73 // loop_header
            %s3265 = sphi 0, %s3269
            %p3266 = scmp.ge.s32.totalorder %s3265, 1
            %s3270 = sphi [#allocation3], [#allocation3]
            %s3271 = sphi %s4, %s4
          $region77: #{cnn_forward.3} parent=73 // loop_header_branch
            %3268 = sbr.rel (%p3266) target = $region81
          $region78: #{cnn_forward.3} parent=73 // loop_body
            %v3272 = vld [vmem:[%s3270] sm:$0xf]
            %3273 = vst [vmem:[%s3271] sm:$0xf] %v3272
            %v3274 = vld [vmem:[%s3270 + $0x4] sm:$0xf]
            %3275 = vst [vmem:[%s3271 + $0x4] sm:$0xf] %v3274
            %v3276 = vld [vmem:[%s3270 + $0x8] sm:$0xf]
            %3277 = vst [vmem:[%s3271 + $0x8] sm:$0xf] %v3276
            %v3278 = vld [vmem:[%s3270 + $0xc] sm:$0xf]
            %3279 = vst [vmem:[%s3271 + $0xc] sm:$0xf] %v3278
            %v3280 = vld [vmem:[%s3270 + $0x10] sm:$0xf]
            %3281 = vst [vmem:[%s3271 + $0x10] sm:$0xf] %v3280
            %v3282 = vld [vmem:[%s3270 + $0x14] sm:$0xf]
            %3283 = vst [vmem:[%s3271 + $0x14] sm:$0xf] %v3282
            %v3284 = vld [vmem:[%s3270 + $0x18] sm:$0xf]
            %3285 = vst [vmem:[%s3271 + $0x18] sm:$0xf] %v3284
            %v3286 = vld [vmem:[%s3270 + $0x1c] sm:$0xf]
            %3287 = vst [vmem:[%s3271 + $0x1c] sm:$0xf] %v3286
            %v3288 = vld [vmem:[%s3270 + $0x20] sm:$0xf]
            %3289 = vst [vmem:[%s3271 + $0x20] sm:$0xf] %v3288
            %v3290 = vld [vmem:[%s3270 + $0x24] sm:$0xf]
            %3291 = vst [vmem:[%s3271 + $0x24] sm:$0xf] %v3290
            %v3292 = vld [vmem:[%s3270 + $0x28] sm:$0xf]
            %3293 = vst [vmem:[%s3271 + $0x28] sm:$0xf] %v3292
            %v3294 = vld [vmem:[%s3270 + $0x2c] sm:$0xf]
            %3295 = vst [vmem:[%s3271 + $0x2c] sm:$0xf] %v3294
            %v3296 = vld [vmem:[%s3270 + $0x30] sm:$0xf]
            %3297 = vst [vmem:[%s3271 + $0x30] sm:$0xf] %v3296
            %v3298 = vld [vmem:[%s3270 + $0x34] sm:$0xf]
            %3299 = vst [vmem:[%s3271 + $0x34] sm:$0xf] %v3298
            %v3300 = vld [vmem:[%s3270 + $0x38] sm:$0xf]
            %3301 = vst [vmem:[%s3271 + $0x38] sm:$0xf] %v3300
            %v3302 = vld [vmem:[%s3270 + $0x3c] sm:$0xf]
            %3303 = vst [vmem:[%s3271 + $0x3c] sm:$0xf] %v3302
            %v3304 = vld [vmem:[%s3270 + $0x40] sm:$0xf]
            %3305 = vst [vmem:[%s3271 + $0x40] sm:$0xf] %v3304
            %v3306 = vld [vmem:[%s3270 + $0x44] sm:$0xf]
            %3307 = vst [vmem:[%s3271 + $0x44] sm:$0xf] %v3306
            %v3308 = vld [vmem:[%s3270 + $0x48] sm:$0xf]
            %3309 = vst [vmem:[%s3271 + $0x48] sm:$0xf] %v3308
            %v3310 = vld [vmem:[%s3270 + $0x4c] sm:$0xf]
            %3311 = vst [vmem:[%s3271 + $0x4c] sm:$0xf] %v3310
            %v3312 = vld [vmem:[%s3270 + $0x50] sm:$0xf]
            %3313 = vst [vmem:[%s3271 + $0x50] sm:$0xf] %v3312
            %v3314 = vld [vmem:[%s3270 + $0x54] sm:$0xf]
            %3315 = vst [vmem:[%s3271 + $0x54] sm:$0xf] %v3314
            %v3316 = vld [vmem:[%s3270 + $0x58] sm:$0xf]
            %3317 = vst [vmem:[%s3271 + $0x58] sm:$0xf] %v3316
            %v3318 = vld [vmem:[%s3270 + $0x5c] sm:$0xf]
            %3319 = vst [vmem:[%s3271 + $0x5c] sm:$0xf] %v3318
            %v3320 = vld [vmem:[%s3270 + $0x60] sm:$0xf]
            %3321 = vst [vmem:[%s3271 + $0x60] sm:$0xf] %v3320
            %v3322 = vld [vmem:[%s3270 + $0x64] sm:$0xf]
            %3323 = vst [vmem:[%s3271 + $0x64] sm:$0xf] %v3322
            %v3324 = vld [vmem:[%s3270 + $0x68] sm:$0xf]
            %3325 = vst [vmem:[%s3271 + $0x68] sm:$0xf] %v3324
            %v3326 = vld [vmem:[%s3270 + $0x6c] sm:$0xf]
            %3327 = vst [vmem:[%s3271 + $0x6c] sm:$0xf] %v3326
            %v3328 = vld [vmem:[%s3270 + $0x70] sm:$0xf]
            %3329 = vst [vmem:[%s3271 + $0x70] sm:$0xf] %v3328
            %v3330 = vld [vmem:[%s3270 + $0x74] sm:$0xf]
            %3331 = vst [vmem:[%s3271 + $0x74] sm:$0xf] %v3330
            %v3332 = vld [vmem:[%s3270 + $0x78] sm:$0xf]
            %3333 = vst [vmem:[%s3271 + $0x78] sm:$0xf] %v3332
            %v3334 = vld [vmem:[%s3270 + $0x7c] sm:$0xf]
            %3335 = vst [vmem:[%s3271 + $0x7c] sm:$0xf] %v3334
            %v3336 = vld [vmem:[%s3270 + $0x80] sm:$0xf]
            %3337 = vst [vmem:[%s3271 + $0x80] sm:$0xf] %v3336
            %v3338 = vld [vmem:[%s3270 + $0x84] sm:$0xf]
            %3339 = vst [vmem:[%s3271 + $0x84] sm:$0xf] %v3338
            %v3340 = vld [vmem:[%s3270 + $0x88] sm:$0xf]
            %3341 = vst [vmem:[%s3271 + $0x88] sm:$0xf] %v3340
            %v3342 = vld [vmem:[%s3270 + $0x8c] sm:$0xf]
            %3343 = vst [vmem:[%s3271 + $0x8c] sm:$0xf] %v3342
            %v3344 = vld [vmem:[%s3270 + $0x90] sm:$0xf]
            %3345 = vst [vmem:[%s3271 + $0x90] sm:$0xf] %v3344
            %v3346 = vld [vmem:[%s3270 + $0x94] sm:$0xf]
            %3347 = vst [vmem:[%s3271 + $0x94] sm:$0xf] %v3346
            %v3348 = vld [vmem:[%s3270 + $0x98] sm:$0xf]
            %3349 = vst [vmem:[%s3271 + $0x98] sm:$0xf] %v3348
            %v3350 = vld [vmem:[%s3270 + $0x9c] sm:$0xf]
            %3351 = vst [vmem:[%s3271 + $0x9c] sm:$0xf] %v3350
            %v3352 = vld [vmem:[%s3270 + $0xa0] sm:$0xf]
            %3353 = vst [vmem:[%s3271 + $0xa0] sm:$0xf] %v3352
            %v3354 = vld [vmem:[%s3270 + $0xa4] sm:$0xf]
            %3355 = vst [vmem:[%s3271 + $0xa4] sm:$0xf] %v3354
            %v3356 = vld [vmem:[%s3270 + $0xa8] sm:$0xf]
            %3357 = vst [vmem:[%s3271 + $0xa8] sm:$0xf] %v3356
            %v3358 = vld [vmem:[%s3270 + $0xac] sm:$0xf]
            %3359 = vst [vmem:[%s3271 + $0xac] sm:$0xf] %v3358
            %v3360 = vld [vmem:[%s3270 + $0xb0] sm:$0xf]
            %3361 = vst [vmem:[%s3271 + $0xb0] sm:$0xf] %v3360
            %v3362 = vld [vmem:[%s3270 + $0xb4] sm:$0xf]
            %3363 = vst [vmem:[%s3271 + $0xb4] sm:$0xf] %v3362
            %v3364 = vld [vmem:[%s3270 + $0xb8] sm:$0xf]
            %3365 = vst [vmem:[%s3271 + $0xb8] sm:$0xf] %v3364
            %v3366 = vld [vmem:[%s3270 + $0xbc] sm:$0xf]
            %3367 = vst [vmem:[%s3271 + $0xbc] sm:$0xf] %v3366
            %v3368 = vld [vmem:[%s3270 + $0xc0] sm:$0xf]
            %3369 = vst [vmem:[%s3271 + $0xc0] sm:$0xf] %v3368
          $region79: #{cnn_forward.3} parent=73 // loop_footer
            %s3269 = sadd.s32 1, %s3265
          $region80: #{cnn_forward.3} parent=73 // loop_footer_branch
            %3264 = sbr.rel target = $region76
          $region81: #{cnn_forward.3} parent=73 // loop_exit
            _
        $region74: #{cnn_forward.3} parent=65 // pred_fallthru
          _
      $region66: #{cnn_forward.3} parent=61 // pred_fallthru
        _
      %3487 = vnop
    $region62: #{cnn_forward.3} parent=1 // pred_fallthru
      _
    // Predicated region
    $region100: #{cnn_forward.3} parent=1 // pred_check
      _
    $region101: #{cnn_forward.3} parent=1 // pred_check_branch
      %3489 = sbr.rel (0) target = $region103
    $region102: #{cnn_forward.3} parent=1 // pred_region
      _
    $region103: #{cnn_forward.3} parent=1 // pred_fallthru
      _

// kernel: cnn_forward.4
$region0: #{cnn_forward.4}
  #allocation0 [shape = 'u32[]', space=smem, size = 0x4, offset = 0x4, fixed_abs, tag = 'smem constant byte address 0x4 - core index']
  #allocation1 [shape = 'u32[144,128]{1,0:T(1,128)}', space=vmem, size = 0x12000, scoped, tag = 'internal scratch']
  %s0 = inlined_call_operand.vmem [shape: bf16[4,98,144], index: 0, kind: input, shape index: {}]
  %s1 = inlined_call_operand.vmem [shape: bf16[144,32], index: 1, kind: input, shape index: {}]
  %s2 = inlined_call_operand.vmem [shape: f32[1,32], index: 2, kind: input, shape index: {}]
  %s3 = inlined_call_operand.vmem [shape: f32[1,32], index: 3, kind: input, shape index: {}]
  %s4 = inlined_call_operand.vmem [shape: bf16[98,32], index: 4, kind: output, shape index: {}]
  %s5 = sld [smem:[#allocation0]]
  $region101: #{cnn_forward.4} parent=0
    _
  %s7 = ssub.s32 1, %s5
  %s8 = scalar_select 0, %s7, %s5
  $region1: #{cnn_forward.4} parent=0
    #allocation2 [shape = 'u8[229376]{0}', space=vmem, size = 0x38000, scoped, tag = 'input window, operand 0, single buffered']
    #allocation3 [shape = 'u8[28672]{0}', space=vmem, size = 0x7000, scoped, tag = 'output window, operand 0, single buffered']
    // Predicated region
    $region2: #{cnn_forward.4} parent=1 // pred_check
      _
    $region3: #{cnn_forward.4} parent=1 // pred_check_branch
      %10 = sbr.rel (0) target = $region5
    $region4: #{cnn_forward.4} parent=1 // pred_region
      // Predicated region
      $region6: #{cnn_forward.4} parent=4 // pred_check
        _
      $region7: #{cnn_forward.4} parent=4 // pred_check_branch
        %12 = sbr.rel (0) target = $region9
      $region8: #{cnn_forward.4} parent=4 // pred_region
        // Predicated region
        $region10: #{cnn_forward.4} parent=8 // pred_check
          _
        $region11: #{cnn_forward.4} parent=8 // pred_check_branch
          %14 = sbr.rel (0) target = $region13
        $region12: #{cnn_forward.4} parent=8 // pred_region
          // Predicated region
          $region25: #{cnn_forward.4} parent=12 // pred_check
            _
          $region26: #{cnn_forward.4} parent=12 // pred_check_branch
            %131 = sbr.rel (0) target = $region28
          $region27: #{cnn_forward.4} parent=12 // pred_region
            loop: start=0, step=1, limit=1
            $region29: #{cnn_forward.4} parent=27 // loop_pre_header
              _
            $region30: #{cnn_forward.4} parent=27 // loop_header
              %s133 = sphi 0, %s137
              %p134 = scmp.ge.s32.totalorder %s133, 1
              %s138 = sphi %s0, %s0
              %s139 = sphi [#allocation2], [#allocation2]
            $region31: #{cnn_forward.4} parent=27 // loop_header_branch
              %136 = sbr.rel (%p134) target = $region35
            $region32: #{cnn_forward.4} parent=27 // loop_body
              %v140 = vld [vmem:[%s138] sm:$0xff]
              %141 = vst [vmem:[%s139] sm:$0xff] %v140
              %v142 = vld [vmem:[%s138 + $0x8] sm:$0xff]
              %143 = vst [vmem:[%s139 + $0x8] sm:$0xff] %v142
              %v144 = vld [vmem:[%s138 + $0x10] sm:$0xff]
              %145 = vst [vmem:[%s139 + $0x10] sm:$0xff] %v144
              %v146 = vld [vmem:[%s138 + $0x18] sm:$0xff]
              %147 = vst [vmem:[%s139 + $0x18] sm:$0xff] %v146
              %v148 = vld [vmem:[%s138 + $0x20] sm:$0xff]
              %149 = vst [vmem:[%s139 + $0x20] sm:$0xff] %v148
              %v150 = vld [vmem:[%s138 + $0x28] sm:$0xff]
              %151 = vst [vmem:[%s139 + $0x28] sm:$0xff] %v150
              %v152 = vld [vmem:[%s138 + $0x30] sm:$0xff]
              %153 = vst [vmem:[%s139 + $0x30] sm:$0xff] %v152
              %v154 = vld [vmem:[%s138 + $0x38] sm:$0xff]
              %155 = vst [vmem:[%s139 + $0x38] sm:$0xff] %v154
              %v156 = vld [vmem:[%s138 + $0x40] sm:$0xff]
              %157 = vst [vmem:[%s139 + $0x40] sm:$0xff] %v156
              %v158 = vld [vmem:[%s138 + $0x48] sm:$0xff]
              %159 = vst [vmem:[%s139 + $0x48] sm:$0xff] %v158
              %v160 = vld [vmem:[%s138 + $0x50] sm:$0xff]
              %161 = vst [vmem:[%s139 + $0x50] sm:$0xff] %v160
              %v162 = vld [vmem:[%s138 + $0x58] sm:$0xff]
              %163 = vst [vmem:[%s139 + $0x58] sm:$0xff] %v162
              %v164 = vld [vmem:[%s138 + $0x60] sm:$0xff]
              %165 = vst [vmem:[%s139 + $0x60] sm:$0xff] %v164
              %v166 = vld [vmem:[%s138 + $0x68] sm:$0xff]
              %167 = vst [vmem:[%s139 + $0x70] sm:$0xff] %v166
              %v168 = vld [vmem:[%s138 + $0x70] sm:$0xff]
              %169 = vst [vmem:[%s139 + $0x78] sm:$0xff] %v168
              %v170 = vld [vmem:[%s138 + $0x78] sm:$0xff]
              %171 = vst [vmem:[%s139 + $0x80] sm:$0xff] %v170
              %v172 = vld [vmem:[%s138 + $0x80] sm:$0xff]
              %173 = vst [vmem:[%s139 + $0x88] sm:$0xff] %v172
              %v174 = vld [vmem:[%s138 + $0x88] sm:$0xff]
              %175 = vst [vmem:[%s139 + $0x90] sm:$0xff] %v174
              %v176 = vld [vmem:[%s138 + $0x90] sm:$0xff]
              %177 = vst [vmem:[%s139 + $0x98] sm:$0xff] %v176
              %v178 = vld [vmem:[%s138 + $0x98] sm:$0xff]
              %179 = vst [vmem:[%s139 + $0xa0] sm:$0xff] %v178
              %v180 = vld [vmem:[%s138 + $0xa0] sm:$0xff]
              %181 = vst [vmem:[%s139 + $0xa8] sm:$0xff] %v180
              %v182 = vld [vmem:[%s138 + $0xa8] sm:$0xff]
              %183 = vst [vmem:[%s139 + $0xb0] sm:$0xff] %v182
              %v184 = vld [vmem:[%s138 + $0xb0] sm:$0xff]
              %185 = vst [vmem:[%s139 + $0xb8] sm:$0xff] %v184
              %v186 = vld [vmem:[%s138 + $0xb8] sm:$0xff]
              %187 = vst [vmem:[%s139 + $0xc0] sm:$0xff] %v186
              %v188 = vld [vmem:[%s138 + $0xc0] sm:$0xff]
              %189 = vst [vmem:[%s139 + $0xc8] sm:$0xff] %v188
              %v190 = vld [vmem:[%s138 + $0xc8] sm:$0xff]
              %191 = vst [vmem:[%s139 + $0xd0] sm:$0xff] %v190
              %v192 = vld [vmem:[%s138 + $0xd0] sm:$0xff]
              %193 = vst [vmem:[%s139 + $0xe0] sm:$0xff] %v192
              %v194 = vld [vmem:[%s138 + $0xd8] sm:$0xff]
              %195 = vst [vmem:[%s139 + $0xe8] sm:$0xff] %v194
              %v196 = vld [vmem:[%s138 + $0xe0] sm:$0xff]
              %197 = vst [vmem:[%s139 + $0xf0] sm:$0xff] %v196
              %v198 = vld [vmem:[%s138 + $0xe8] sm:$0xff]
              %199 = vst [vmem:[%s139 + $0xf8] sm:$0xff] %v198
              %v200 = vld [vmem:[%s138 + $0xf0] sm:$0xff]
              %201 = vst [vmem:[%s139 + $0x100] sm:$0xff] %v200
              %v202 = vld [vmem:[%s138 + $0xf8] sm:$0xff]
              %203 = vst [vmem:[%s139 + $0x108] sm:$0xff] %v202
              %v204 = vld [vmem:[%s138 + $0x100] sm:$0xff]
              %205 = vst [vmem:[%s139 + $0x110] sm:$0xff] %v204
              %v206 = vld [vmem:[%s138 + $0x108] sm:$0xff]
              %207 = vst [vmem:[%s139 + $0x118] sm:$0xff] %v206
              %v208 = vld [vmem:[%s138 + $0x110] sm:$0xff]
              %209 = vst [vmem:[%s139 + $0x120] sm:$0xff] %v208
              %v210 = vld [vmem:[%s138 + $0x118] sm:$0xff]
              %211 = vst [vmem:[%s139 + $0x128] sm:$0xff] %v210
              %v212 = vld [vmem:[%s138 + $0x120] sm:$0xff]
              %213 = vst [vmem:[%s139 + $0x130] sm:$0xff] %v212
              %v214 = vld [vmem:[%s138 + $0x128] sm:$0xff]
              %215 = vst [vmem:[%s139 + $0x138] sm:$0xff] %v214
              %v216 = vld [vmem:[%s138 + $0x130] sm:$0xff]
              %217 = vst [vmem:[%s139 + $0x140] sm:$0xff] %v216
              %v218 = vld [vmem:[%s138 + $0x138] sm:$0xff]
              %219 = vst [vmem:[%s139 + $0x150] sm:$0xff] %v218
              %v220 = vld [vmem:[%s138 + $0x140] sm:$0xff]
              %221 = vst [vmem:[%s139 + $0x158] sm:$0xff] %v220
              %v222 = vld [vmem:[%s138 + $0x148] sm:$0xff]
              %223 = vst [vmem:[%s139 + $0x160] sm:$0xff] %v222
              %v224 = vld [vmem:[%s138 + $0x150] sm:$0xff]
              %225 = vst [vmem:[%s139 + $0x168] sm:$0xff] %v224
              %v226 = vld [vmem:[%s138 + $0x158] sm:$0xff]
              %227 = vst [vmem:[%s139 + $0x170] sm:$0xff] %v226
              %v228 = vld [vmem:[%s138 + $0x160] sm:$0xff]
              %229 = vst [vmem:[%s139 + $0x178] sm:$0xff] %v228
              %v230 = vld [vmem:[%s138 + $0x168] sm:$0xff]
              %231 = vst [vmem:[%s139 + $0x180] sm:$0xff] %v230
              %v232 = vld [vmem:[%s138 + $0x170] sm:$0xff]
              %233 = vst [vmem:[%s139 + $0x188] sm:$0xff] %v232
              %v234 = vld [vmem:[%s138 + $0x178] sm:$0xff]
              %235 = vst [vmem:[%s139 + $0x190] sm:$0xff] %v234
              %v236 = vld [vmem:[%s138 + $0x180] sm:$0xff]
              %237 = vst [vmem:[%s139 + $0x198] sm:$0xff] %v236
              %v238 = vld [vmem:[%s138 + $0x188] sm:$0xff]
              %239 = vst [vmem:[%s139 + $0x1a0] sm:$0xff] %v238
              %v240 = vld [vmem:[%s138 + $0x190] sm:$0xff]
              %241 = vst [vmem:[%s139 + $0x1a8] sm:$0xff] %v240
              %v242 = vld [vmem:[%s138 + $0x198] sm:$0xff]
              %243 = vst [vmem:[%s139 + $0x1b0] sm:$0xff] %v242
            $region33: #{cnn_forward.4} parent=27 // loop_footer
              %s137 = sadd.s32 1, %s133
            $region34: #{cnn_forward.4} parent=27 // loop_footer_branch
              %132 = sbr.rel target = $region30
            $region35: #{cnn_forward.4} parent=27 // loop_exit
              _
          $region28: #{cnn_forward.4} parent=12 // pred_fallthru
            _
          // Predicated region
          $region36: #{cnn_forward.4} parent=12 // pred_check
            _
          $region37: #{cnn_forward.4} parent=12 // pred_check_branch
            %245 = sbr.rel target = $region39
          $region38: #{cnn_forward.4} parent=12 // pred_region
            _
          $region39: #{cnn_forward.4} parent=12 // pred_fallthru
            _
        $region13: #{cnn_forward.4} parent=8 // pred_fallthru
          _
        // Predicated region
        $region14: #{cnn_forward.4} parent=8 // pred_check
          _
        $region15: #{cnn_forward.4} parent=8 // pred_check_branch
          %16 = sbr.rel target = $region17
        $region16: #{cnn_forward.4} parent=8 // pred_region
          loop: start=0, step=1, limit=1
          $region18: #{cnn_forward.4} parent=16 // loop_pre_header
            _
          $region19: #{cnn_forward.4} parent=16 // loop_header
            %s19 = sphi 0, %s23
            %p20 = scmp.ge.s32.totalorder %s19, 1
            %s24 = sphi %s0, %s0
            %s25 = sphi [#allocation2], [#allocation2]
          $region20: #{cnn_forward.4} parent=16 // loop_header_branch
            %22 = sbr.rel (%p20) target = $region24
          $region21: #{cnn_forward.4} parent=16 // loop_body
            %v26 = vld [vmem:[%s24] sm:$0xff]
            %27 = vst [vmem:[%s25] sm:$0xff] %v26
            %v28 = vld [vmem:[%s24 + $0x8] sm:$0xff]
            %29 = vst [vmem:[%s25 + $0x8] sm:$0xff] %v28
            %v30 = vld [vmem:[%s24 + $0x10] sm:$0xff]
            %31 = vst [vmem:[%s25 + $0x10] sm:$0xff] %v30
            %v32 = vld [vmem:[%s24 + $0x18] sm:$0xff]
            %33 = vst [vmem:[%s25 + $0x18] sm:$0xff] %v32
            %v34 = vld [vmem:[%s24 + $0x20] sm:$0xff]
            %35 = vst [vmem:[%s25 + $0x20] sm:$0xff] %v34
            %v36 = vld [vmem:[%s24 + $0x28] sm:$0xff]
            %37 = vst [vmem:[%s25 + $0x28] sm:$0xff] %v36
            %v38 = vld [vmem:[%s24 + $0x30] sm:$0xff]
            %39 = vst [vmem:[%s25 + $0x30] sm:$0xff] %v38
            %v40 = vld [vmem:[%s24 + $0x38] sm:$0xff]
            %41 = vst [vmem:[%s25 + $0x38] sm:$0xff] %v40
            %v42 = vld [vmem:[%s24 + $0x40] sm:$0xff]
            %43 = vst [vmem:[%s25 + $0x40] sm:$0xff] %v42
            %v44 = vld [vmem:[%s24 + $0x48] sm:$0xff]
            %45 = vst [vmem:[%s25 + $0x48] sm:$0xff] %v44
            %v46 = vld [vmem:[%s24 + $0x50] sm:$0xff]
            %47 = vst [vmem:[%s25 + $0x50] sm:$0xff] %v46
            %v48 = vld [vmem:[%s24 + $0x58] sm:$0xff]
            %49 = vst [vmem:[%s25 + $0x58] sm:$0xff] %v48
            %v50 = vld [vmem:[%s24 + $0x60] sm:$0xff]
            %51 = vst [vmem:[%s25 + $0x60] sm:$0xff] %v50
            %v52 = vld [vmem:[%s24 + $0x68] sm:$0xff]
            %53 = vst [vmem:[%s25 + $0x70] sm:$0xff] %v52
            %v54 = vld [vmem:[%s24 + $0x70] sm:$0xff]
            %55 = vst [vmem:[%s25 + $0x78] sm:$0xff] %v54
            %v56 = vld [vmem:[%s24 + $0x78] sm:$0xff]
            %57 = vst [vmem:[%s25 + $0x80] sm:$0xff] %v56
            %v58 = vld [vmem:[%s24 + $0x80] sm:$0xff]
            %59 = vst [vmem:[%s25 + $0x88] sm:$0xff] %v58
            %v60 = vld [vmem:[%s24 + $0x88] sm:$0xff]
            %61 = vst [vmem:[%s25 + $0x90] sm:$0xff] %v60
            %v62 = vld [vmem:[%s24 + $0x90] sm:$0xff]
            %63 = vst [vmem:[%s25 + $0x98] sm:$0xff] %v62
            %v64 = vld [vmem:[%s24 + $0x98] sm:$0xff]
            %65 = vst [vmem:[%s25 + $0xa0] sm:$0xff] %v64
            %v66 = vld [vmem:[%s24 + $0xa0] sm:$0xff]
            %67 = vst [vmem:[%s25 + $0xa8] sm:$0xff] %v66
            %v68 = vld [vmem:[%s24 + $0xa8] sm:$0xff]
            %69 = vst [vmem:[%s25 + $0xb0] sm:$0xff] %v68
            %v70 = vld [vmem:[%s24 + $0xb0] sm:$0xff]
            %71 = vst [vmem:[%s25 + $0xb8] sm:$0xff] %v70
            %v72 = vld [vmem:[%s24 + $0xb8] sm:$0xff]
            %73 = vst [vmem:[%s25 + $0xc0] sm:$0xff] %v72
            %v74 = vld [vmem:[%s24 + $0xc0] sm:$0xff]
            %75 = vst [vmem:[%s25 + $0xc8] sm:$0xff] %v74
            %v76 = vld [vmem:[%s24 + $0xc8] sm:$0xff]
            %77 = vst [vmem:[%s25 + $0xd0] sm:$0xff] %v76
            %v78 = vld [vmem:[%s24 + $0xd0] sm:$0xff]
            %79 = vst [vmem:[%s25 + $0xe0] sm:$0xff] %v78
            %v80 = vld [vmem:[%s24 + $0xd8] sm:$0xff]
            %81 = vst [vmem:[%s25 + $0xe8] sm:$0xff] %v80
            %v82 = vld [vmem:[%s24 + $0xe0] sm:$0xff]
            %83 = vst [vmem:[%s25 + $0xf0] sm:$0xff] %v82
            %v84 = vld [vmem:[%s24 + $0xe8] sm:$0xff]
            %85 = vst [vmem:[%s25 + $0xf8] sm:$0xff] %v84
            %v86 = vld [vmem:[%s24 + $0xf0] sm:$0xff]
            %87 = vst [vmem:[%s25 + $0x100] sm:$0xff] %v86
            %v88 = vld [vmem:[%s24 + $0xf8] sm:$0xff]
            %89 = vst [vmem:[%s25 + $0x108] sm:$0xff] %v88
            %v90 = vld [vmem:[%s24 + $0x100] sm:$0xff]
            %91 = vst [vmem:[%s25 + $0x110] sm:$0xff] %v90
            %v92 = vld [vmem:[%s24 + $0x108] sm:$0xff]
            %93 = vst [vmem:[%s25 + $0x118] sm:$0xff] %v92
            %v94 = vld [vmem:[%s24 + $0x110] sm:$0xff]
            %95 = vst [vmem:[%s25 + $0x120] sm:$0xff] %v94
            %v96 = vld [vmem:[%s24 + $0x118] sm:$0xff]
            %97 = vst [vmem:[%s25 + $0x128] sm:$0xff] %v96
            %v98 = vld [vmem:[%s24 + $0x120] sm:$0xff]
            %99 = vst [vmem:[%s25 + $0x130] sm:$0xff] %v98
            %v100 = vld [vmem:[%s24 + $0x128] sm:$0xff]
            %101 = vst [vmem:[%s25 + $0x138] sm:$0xff] %v100
            %v102 = vld [vmem:[%s24 + $0x130] sm:$0xff]
            %103 = vst [vmem:[%s25 + $0x140] sm:$0xff] %v102
            %v104 = vld [vmem:[%s24 + $0x138] sm:$0xff]
            %105 = vst [vmem:[%s25 + $0x150] sm:$0xff] %v104
            %v106 = vld [vmem:[%s24 + $0x140] sm:$0xff]
            %107 = vst [vmem:[%s25 + $0x158] sm:$0xff] %v106
            %v108 = vld [vmem:[%s24 + $0x148] sm:$0xff]
            %109 = vst [vmem:[%s25 + $0x160] sm:$0xff] %v108
            %v110 = vld [vmem:[%s24 + $0x150] sm:$0xff]
            %111 = vst [vmem:[%s25 + $0x168] sm:$0xff] %v110
            %v112 = vld [vmem:[%s24 + $0x158] sm:$0xff]
            %113 = vst [vmem:[%s25 + $0x170] sm:$0xff] %v112
            %v114 = vld [vmem:[%s24 + $0x160] sm:$0xff]
            %115 = vst [vmem:[%s25 + $0x178] sm:$0xff] %v114
            %v116 = vld [vmem:[%s24 + $0x168] sm:$0xff]
            %117 = vst [vmem:[%s25 + $0x180] sm:$0xff] %v116
            %v118 = vld [vmem:[%s24 + $0x170] sm:$0xff]
            %119 = vst [vmem:[%s25 + $0x188] sm:$0xff] %v118
            %v120 = vld [vmem:[%s24 + $0x178] sm:$0xff]
            %121 = vst [vmem:[%s25 + $0x190] sm:$0xff] %v120
            %v122 = vld [vmem:[%s24 + $0x180] sm:$0xff]
            %123 = vst [vmem:[%s25 + $0x198] sm:$0xff] %v122
            %v124 = vld [vmem:[%s24 + $0x188] sm:$0xff]
            %125 = vst [vmem:[%s25 + $0x1a0] sm:$0xff] %v124
            %v126 = vld [vmem:[%s24 + $0x190] sm:$0xff]
            %127 = vst [vmem:[%s25 + $0x1a8] sm:$0xff] %v126
            %v128 = vld [vmem:[%s24 + $0x198] sm:$0xff]
            %129 = vst [vmem:[%s25 + $0x1b0] sm:$0xff] %v128
          $region22: #{cnn_forward.4} parent=16 // loop_footer
            %s23 = sadd.s32 1, %s19
          $region23: #{cnn_forward.4} parent=16 // loop_footer_branch
            %18 = sbr.rel target = $region19
          $region24: #{cnn_forward.4} parent=16 // loop_exit
            _
        $region17: #{cnn_forward.4} parent=8 // pred_fallthru
          _
      $region9: #{cnn_forward.4} parent=4 // pred_fallthru
        _
      %246 = vnop
    $region5: #{cnn_forward.4} parent=1 // pred_fallthru
      _
    // Predicated region
    $region40: #{cnn_forward.4} parent=1 // pred_check
      _
    $region41: #{cnn_forward.4} parent=1 // pred_check_branch
      %248 = sbr.rel (0) target = $region43
    $region42: #{cnn_forward.4} parent=1 // pred_region
      _
    $region43: #{cnn_forward.4} parent=1 // pred_fallthru
      _
    // Predicated region
    $region44: #{cnn_forward.4} parent=1 // pred_check
      _
    $region45: #{cnn_forward.4} parent=1 // pred_check_branch
      %250 = sbr.rel (0) target = $region47
    $region46: #{cnn_forward.4} parent=1 // pred_region
      _
    $region47: #{cnn_forward.4} parent=1 // pred_fallthru
      _
    // Predicated region
    $region48: #{cnn_forward.4} parent=1 // pred_check
      _
    $region49: #{cnn_forward.4} parent=1 // pred_check_branch
      %252 = sbr.rel (0) target = $region51
    $region50: #{cnn_forward.4} parent=1 // pred_region
      _
    $region51: #{cnn_forward.4} parent=1 // pred_fallthru
      _
    // Predicated region
    $region52: #{cnn_forward.4} parent=1 // pred_check
      _
    $region53: #{cnn_forward.4} parent=1 // pred_check_branch
      %254 = sbr.rel (0) target = $region55
    $region54: #{cnn_forward.4} parent=1 // pred_region
      _
    $region55: #{cnn_forward.4} parent=1 // pred_fallthru
      _
    %v256 = vld [vmem:[#allocation2] sm:$0xff]
    %v257 = vld [vmem:[#allocation2 + $0x8] sm:$0xff]
    %v258 = vld [vmem:[#allocation2 + $0x10] sm:$0xff]
    %v259 = vld [vmem:[#allocation2 + $0x18] sm:$0xff]
    %v260 = vld [vmem:[#allocation2 + $0x20] sm:$0xff]
    %v261 = vld [vmem:[#allocation2 + $0x28] sm:$0xff]
    %v262 = vld [vmem:[#allocation2 + $0x30] sm:$0xff]
    %v263 = vld [vmem:[#allocation2 + $0x38] sm:$0xff]
    %v264 = vld [vmem:[#allocation2 + $0x40] sm:$0xff]
    %v265 = vld [vmem:[#allocation2 + $0x48] sm:$0xff]
    %v266 = vld [vmem:[#allocation2 + $0x50] sm:$0xff]
    %v267 = vld [vmem:[#allocation2 + $0x58] sm:$0xff]
    %v268 = vld [vmem:[#allocation2 + $0x60] sm:$0xff]
    %v269 = vld [vmem:[#allocation2 + $0x68] sm:$0xff]
    %s270 = scalar_lea.vmem [#allocation2], 112
    %v271 = vld [vmem:[%s270] sm:$0xff]
    %v272 = vld [vmem:[%s270 + $0x8] sm:$0xff]
    %v273 = vld [vmem:[%s270 + $0x10] sm:$0xff]
    %v274 = vld [vmem:[%s270 + $0x18] sm:$0xff]
    %v275 = vld [vmem:[%s270 + $0x20] sm:$0xff]
    %v276 = vld [vmem:[%s270 + $0x28] sm:$0xff]
    %v277 = vld [vmem:[%s270 + $0x30] sm:$0xff]
    %v278 = vld [vmem:[%s270 + $0x38] sm:$0xff]
    %v279 = vld [vmem:[%s270 + $0x40] sm:$0xff]
    %v280 = vld [vmem:[%s270 + $0x48] sm:$0xff]
    %v281 = vld [vmem:[%s270 + $0x50] sm:$0xff]
    %v282 = vld [vmem:[%s270 + $0x58] sm:$0xff]
    %v283 = vld [vmem:[%s270 + $0x60] sm:$0xff]
    %v284 = vld [vmem:[%s270 + $0x68] sm:$0xff]
    %s285 = scalar_lea.vmem [#allocation2], 224
    %v286 = vld [vmem:[%s285] sm:$0xff]
    %v287 = vld [vmem:[%s285 + $0x8] sm:$0xff]
    %v288 = vld [vmem:[%s285 + $0x10] sm:$0xff]
    %v289 = vld [vmem:[%s285 + $0x18] sm:$0xff]
    %v290 = vld [vmem:[%s285 + $0x20] sm:$0xff]
    %v291 = vld [vmem:[%s285 + $0x28] sm:$0xff]
    %v292 = vld [vmem:[%s285 + $0x30] sm:$0xff]
    %v293 = vld [vmem:[%s285 + $0x38] sm:$0xff]
    %v294 = vld [vmem:[%s285 + $0x40] sm:$0xff]
    %v295 = vld [vmem:[%s285 + $0x48] sm:$0xff]
    %v296 = vld [vmem:[%s285 + $0x50] sm:$0xff]
    %v297 = vld [vmem:[%s285 + $0x58] sm:$0xff]
    %v298 = vld [vmem:[%s285 + $0x60] sm:$0xff]
    %v299 = vld [vmem:[%s285 + $0x68] sm:$0xff]
    %s300 = scalar_lea.vmem [#allocation2], 336
    %v301 = vld [vmem:[%s300] sm:$0xff]
    %v302 = vld [vmem:[%s300 + $0x8] sm:$0xff]
    %v303 = vld [vmem:[%s300 + $0x10] sm:$0xff]
    %v304 = vld [vmem:[%s300 + $0x18] sm:$0xff]
    %v305 = vld [vmem:[%s300 + $0x20] sm:$0xff]
    %v306 = vld [vmem:[%s300 + $0x28] sm:$0xff]
    %v307 = vld [vmem:[%s300 + $0x30] sm:$0xff]
    %v308 = vld [vmem:[%s300 + $0x38] sm:$0xff]
    %v309 = vld [vmem:[%s300 + $0x40] sm:$0xff]
    %v310 = vld [vmem:[%s300 + $0x48] sm:$0xff]
    %v311 = vld [vmem:[%s300 + $0x50] sm:$0xff]
    %v312 = vld [vmem:[%s300 + $0x58] sm:$0xff]
    %v313 = vld [vmem:[%s300 + $0x60] sm:$0xff]
    %v314 = vld [vmem:[%s300 + $0x68] sm:$0xff]
    %v329 = vunpack.c.l.b16 %v256
    %v330 = vunpack.c.h.b16 %v256
    %v331 = vunpack.c.l.b16 %v257
    %v332 = vunpack.c.h.b16 %v257
    %v333 = vunpack.c.l.b16 %v258
    %v334 = vunpack.c.h.b16 %v258
    %v335 = vunpack.c.l.b16 %v259
    %v336 = vunpack.c.h.b16 %v259
    %v337 = vunpack.c.l.b16 %v260
    %v338 = vunpack.c.h.b16 %v260
    %v339 = vunpack.c.l.b16 %v261
    %v340 = vunpack.c.h.b16 %v261
    %v341 = vunpack.c.l.b16 %v262
    %v342 = vunpack.c.h.b16 %v262
    %v343 = vunpack.c.l.b16 %v263
    %v344 = vunpack.c.h.b16 %v263
    %v345 = vunpack.c.l.b16 %v264
    %v346 = vunpack.c.h.b16 %v264
    %v347 = vunpack.c.l.b16 %v265
    %v348 = vunpack.c.h.b16 %v265
    %v349 = vunpack.c.l.b16 %v266
    %v350 = vunpack.c.h.b16 %v266
    %v351 = vunpack.c.l.b16 %v267
    %v352 = vunpack.c.h.b16 %v267
    %v353 = vunpack.c.l.b16 %v268
    %v354 = vunpack.c.h.b16 %v268
    %v355 = vunpack.c.l.b16 %v269
    %v356 = vunpack.c.h.b16 %v269
    %v357 = vpack.c.b16 %v331, %v329
    %v358 = vpack.c.b16 %v332, %v330
    %v359 = vpack.c.b16 %v335, %v333
    %v360 = vpack.c.b16 %v336, %v334
    %v361 = vpack.c.b16 %v339, %v337
    %v362 = vpack.c.b16 %v340, %v338
    %v363 = vpack.c.b16 %v343, %v341
    %v364 = vpack.c.b16 %v344, %v342
    %v365 = vpack.c.b16 %v347, %v345
    %v366 = vpack.c.b16 %v348, %v346
    %v367 = vpack.c.b16 %v351, %v349
    %v368 = vpack.c.b16 %v352, %v350
    %v369 = vpack.c.b16 %v355, %v353
    %v370 = vpack.c.b16 %v356, %v354
    %v392 = vunpack.c.l.b16 %v271
    %v393 = vunpack.c.h.b16 %v271
    %v394 = vunpack.c.l.b16 %v272
    %v395 = vunpack.c.h.b16 %v272
    %v396 = vunpack.c.l.b16 %v273
    %v397 = vunpack.c.h.b16 %v273
    %v398 = vunpack.c.l.b16 %v274
    %v399 = vunpack.c.h.b16 %v274
    %v400 = vunpack.c.l.b16 %v275
    %v401 = vunpack.c.h.b16 %v275
    %v402 = vunpack.c.l.b16 %v276
    %v403 = vunpack.c.h.b16 %v276
    %v404 = vunpack.c.l.b16 %v277
    %v405 = vunpack.c.h.b16 %v277
    %v406 = vunpack.c.l.b16 %v278
    %v407 = vunpack.c.h.b16 %v278
    %v408 = vunpack.c.l.b16 %v279
    %v409 = vunpack.c.h.b16 %v279
    %v410 = vunpack.c.l.b16 %v280
    %v411 = vunpack.c.h.b16 %v280
    %v412 = vunpack.c.l.b16 %v281
    %v413 = vunpack.c.h.b16 %v281
    %v414 = vunpack.c.l.b16 %v282
    %v415 = vunpack.c.h.b16 %v282
    %v416 = vunpack.c.l.b16 %v283
    %v417 = vunpack.c.h.b16 %v283
    %v418 = vunpack.c.l.b16 %v284
    %v419 = vunpack.c.h.b16 %v284
    %v420 = vpack.c.b16 %v394, %v392
    %v421 = vpack.c.b16 %v395, %v393
    %v422 = vpack.c.b16 %v398, %v396
    %v423 = vpack.c.b16 %v399, %v397
    %v424 = vpack.c.b16 %v402, %v400
    %v425 = vpack.c.b16 %v403, %v401
    %v426 = vpack.c.b16 %v406, %v404
    %v427 = vpack.c.b16 %v407, %v405
    %v428 = vpack.c.b16 %v410, %v408
    %v429 = vpack.c.b16 %v411, %v409
    %v430 = vpack.c.b16 %v414, %v412
    %v431 = vpack.c.b16 %v415, %v413
    %v432 = vpack.c.b16 %v418, %v416
    %v433 = vpack.c.b16 %v419, %v417
    %v455 = vunpack.c.l.b16 %v286
    %v456 = vunpack.c.h.b16 %v286
    %v457 = vunpack.c.l.b16 %v287
    %v458 = vunpack.c.h.b16 %v287
    %v459 = vunpack.c.l.b16 %v288
    %v460 = vunpack.c.h.b16 %v288
    %v461 = vunpack.c.l.b16 %v289
    %v462 = vunpack.c.h.b16 %v289
    %v463 = vunpack.c.l.b16 %v290
    %v464 = vunpack.c.h.b16 %v290
    %v465 = vunpack.c.l.b16 %v291
    %v466 = vunpack.c.h.b16 %v291
    %v467 = vunpack.c.l.b16 %v292
    %v468 = vunpack.c.h.b16 %v292
    %v469 = vunpack.c.l.b16 %v293
    %v470 = vunpack.c.h.b16 %v293
    %v471 = vunpack.c.l.b16 %v294
    %v472 = vunpack.c.h.b16 %v294
    %v473 = vunpack.c.l.b16 %v295
    %v474 = vunpack.c.h.b16 %v295
    %v475 = vunpack.c.l.b16 %v296
    %v476 = vunpack.c.h.b16 %v296
    %v477 = vunpack.c.l.b16 %v297
    %v478 = vunpack.c.h.b16 %v297
    %v479 = vunpack.c.l.b16 %v298
    %v480 = vunpack.c.h.b16 %v298
    %v481 = vunpack.c.l.b16 %v299
    %v482 = vunpack.c.h.b16 %v299
    %v483 = vpack.c.b16 %v457, %v455
    %v484 = vpack.c.b16 %v458, %v456
    %v485 = vpack.c.b16 %v461, %v459
    %v486 = vpack.c.b16 %v462, %v460
    %v487 = vpack.c.b16 %v465, %v463
    %v488 = vpack.c.b16 %v466, %v464
    %v489 = vpack.c.b16 %v469, %v467
    %v490 = vpack.c.b16 %v470, %v468
    %v491 = vpack.c.b16 %v473, %v471
    %v492 = vpack.c.b16 %v474, %v472
    %v493 = vpack.c.b16 %v477, %v475
    %v494 = vpack.c.b16 %v478, %v476
    %v495 = vpack.c.b16 %v481, %v479
    %v496 = vpack.c.b16 %v482, %v480
    %v518 = vunpack.c.l.b16 %v301
    %v519 = vunpack.c.h.b16 %v301
    %v520 = vunpack.c.l.b16 %v302
    %v521 = vunpack.c.h.b16 %v302
    %v522 = vunpack.c.l.b16 %v303
    %v523 = vunpack.c.h.b16 %v303
    %v524 = vunpack.c.l.b16 %v304
    %v525 = vunpack.c.h.b16 %v304
    %v526 = vunpack.c.l.b16 %v305
    %v527 = vunpack.c.h.b16 %v305
    %v528 = vunpack.c.l.b16 %v306
    %v529 = vunpack.c.h.b16 %v306
    %v530 = vunpack.c.l.b16 %v307
    %v531 = vunpack.c.h.b16 %v307
    %v532 = vunpack.c.l.b16 %v308
    %v533 = vunpack.c.h.b16 %v308
    %v534 = vunpack.c.l.b16 %v309
    %v535 = vunpack.c.h.b16 %v309
    %v536 = vunpack.c.l.b16 %v310
    %v537 = vunpack.c.h.b16 %v310
    %v538 = vunpack.c.l.b16 %v311
    %v539 = vunpack.c.h.b16 %v311
    %v540 = vunpack.c.l.b16 %v312
    %v541 = vunpack.c.h.b16 %v312
    %v542 = vunpack.c.l.b16 %v313
    %v543 = vunpack.c.h.b16 %v313
    %v544 = vunpack.c.l.b16 %v314
    %v545 = vunpack.c.h.b16 %v314
    %v546 = vpack.c.b16 %v520, %v518
    %v547 = vpack.c.b16 %v521, %v519
    %v548 = vpack.c.b16 %v524, %v522
    %v549 = vpack.c.b16 %v525, %v523
    %v550 = vpack.c.b16 %v528, %v526
    %v551 = vpack.c.b16 %v529, %v527
    %v552 = vpack.c.b16 %v532, %v530
    %v553 = vpack.c.b16 %v533, %v531
    %v554 = vpack.c.b16 %v536, %v534
    %v555 = vpack.c.b16 %v537, %v535
    %v556 = vpack.c.b16 %v540, %v538
    %v557 = vpack.c.b16 %v541, %v539
    %v558 = vpack.c.b16 %v544, %v542
    %v559 = vpack.c.b16 %v545, %v543
    %v567 = vld [vmem:[%s1] sm:$0xf]
    %v568 = vld [vmem:[%s1 + $0x4] sm:$0xf]
    %v569 = vld [vmem:[%s1 + $0x8] sm:$0xf]
    %v570 = vld [vmem:[%s1 + $0xc] sm:$0xf]
    %v571 = vld [vmem:[%s1 + $0x10] sm:$0xf]
    %v572 = vld [vmem:[%s1 + $0x14] sm:$0xf]
    %v573 = vld [vmem:[%s1 + $0x18] sm:$0xf]
    %v574 = vld [vmem:[%s1 + $0x1c] sm:$0xf]
    %v575 = vld [vmem:[%s1 + $0x20] sm:$0xf]
    %v576 = vld [vmem:[%s1 + $0x24] sm:$0xf]
    %v577 = vld [vmem:[%s1 + $0x28] sm:$0xf]
    %v578 = vld [vmem:[%s1 + $0x2c] sm:$0xf]
    %v579 = vld [vmem:[%s1 + $0x30] sm:$0xf]
    %v580 = vld [vmem:[%s1 + $0x34] sm:$0xf]
    %v581 = vld [vmem:[%s1 + $0x38] sm:$0xf]
    %v582 = vld [vmem:[%s1 + $0x3c] sm:$0xf]
    %v583 = vld [vmem:[%s1 + $0x40] sm:$0xf]
    %v584 = vld [vmem:[%s1 + $0x44] sm:$0xf]
    %v603 = vunpack.c.l.b16 %v567
    %v604 = vunpack.c.l.b16 %v568
    %v605 = vunpack.c.l.b16 %v569
    %v606 = vunpack.c.l.b16 %v570
    %v607 = vunpack.c.l.b16 %v571
    %v608 = vunpack.c.l.b16 %v572
    %v609 = vunpack.c.l.b16 %v573
    %v610 = vunpack.c.l.b16 %v574
    %v611 = vunpack.c.l.b16 %v575
    %v612 = vunpack.c.l.b16 %v576
    %v613 = vunpack.c.l.b16 %v577
    %v614 = vunpack.c.l.b16 %v578
    %v615 = vunpack.c.l.b16 %v579
    %v616 = vunpack.c.l.b16 %v580
    %v617 = vunpack.c.l.b16 %v581
    %v618 = vunpack.c.l.b16 %v582
    %v619 = vunpack.c.l.b16 %v583
    %v620 = vunpack.c.l.b16 %v584
    %v621 = vpack.c.b16 %v604, %v603
    %v622 = vpack.c.b16 %v606, %v605
    %v623 = vpack.c.b16 %v608, %v607
    %v624 = vpack.c.b16 %v610, %v609
    %v625 = vpack.c.b16 %v612, %v611
    %v626 = vpack.c.b16 %v614, %v613
    %v627 = vpack.c.b16 %v616, %v615
    %v628 = vpack.c.b16 %v618, %v617
    %v629 = vpack.c.b16 %v620, %v619
    %vm639 = vcmask 130048
    %v641 = vsel %vm639, %v358, 0
    %v644 = vsel %vm639, %v360, 0
    %v647 = vsel %vm639, %v362, 0
    %v650 = vsel %vm639, %v364, 0
    %v653 = vsel %vm639, %v366, 0
    %v656 = vsel %vm639, %v368, 0
    %v659 = vsel %vm639, %v370, 0
    %v662 = vsel %vm639, %v421, 0
    %v665 = vsel %vm639, %v423, 0
    %v668 = vsel %vm639, %v425, 0
    %v671 = vsel %vm639, %v427, 0
    %v674 = vsel %vm639, %v429, 0
    %v677 = vsel %vm639, %v431, 0
    %v680 = vsel %vm639, %v433, 0
    %v683 = vsel %vm639, %v484, 0
    %v686 = vsel %vm639, %v486, 0
    %v689 = vsel %vm639, %v488, 0
    %v692 = vsel %vm639, %v490, 0
    %v695 = vsel %vm639, %v492, 0
    %v698 = vsel %vm639, %v494, 0
    %v701 = vsel %vm639, %v496, 0
    %v704 = vsel %vm639, %v547, 0
    %v707 = vsel %vm639, %v549, 0
    %v710 = vsel %vm639, %v551, 0
    %v713 = vsel %vm639, %v553, 0
    %v716 = vsel %vm639, %v555, 0
    %v719 = vsel %vm639, %v557, 0
    %v722 = vsel %vm639, %v559, 0
    %724 = vmatprep.subr.bf16.mxu0 0
    %725 = vmatpush1.bf16.msra.mxu0 %v621
    %726 = vmatprep.subr.bf16.mxu0 0
    %727 = vmatpush1.bf16.msra.mxu0 %v622
    %728 = vmatprep.subr.bf16.mxu0 0
    %729 = vmatpush1.bf16.msra.mxu0 %v623
    %730 = vmatprep.subr.bf16.mxu0 0
    %731 = vmatpush1.bf16.msra.mxu0 %v624
    %732 = vmatprep.subr.bf16.mxu0 0
    %733 = vmatpush1.bf16.msra.mxu0 %v625
    %734 = vmatprep.subr.bf16.mxu0 0
    %735 = vmatpush1.bf16.msra.mxu0 %v626
    %736 = vmatprep.subr.bf16.mxu0 0
    %737 = vmatpush1.bf16.msra.mxu0 %v627
    %738 = vmatprep.subr.bf16.mxu0 0
    %739 = vmatpush1.bf16.msra.mxu0 %v628
    %740 = vmatprep.subr.bf16.mxu0 0
    %741 = vmatpush1.bf16.msra.mxu0 %v629
    %742 = vmatprep.subr.bf16.mxu0 0
    %743 = vmatpush1.bf16.msra.mxu0 0
    %744 = vmatprep.subr.bf16.mxu0 0
    %745 = vmatpush1.bf16.msra.mxu0 0
    %746 = vmatprep.subr.bf16.mxu0 0
    %747 = vmatpush1.bf16.msra.mxu0 0
    %748 = vmatprep.subr.bf16.mxu0 0
    %749 = vmatpush1.bf16.msra.mxu0 0
    %750 = vmatprep.subr.bf16.mxu0 0
    %751 = vmatpush1.bf16.msra.mxu0 0
    %752 = vmatprep.subr.bf16.mxu0 0
    %753 = vmatpush1.bf16.msra.mxu0 0
    %754 = vmatprep.subr.bf16.mxu0 0
    %755 = vmatpush1.bf16.msra.mxu0 0
    %756 = vmatprep.mubr.bf16.mxu0 %v641
    %757 = vmatmul.mubr.bf16.gmra.mrb[0].mxu0 %v357
    %v758 = vpop.f32.mrb[0].mxu0
    %v759 = vadd.f32 0.0, %v758
    %v760 = vpop.f32.mrb[0].mxu0
    %v761 = vpop.f32.mrb[0].mxu0
    %v762 = vadd.f32 0.0, %v761
    %v763 = vpop.f32.mrb[0].mxu0
    %764 = vmatprep.mubr.bf16.mxu0 %v644
    %765 = vmatmul.mubr.bf16.gmra.mrb[0].mxu0 %v359
    %v766 = vpop.f32.mrb[0].mxu0
    %v767 = vadd.f32 0.0, %v766
    %v768 = vpop.f32.mrb[0].mxu0
    %v769 = vpop.f32.mrb[0].mxu0
    %v770 = vadd.f32 0.0, %v769
    %v771 = vpop.f32.mrb[0].mxu0
    %772 = vmatprep.mubr.bf16.mxu0 %v647
    %773 = vmatmul.mubr.bf16.gmra.mrb[0].mxu0 %v361
    %v774 = vpop.f32.mrb[0].mxu0
    %v775 = vadd.f32 0.0, %v774
    %v776 = vpop.f32.mrb[0].mxu0
    %v777 = vpop.f32.mrb[0].mxu0
    %v778 = vadd.f32 0.0, %v777
    %v779 = vpop.f32.mrb[0].mxu0
    %780 = vmatprep.mubr.bf16.mxu0 %v650
    %781 = vmatmul.mubr.bf16.gmra.mrb[0].mxu0 %v363
    %v782 = vpop.f32.mrb[0].mxu0
    %v783 = vadd.f32 0.0, %v782
    %v784 = vpop.f32.mrb[0].mxu0
    %v785 = vpop.f32.mrb[0].mxu0
    %v786 = vadd.f32 0.0, %v785
    %v787 = vpop.f32.mrb[0].mxu0
    %788 = vmatprep.mubr.bf16.mxu0 %v653
    %789 = vmatmul.mubr.bf16.gmra.mrb[0].mxu0 %v365
    %v790 = vpop.f32.mrb[0].mxu0
    %v791 = vadd.f32 0.0, %v790
    %v792 = vpop.f32.mrb[0].mxu0
    %v793 = vpop.f32.mrb[0].mxu0
    %v794 = vadd.f32 0.0, %v793
    %v795 = vpop.f32.mrb[0].mxu0
    %796 = vmatprep.mubr.bf16.mxu0 %v656
    %797 = vmatmul.mubr.bf16.gmra.mrb[0].mxu0 %v367
    %v798 = vpop.f32.mrb[0].mxu0
    %v799 = vadd.f32 0.0, %v798
    %v800 = vpop.f32.mrb[0].mxu0
    %v801 = vpop.f32.mrb[0].mxu0
    %v802 = vadd.f32 0.0, %v801
    %v803 = vpop.f32.mrb[0].mxu0
    %804 = vmatprep.mubr.bf16.mxu0 %v659
    %805 = vmatmul.mubr.bf16.gmra.mrb[0].mxu0 %v369
    %v806 = vpop.f32.mrb[0].mxu0
    %v807 = vadd.f32 0.0, %v806
    %v808 = vpop.f32.mrb[0].mxu0
    %v809 = vpop.f32.mrb[0].mxu0
    %v810 = vadd.f32 0.0, %v809
    %v811 = vpop.f32.mrb[0].mxu0
    %812 = vmatprep.mubr.bf16.mxu0 %v662
    %813 = vmatmul.mubr.bf16.gmra.mrb[0].mxu0 %v420
    %v814 = vpop.f32.mrb[0].mxu0
    %v815 = vadd.f32 0.0, %v814
    %v816 = vpop.f32.mrb[0].mxu0
    %v817 = vpop.f32.mrb[0].mxu0
    %v818 = vadd.f32 0.0, %v817
    %v819 = vpop.f32.mrb[0].mxu0
    %820 = vmatprep.mubr.bf16.mxu0 %v665
    %821 = vmatmul.mubr.bf16.gmra.mrb[0].mxu0 %v422
    %v822 = vpop.f32.mrb[0].mxu0
    %v823 = vadd.f32 0.0, %v822
    %v824 = vpop.f32.mrb[0].mxu0
    %v825 = vpop.f32.mrb[0].mxu0
    %v826 = vadd.f32 0.0, %v825
    %v827 = vpop.f32.mrb[0].mxu0
    %828 = vmatprep.mubr.bf16.mxu0 %v668
    %829 = vmatmul.mubr.bf16.gmra.mrb[0].mxu0 %v424
    %v830 = vpop.f32.mrb[0].mxu0
    %v831 = vadd.f32 0.0, %v830
    %v832 = vpop.f32.mrb[0].mxu0
    %v833 = vpop.f32.mrb[0].mxu0
    %v834 = vadd.f32 0.0, %v833
    %v835 = vpop.f32.mrb[0].mxu0
    %836 = vmatprep.mubr.bf16.mxu0 %v671
    %837 = vmatmul.mubr.bf16.gmra.mrb[0].mxu0 %v426
    %v838 = vpop.f32.mrb[0].mxu0
    %v839 = vadd.f32 0.0, %v838
    %v840 = vpop.f32.mrb[0].mxu0
    %v841 = vpop.f32.mrb[0].mxu0
    %v842 = vadd.f32 0.0, %v841
    %v843 = vpop.f32.mrb[0].mxu0
    %844 = vmatprep.mubr.bf16.mxu0 %v674
    %845 = vmatmul.mubr.bf16.gmra.mrb[0].mxu0 %v428
    %v846 = vpop.f32.mrb[0].mxu0
    %v847 = vadd.f32 0.0, %v846
    %v848 = vpop.f32.mrb[0].mxu0
    %v849 = vpop.f32.mrb[0].mxu0
    %v850 = vadd.f32 0.0, %v849
    %v851 = vpop.f32.mrb[0].mxu0
    %852 = vmatprep.mubr.bf16.mxu0 %v677
    %853 = vmatmul.mubr.bf16.gmra.mrb[0].mxu0 %v430
    %v854 = vpop.f32.mrb[0].mxu0
    %v855 = vadd.f32 0.0, %v854
    %v856 = vpop.f32.mrb[0].mxu0
    %v857 = vpop.f32.mrb[0].mxu0
    %v858 = vadd.f32 0.0, %v857
    %v859 = vpop.f32.mrb[0].mxu0
    %860 = vmatprep.mubr.bf16.mxu0 %v680
    %861 = vmatmul.mubr.bf16.gmra.mrb[0].mxu0 %v432
    %v862 = vpop.f32.mrb[0].mxu0
    %v863 = vadd.f32 0.0, %v862
    %v864 = vpop.f32.mrb[0].mxu0
    %v865 = vpop.f32.mrb[0].mxu0
    %v866 = vadd.f32 0.0, %v865
    %v867 = vpop.f32.mrb[0].mxu0
    %868 = vmatprep.mubr.bf16.mxu0 %v683
    %869 = vmatmul.mubr.bf16.gmra.mrb[0].mxu0 %v483
    %v870 = vpop.f32.mrb[0].mxu0
    %v871 = vadd.f32 0.0, %v870
    %v872 = vpop.f32.mrb[0].mxu0
    %v873 = vpop.f32.mrb[0].mxu0
    %v874 = vadd.f32 0.0, %v873
    %v875 = vpop.f32.mrb[0].mxu0
    %876 = vmatprep.mubr.bf16.mxu0 %v686
    %877 = vmatmul.mubr.bf16.gmra.mrb[0].mxu0 %v485
    %v878 = vpop.f32.mrb[0].mxu0
    %v879 = vadd.f32 0.0, %v878
    %v880 = vpop.f32.mrb[0].mxu0
    %v881 = vpop.f32.mrb[0].mxu0
    %v882 = vadd.f32 0.0, %v881
    %v883 = vpop.f32.mrb[0].mxu0
    %884 = vmatprep.mubr.bf16.mxu0 %v689
    %885 = vmatmul.mubr.bf16.gmra.mrb[0].mxu0 %v487
    %v886 = vpop.f32.mrb[0].mxu0
    %v887 = vadd.f32 0.0, %v886
    %v888 = vpop.f32.mrb[0].mxu0
    %v889 = vpop.f32.mrb[0].mxu0
    %v890 = vadd.f32 0.0, %v889
    %v891 = vpop.f32.mrb[0].mxu0
    %892 = vmatprep.mubr.bf16.mxu0 %v692
    %893 = vmatmul.mubr.bf16.gmra.mrb[0].mxu0 %v489
    %v894 = vpop.f32.mrb[0].mxu0
    %v895 = vadd.f32 0.0, %v894
    %v896 = vpop.f32.mrb[0].mxu0
    %v897 = vpop.f32.mrb[0].mxu0
    %v898 = vadd.f32 0.0, %v897
    %v899 = vpop.f32.mrb[0].mxu0
    %900 = vmatprep.mubr.bf16.mxu0 %v695
    %901 = vmatmul.mubr.bf16.gmra.mrb[0].mxu0 %v491
    %v902 = vpop.f32.mrb[0].mxu0
    %v903 = vadd.f32 0.0, %v902
    %v904 = vpop.f32.mrb[0].mxu0
    %v905 = vpop.f32.mrb[0].mxu0
    %v906 = vadd.f32 0.0, %v905
    %v907 = vpop.f32.mrb[0].mxu0
    %908 = vmatprep.mubr.bf16.mxu0 %v698
    %909 = vmatmul.mubr.bf16.gmra.mrb[0].mxu0 %v493
    %v910 = vpop.f32.mrb[0].mxu0
    %v911 = vadd.f32 0.0, %v910
    %v912 = vpop.f32.mrb[0].mxu0
    %v913 = vpop.f32.mrb[0].mxu0
    %v914 = vadd.f32 0.0, %v913
    %v915 = vpop.f32.mrb[0].mxu0
    %916 = vmatprep.mubr.bf16.mxu0 %v701
    %917 = vmatmul.mubr.bf16.gmra.mrb[0].mxu0 %v495
    %v918 = vpop.f32.mrb[0].mxu0
    %v919 = vadd.f32 0.0, %v918
    %v920 = vpop.f32.mrb[0].mxu0
    %v921 = vpop.f32.mrb[0].mxu0
    %v922 = vadd.f32 0.0, %v921
    %v923 = vpop.f32.mrb[0].mxu0
    %924 = vmatprep.mubr.bf16.mxu0 %v704
    %925 = vmatmul.mubr.bf16.gmra.mrb[0].mxu0 %v546
    %v926 = vpop.f32.mrb[0].mxu0
    %v927 = vadd.f32 0.0, %v926
    %v928 = vpop.f32.mrb[0].mxu0
    %v929 = vpop.f32.mrb[0].mxu0
    %v930 = vadd.f32 0.0, %v929
    %v931 = vpop.f32.mrb[0].mxu0
    %932 = vmatprep.mubr.bf16.mxu0 %v707
    %933 = vmatmul.mubr.bf16.gmra.mrb[0].mxu0 %v548
    %v934 = vpop.f32.mrb[0].mxu0
    %v935 = vadd.f32 0.0, %v934
    %v936 = vpop.f32.mrb[0].mxu0
    %v937 = vpop.f32.mrb[0].mxu0
    %v938 = vadd.f32 0.0, %v937
    %v939 = vpop.f32.mrb[0].mxu0
    %940 = vmatprep.mubr.bf16.mxu0 %v710
    %941 = vmatmul.mubr.bf16.gmra.mrb[0].mxu0 %v550
    %v942 = vpop.f32.mrb[0].mxu0
    %v943 = vadd.f32 0.0, %v942
    %v944 = vpop.f32.mrb[0].mxu0
    %v945 = vpop.f32.mrb[0].mxu0
    %v946 = vadd.f32 0.0, %v945
    %v947 = vpop.f32.mrb[0].mxu0
    %948 = vmatprep.mubr.bf16.mxu0 %v713
    %949 = vmatmul.mubr.bf16.gmra.mrb[0].mxu0 %v552
    %v950 = vpop.f32.mrb[0].mxu0
    %v951 = vadd.f32 0.0, %v950
    %v952 = vpop.f32.mrb[0].mxu0
    %v953 = vpop.f32.mrb[0].mxu0
    %v954 = vadd.f32 0.0, %v953
    %v955 = vpop.f32.mrb[0].mxu0
    %956 = vmatprep.mubr.bf16.mxu0 %v716
    %957 = vmatmul.mubr.bf16.gmra.mrb[0].mxu0 %v554
    %v958 = vpop.f32.mrb[0].mxu0
    %v959 = vadd.f32 0.0, %v958
    %v960 = vpop.f32.mrb[0].mxu0
    %v961 = vpop.f32.mrb[0].mxu0
    %v962 = vadd.f32 0.0, %v961
    %v963 = vpop.f32.mrb[0].mxu0
    %964 = vmatprep.mubr.bf16.mxu0 %v719
    %965 = vmatmul.mubr.bf16.gmra.mrb[0].mxu0 %v556
    %v966 = vpop.f32.mrb[0].mxu0
    %v967 = vadd.f32 0.0, %v966
    %v968 = vpop.f32.mrb[0].mxu0
    %v969 = vpop.f32.mrb[0].mxu0
    %v970 = vadd.f32 0.0, %v969
    %v971 = vpop.f32.mrb[0].mxu0
    %972 = vmatprep.mubr.bf16.mxu0 %v722
    %973 = vmatmul.mubr.bf16.gmra.mrb[0].mxu0 %v558
    %v974 = vpop.f32.mrb[0].mxu0
    %v975 = vadd.f32 0.0, %v974
    %v976 = vpop.f32.mrb[0].mxu0
    %v977 = vpop.f32.mrb[0].mxu0
    %v978 = vadd.f32 0.0, %v977
    %v979 = vpop.f32.mrb[0].mxu0
    %980 = vdwg.mxu0
    %v981 = vmax.f32 %v759, %v815
    %v982 = vmax.f32 %v762, %v818
    %v983 = vmax.f32 %v767, %v823
    %v984 = vmax.f32 %v770, %v826
    %v985 = vmax.f32 %v775, %v831
    %v986 = vmax.f32 %v778, %v834
    %v987 = vmax.f32 %v783, %v839
    %v988 = vmax.f32 %v786, %v842
    %v989 = vmax.f32 %v791, %v847
    %v990 = vmax.f32 %v794, %v850
    %v991 = vmax.f32 %v799, %v855
    %v992 = vmax.f32 %v802, %v858
    %v993 = vmax.f32 %v807, %v863
    %v994 = vmax.f32 %v810, %v866
    %v995 = vmax.f32 %v871, %v927
    %v996 = vmax.f32 %v874, %v930
    %v997 = vmax.f32 %v879, %v935
    %v998 = vmax.f32 %v882, %v938
    %v999 = vmax.f32 %v887, %v943
    %v1000 = vmax.f32 %v890, %v946
    %v1001 = vmax.f32 %v895, %v951
    %v1002 = vmax.f32 %v898, %v954
    %v1003 = vmax.f32 %v903, %v959
    %v1004 = vmax.f32 %v906, %v962
    %v1005 = vmax.f32 %v911, %v967
    %v1006 = vmax.f32 %v914, %v970
    %v1007 = vmax.f32 %v919, %v975
    %v1008 = vmax.f32 %v922, %v978
    %v1009 = vmax.f32 %v981, %v995
    %v1010 = vmax.f32 %v982, %v996
    %v1011 = vmax.f32 %v983, %v997
    %v1012 = vmax.f32 %v984, %v998
    %v1013 = vmax.f32 %v985, %v999
    %v1014 = vmax.f32 %v986, %v1000
    %v1015 = vmax.f32 %v987, %v1001
    %v1016 = vmax.f32 %v988, %v1002
    %v1017 = vmax.f32 %v989, %v1003
    %v1018 = vmax.f32 %v990, %v1004
    %v1019 = vmax.f32 %v991, %v1005
    %v1020 = vmax.f32 %v992, %v1006
    %v1021 = vmax.f32 %v993, %v1007
    %v1022 = vmax.f32 %v994, %v1008
    %v1023 = vld [vmem:[%s2] sm:$0x1]
    %v1025 = vlaneseq
    %v1026 = vshrl.u32 %v1025, 7
    %v1027 = vsub.s32 0, %v1026
    %v1028 = vrot.slane %v1023, %v1027
    %v1030 = vadd.f32 %v1009, %v1028
    %v1031 = vadd.f32 %v1010, %v1028
    %v1032 = vadd.f32 %v1011, %v1028
    %v1033 = vadd.f32 %v1012, %v1028
    %v1034 = vadd.f32 %v1013, %v1028
    %v1035 = vadd.f32 %v1014, %v1028
    %v1036 = vadd.f32 %v1015, %v1028
    %v1037 = vadd.f32 %v1016, %v1028
    %v1038 = vadd.f32 %v1017, %v1028
    %v1039 = vadd.f32 %v1018, %v1028
    %v1040 = vadd.f32 %v1019, %v1028
    %v1041 = vadd.f32 %v1020, %v1028
    %v1042 = vadd.f32 %v1021, %v1028
    %v1043 = vadd.f32 %v1022, %v1028
    %v1044 = vmax.f32 %v1030, 0.0
    %v1045 = vmax.f32 %v1031, 0.0
    %v1046 = vmax.f32 %v1032, 0.0
    %v1047 = vmax.f32 %v1033, 0.0
    %v1048 = vmax.f32 %v1034, 0.0
    %v1049 = vmax.f32 %v1035, 0.0
    %v1050 = vmax.f32 %v1036, 0.0
    %v1051 = vmax.f32 %v1037, 0.0
    %v1052 = vmax.f32 %v1038, 0.0
    %v1053 = vmax.f32 %v1039, 0.0
    %v1054 = vmax.f32 %v1040, 0.0
    %v1055 = vmax.f32 %v1041, 0.0
    %v1056 = vmax.f32 %v1042, 0.0
    %v1057 = vmax.f32 %v1043, 0.0
    %v1058 = vld [vmem:[%s3] sm:$0x1]
    %v1060 = vlaneseq
    %v1061 = vshrl.u32 %v1060, 7
    %v1062 = vsub.s32 0, %v1061
    %v1063 = vrot.slane %v1058, %v1062
    %v1065 = vadd.f32 %v1044, %v1063
    %v1066 = vadd.f32 %v1045, %v1063
    %v1067 = vadd.f32 %v1046, %v1063
    %v1068 = vadd.f32 %v1047, %v1063
    %v1069 = vadd.f32 %v1048, %v1063
    %v1070 = vadd.f32 %v1049, %v1063
    %v1071 = vadd.f32 %v1050, %v1063
    %v1072 = vadd.f32 %v1051, %v1063
    %v1073 = vadd.f32 %v1052, %v1063
    %v1074 = vadd.f32 %v1053, %v1063
    %v1075 = vadd.f32 %v1054, %v1063
    %v1076 = vadd.f32 %v1055, %v1063
    %v1077 = vadd.f32 %v1056, %v1063
    %v1078 = vadd.f32 %v1057, %v1063
    %v1079 = vpack.c.bf16 %v1066, %v1065
    %v1080 = vpack.c.bf16 %v1068, %v1067
    %v1081 = vpack.c.bf16 %v1070, %v1069
    %v1082 = vpack.c.bf16 %v1072, %v1071
    %v1083 = vpack.c.bf16 %v1074, %v1073
    %v1084 = vpack.c.bf16 %v1076, %v1075
    %v1085 = vpack.c.bf16 %v1078, %v1077
    %v1093 = vunpack.c.l.b16 %v1079
    %v1094 = vunpack.c.h.b16 %v1079
    %v1095 = vunpack.c.l.b16 %v1080
    %v1096 = vunpack.c.h.b16 %v1080
    %v1097 = vunpack.c.l.b16 %v1081
    %v1098 = vunpack.c.h.b16 %v1081
    %v1099 = vunpack.c.l.b16 %v1082
    %v1100 = vunpack.c.h.b16 %v1082
    %v1101 = vunpack.c.l.b16 %v1083
    %v1102 = vunpack.c.h.b16 %v1083
    %v1103 = vunpack.c.l.b16 %v1084
    %v1104 = vunpack.c.h.b16 %v1084
    %v1105 = vunpack.c.l.b16 %v1085
    %v1106 = vunpack.c.h.b16 %v1085
    %v1107 = vpack.c.b16 %v1093, %v1093
    %v1108 = vpack.c.b16 %v1094, %v1094
    %v1109 = vpack.c.b16 %v1095, %v1095
    %v1110 = vpack.c.b16 %v1096, %v1096
    %v1111 = vpack.c.b16 %v1097, %v1097
    %v1112 = vpack.c.b16 %v1098, %v1098
    %v1113 = vpack.c.b16 %v1099, %v1099
    %v1114 = vpack.c.b16 %v1100, %v1100
    %v1115 = vpack.c.b16 %v1101, %v1101
    %v1116 = vpack.c.b16 %v1102, %v1102
    %v1117 = vpack.c.b16 %v1103, %v1103
    %v1118 = vpack.c.b16 %v1104, %v1104
    %v1119 = vpack.c.b16 %v1105, %v1105
    %v1120 = vpack.c.b16 %v1106, %v1106
    %vm1135 = vcmask 257024
    %1136 = vst.msk [vmem:[#allocation3] sm:$0xf] %vm1135, %v1107
    %1137 = vst.msk [vmem:[#allocation3 + $0x4] sm:$0xf] %vm1135, %v1108
    %1138 = vst.msk [vmem:[#allocation3 + $0x8] sm:$0xf] %vm1135, %v1109
    %1139 = vst.msk [vmem:[#allocation3 + $0xc] sm:$0xf] %vm1135, %v1110
    %1140 = vst.msk [vmem:[#allocation3 + $0x10] sm:$0xf] %vm1135, %v1111
    %1141 = vst.msk [vmem:[#allocation3 + $0x14] sm:$0xf] %vm1135, %v1112
    %1142 = vst.msk [vmem:[#allocation3 + $0x18] sm:$0xf] %vm1135, %v1113
    %1143 = vst.msk [vmem:[#allocation3 + $0x1c] sm:$0xf] %vm1135, %v1114
    %1144 = vst.msk [vmem:[#allocation3 + $0x20] sm:$0xf] %vm1135, %v1115
    %1145 = vst.msk [vmem:[#allocation3 + $0x24] sm:$0xf] %vm1135, %v1116
    %1146 = vst.msk [vmem:[#allocation3 + $0x28] sm:$0xf] %vm1135, %v1117
    %1147 = vst.msk [vmem:[#allocation3 + $0x2c] sm:$0xf] %vm1135, %v1118
    %1148 = vst.msk [vmem:[#allocation3 + $0x30] sm:$0xf] %vm1135, %v1119
    %1149 = vst.msk [vmem:[#allocation3 + $0x34] sm:$0xf] %vm1135, %v1120
    // Predicated region
    $region56: #{cnn_forward.4} parent=1 // pred_check
      _
    $region57: #{cnn_forward.4} parent=1 // pred_check_branch
      %1151 = sbr.rel (0) target = $region59
    $region58: #{cnn_forward.4} parent=1 // pred_region
      // Predicated region
      $region60: #{cnn_forward.4} parent=58 // pred_check
        _
      $region61: #{cnn_forward.4} parent=58 // pred_check_branch
        %1153 = sbr.rel (0) target = $region63
      $region62: #{cnn_forward.4} parent=58 // pred_region
        // Predicated region
        $region64: #{cnn_forward.4} parent=62 // pred_check
          _
        $region65: #{cnn_forward.4} parent=62 // pred_check_branch
          %1155 = sbr.rel target = $region67
        $region66: #{cnn_forward.4} parent=62 // pred_region
          // Predicated region
          $region79: #{cnn_forward.4} parent=66 // pred_check
            _
          $region80: #{cnn_forward.4} parent=66 // pred_check_branch
            %1194 = sbr.rel (0) target = $region82
          $region81: #{cnn_forward.4} parent=66 // pred_region
            loop: start=0, step=1, limit=1
            $region83: #{cnn_forward.4} parent=81 // loop_pre_header
              _
            $region84: #{cnn_forward.4} parent=81 // loop_header
              %s1196 = sphi 0, %s1200
              %p1197 = scmp.ge.s32.totalorder %s1196, 1
              %s1201 = sphi [#allocation3], [#allocation3]
              %s1202 = sphi %s4, %s4
            $region85: #{cnn_forward.4} parent=81 // loop_header_branch
              %1199 = sbr.rel (%p1197) target = $region89
            $region86: #{cnn_forward.4} parent=81 // loop_body
              _
            $region87: #{cnn_forward.4} parent=81 // loop_footer
              %s1200 = sadd.s32 1, %s1196
            $region88: #{cnn_forward.4} parent=81 // loop_footer_branch
              %1195 = sbr.rel target = $region84
            $region89: #{cnn_forward.4} parent=81 // loop_exit
              _
            loop: start=0, step=1, limit=1
            $region90: #{cnn_forward.4} parent=81 // loop_pre_header
              _
            $region91: #{cnn_forward.4} parent=81 // loop_header
              %s1205 = sphi 0, %s1209
              %p1206 = scmp.ge.s32.totalorder %s1205, 1
              %s1210 = sphi [#allocation3], [#allocation3]
              %s1211 = sphi %s4, %s4
            $region92: #{cnn_forward.4} parent=81 // loop_header_branch
              %1208 = sbr.rel (%p1206) target = $region96
            $region93: #{cnn_forward.4} parent=81 // loop_body
              %v1212 = vld [vmem:[%s1210] sm:$0xf]
              %1213 = vst [vmem:[%s1211] sm:$0xf] %v1212
              %v1214 = vld [vmem:[%s1210 + $0x4] sm:$0xf]
              %1215 = vst [vmem:[%s1211 + $0x4] sm:$0xf] %v1214
              %v1216 = vld [vmem:[%s1210 + $0x8] sm:$0xf]
              %1217 = vst [vmem:[%s1211 + $0x8] sm:$0xf] %v1216
              %v1218 = vld [vmem:[%s1210 + $0xc] sm:$0xf]
              %1219 = vst [vmem:[%s1211 + $0xc] sm:$0xf] %v1218
              %v1220 = vld [vmem:[%s1210 + $0x10] sm:$0xf]
              %1221 = vst [vmem:[%s1211 + $0x10] sm:$0xf] %v1220
              %v1222 = vld [vmem:[%s1210 + $0x14] sm:$0xf]
              %1223 = vst [vmem:[%s1211 + $0x14] sm:$0xf] %v1222
              %v1224 = vld [vmem:[%s1210 + $0x18] sm:$0xf]
              %1225 = vst [vmem:[%s1211 + $0x18] sm:$0xf] %v1224
              %v1226 = vld [vmem:[%s1210 + $0x1c] sm:$0xf]
              %1227 = vst [vmem:[%s1211 + $0x1c] sm:$0xf] %v1226
              %v1228 = vld [vmem:[%s1210 + $0x20] sm:$0xf]
              %1229 = vst [vmem:[%s1211 + $0x20] sm:$0xf] %v1228
              %v1230 = vld [vmem:[%s1210 + $0x24] sm:$0xf]
              %1231 = vst [vmem:[%s1211 + $0x24] sm:$0xf] %v1230
              %v1232 = vld [vmem:[%s1210 + $0x28] sm:$0xf]
              %1233 = vst [vmem:[%s1211 + $0x28] sm:$0xf] %v1232
              %v1234 = vld [vmem:[%s1210 + $0x2c] sm:$0xf]
              %1235 = vst [vmem:[%s1211 + $0x2c] sm:$0xf] %v1234
              %v1236 = vld [vmem:[%s1210 + $0x30] sm:$0xf]
              %1237 = vst [vmem:[%s1211 + $0x30] sm:$0xf] %v1236
            $region94: #{cnn_forward.4} parent=81 // loop_footer
              %s1209 = sadd.s32 1, %s1205
            $region95: #{cnn_forward.4} parent=81 // loop_footer_branch
              %1204 = sbr.rel target = $region91
            $region96: #{cnn_forward.4} parent=81 // loop_exit
              _
          $region82: #{cnn_forward.4} parent=66 // pred_fallthru
            _
        $region67: #{cnn_forward.4} parent=62 // pred_fallthru
          _
        // Predicated region
        $region68: #{cnn_forward.4} parent=62 // pred_check
          _
        $region69: #{cnn_forward.4} parent=62 // pred_check_branch
          %1157 = sbr.rel (0) target = $region71
        $region70: #{cnn_forward.4} parent=62 // pred_region
          loop: start=0, step=1, limit=1
          $region72: #{cnn_forward.4} parent=70 // loop_pre_header
            _
          $region73: #{cnn_forward.4} parent=70 // loop_header
            %s1160 = sphi 0, %s1164
            %p1161 = scmp.ge.s32.totalorder %s1160, 1
            %s1165 = sphi [#allocation3], [#allocation3]
            %s1166 = sphi %s4, %s4
          $region74: #{cnn_forward.4} parent=70 // loop_header_branch
            %1163 = sbr.rel (%p1161) target = $region78
          $region75: #{cnn_forward.4} parent=70 // loop_body
            %v1167 = vld [vmem:[%s1165] sm:$0xf]
            %1168 = vst [vmem:[%s1166] sm:$0xf] %v1167
            %v1169 = vld [vmem:[%s1165 + $0x4] sm:$0xf]
            %1170 = vst [vmem:[%s1166 + $0x4] sm:$0xf] %v1169
            %v1171 = vld [vmem:[%s1165 + $0x8] sm:$0xf]
            %1172 = vst [vmem:[%s1166 + $0x8] sm:$0xf] %v1171
            %v1173 = vld [vmem:[%s1165 + $0xc] sm:$0xf]
            %1174 = vst [vmem:[%s1166 + $0xc] sm:$0xf] %v1173
            %v1175 = vld [vmem:[%s1165 + $0x10] sm:$0xf]
            %1176 = vst [vmem:[%s1166 + $0x10] sm:$0xf] %v1175
            %v1177 = vld [vmem:[%s1165 + $0x14] sm:$0xf]
            %1178 = vst [vmem:[%s1166 + $0x14] sm:$0xf] %v1177
            %v1179 = vld [vmem:[%s1165 + $0x18] sm:$0xf]
            %1180 = vst [vmem:[%s1166 + $0x18] sm:$0xf] %v1179
            %v1181 = vld [vmem:[%s1165 + $0x1c] sm:$0xf]
            %1182 = vst [vmem:[%s1166 + $0x1c] sm:$0xf] %v1181
            %v1183 = vld [vmem:[%s1165 + $0x20] sm:$0xf]
            %1184 = vst [vmem:[%s1166 + $0x20] sm:$0xf] %v1183
            %v1185 = vld [vmem:[%s1165 + $0x24] sm:$0xf]
            %1186 = vst [vmem:[%s1166 + $0x24] sm:$0xf] %v1185
            %v1187 = vld [vmem:[%s1165 + $0x28] sm:$0xf]
            %1188 = vst [vmem:[%s1166 + $0x28] sm:$0xf] %v1187
            %v1189 = vld [vmem:[%s1165 + $0x2c] sm:$0xf]
            %1190 = vst [vmem:[%s1166 + $0x2c] sm:$0xf] %v1189
            %v1191 = vld [vmem:[%s1165 + $0x30] sm:$0xf]
            %1192 = vst [vmem:[%s1166 + $0x30] sm:$0xf] %v1191
          $region76: #{cnn_forward.4} parent=70 // loop_footer
            %s1164 = sadd.s32 1, %s1160
          $region77: #{cnn_forward.4} parent=70 // loop_footer_branch
            %1159 = sbr.rel target = $region73
          $region78: #{cnn_forward.4} parent=70 // loop_exit
            _
        $region71: #{cnn_forward.4} parent=62 // pred_fallthru
          _
      $region63: #{cnn_forward.4} parent=58 // pred_fallthru
        _
      %1238 = vnop
    $region59: #{cnn_forward.4} parent=1 // pred_fallthru
      _
    // Predicated region
    $region97: #{cnn_forward.4} parent=1 // pred_check
      _
    $region98: #{cnn_forward.4} parent=1 // pred_check_branch
      %1240 = sbr.rel (0) target = $region100
    $region99: #{cnn_forward.4} parent=1 // pred_region
      _
    $region100: #{cnn_forward.4} parent=1 // pred_fallthru
      _

// kernel: cnn_forward.5
$region0: #{cnn_forward.5}
  #allocation0 [shape = 'u32[]', space=smem, size = 0x4, offset = 0x4, fixed_abs, tag = 'smem constant byte address 0x4 - core index']
  #allocation1 [shape = 'u32[144,128]{1,0:T(1,128)}', space=vmem, size = 0x12000, scoped, tag = 'internal scratch']
  %s0 = inlined_call_operand.vmem [shape: bf16[2,1568], index: 0, kind: input, shape index: {}]
  %s1 = inlined_call_operand.vmem [shape: bf16[1568,24], index: 1, kind: input, shape index: {}]
  %s2 = inlined_call_operand.vmem [shape: f32[1,24], index: 2, kind: input, shape index: {}]
  %s3 = inlined_call_operand.hbm [shape: f32[2,24], index: 3, kind: output, shape index: {}]
  %s4 = sld [smem:[#allocation0]]
  $region22: #{cnn_forward.5} parent=0
    _
  %s6 = ssub.s32 1, %s4
  %s7 = scalar_select 0, %s6, %s4
  $region1: #{cnn_forward.5} parent=0
    #allocation2 [shape = 'u8[8192]{0}', space=vmem, size = 0x2000, scoped, tag = 'output window, operand 0, single buffered']
    #allocation3 [shape = 's32[1]{0}', space=sflag, size = 0x4, scoped, tag = 'scoped memory for cnn_forward.5']
    %8 = vsyncpa [#allocation3], 0
    // Predicated region
    $region2: #{cnn_forward.5} parent=1 // pred_check
      _
    $region3: #{cnn_forward.5} parent=1 // pred_check_branch
      %10 = sbr.rel (0) target = $region5
    $region4: #{cnn_forward.5} parent=1 // pred_region
      _
    $region5: #{cnn_forward.5} parent=1 // pred_fallthru
      _
    // Predicated region
    $region6: #{cnn_forward.5} parent=1 // pred_check
      _
    $region7: #{cnn_forward.5} parent=1 // pred_check_branch
      %12 = sbr.rel (0) target = $region9
    $region8: #{cnn_forward.5} parent=1 // pred_region
      _
    $region9: #{cnn_forward.5} parent=1 // pred_fallthru
      _
    // Predicated region
    $region10: #{cnn_forward.5} parent=1 // pred_check
      _
    $region11: #{cnn_forward.5} parent=1 // pred_check_branch
      %14 = sbr.rel (0) target = $region13
    $region12: #{cnn_forward.5} parent=1 // pred_region
      _
    $region13: #{cnn_forward.5} parent=1 // pred_fallthru
      _
    %v16 = vld [vmem:[%s0] sm:$0xff]
    %v17 = vld [vmem:[%s0 + $0x8] sm:$0x1f]
    %v18 = vld [vmem:[%s0 + $0xd] sm:$0xff]
    %v19 = vld [vmem:[%s0 + $0x15] sm:$0x1f]
    %v20 = vld [vmem:[%s0 + $0x1a] sm:$0xff]
    %v21 = vld [vmem:[%s0 + $0x22] sm:$0x1f]
    %v22 = vld [vmem:[%s0 + $0x27] sm:$0xff]
    %v23 = vld [vmem:[%s0 + $0x2f] sm:$0x1f]
    %v24 = vld [vmem:[%s0 + $0x34] sm:$0xff]
    %v25 = vld [vmem:[%s0 + $0x3c] sm:$0x1f]
    %v26 = vld [vmem:[%s0 + $0x41] sm:$0xff]
    %v27 = vld [vmem:[%s0 + $0x49] sm:$0x1f]
    %v28 = vld [vmem:[%s0 + $0x4e] sm:$0xff]
    %v29 = vld [vmem:[%s0 + $0x56] sm:$0x1f]
    %v30 = vld [vmem:[%s0 + $0x5b] sm:$0xff]
    %v31 = vld [vmem:[%s0 + $0x63] sm:$0x1f]
    %v32 = vld [vmem:[%s1] sm:$0xf]
    %v33 = vld [vmem:[%s1 + $0x4] sm:$0xf]
    %v34 = vld [vmem:[%s1 + $0x8] sm:$0xf]
    %v35 = vld [vmem:[%s1 + $0xc] sm:$0xf]
    %v36 = vld [vmem:[%s1 + $0x10] sm:$0xf]
    %v37 = vld [vmem:[%s1 + $0x14] sm:$0xf]
    %v38 = vld [vmem:[%s1 + $0x18] sm:$0xf]
    %v39 = vld [vmem:[%s1 + $0x1c] sm:$0xf]
    %v40 = vld [vmem:[%s1 + $0x20] sm:$0xf]
    %v41 = vld [vmem:[%s1 + $0x24] sm:$0xf]
    %v42 = vld [vmem:[%s1 + $0x28] sm:$0xf]
    %v43 = vld [vmem:[%s1 + $0x2c] sm:$0xf]
    %v44 = vld [vmem:[%s1 + $0x30] sm:$0xf]
    %v45 = vld [vmem:[%s1 + $0x34] sm:$0xf]
    %v46 = vld [vmem:[%s1 + $0x38] sm:$0xf]
    %v47 = vld [vmem:[%s1 + $0x3c] sm:$0xf]
    %v48 = vld [vmem:[%s1 + $0x40] sm:$0xf]
    %v49 = vld [vmem:[%s1 + $0x44] sm:$0xf]
    %v50 = vld [vmem:[%s1 + $0x48] sm:$0xf]
    %v51 = vld [vmem:[%s1 + $0x4c] sm:$0xf]
    %v52 = vld [vmem:[%s1 + $0x50] sm:$0xf]
    %v53 = vld [vmem:[%s1 + $0x54] sm:$0xf]
    %v54 = vld [vmem:[%s1 + $0x58] sm:$0xf]
    %v55 = vld [vmem:[%s1 + $0x5c] sm:$0xf]
    %v56 = vld [vmem:[%s1 + $0x60] sm:$0xf]
    %v57 = vld [vmem:[%s1 + $0x64] sm:$0xf]
    %v58 = vld [vmem:[%s1 + $0x68] sm:$0xf]
    %v59 = vld [vmem:[%s1 + $0x6c] sm:$0xf]
    %v60 = vld [vmem:[%s1 + $0x70] sm:$0xf]
    %v61 = vld [vmem:[%s1 + $0x74] sm:$0xf]
    %v62 = vld [vmem:[%s1 + $0x78] sm:$0xf]
    %v63 = vld [vmem:[%s1 + $0x7c] sm:$0xf]
    %v64 = vld [vmem:[%s1 + $0x80] sm:$0xf]
    %v65 = vld [vmem:[%s1 + $0x84] sm:$0xf]
    %v66 = vld [vmem:[%s1 + $0x88] sm:$0xf]
    %v67 = vld [vmem:[%s1 + $0x8c] sm:$0xf]
    %v68 = vld [vmem:[%s1 + $0x90] sm:$0xf]
    %v69 = vld [vmem:[%s1 + $0x94] sm:$0xf]
    %v70 = vld [vmem:[%s1 + $0x98] sm:$0xf]
    %v71 = vld [vmem:[%s1 + $0x9c] sm:$0xf]
    %v72 = vld [vmem:[%s1 + $0xa0] sm:$0xf]
    %v73 = vld [vmem:[%s1 + $0xa4] sm:$0xf]
    %v74 = vld [vmem:[%s1 + $0xa8] sm:$0xf]
    %v75 = vld [vmem:[%s1 + $0xac] sm:$0xf]
    %v76 = vld [vmem:[%s1 + $0xb0] sm:$0xf]
    %v77 = vld [vmem:[%s1 + $0xb4] sm:$0xf]
    %v78 = vld [vmem:[%s1 + $0xb8] sm:$0xf]
    %v79 = vld [vmem:[%s1 + $0xbc] sm:$0xf]
    %v80 = vld [vmem:[%s1 + $0xc0] sm:$0xf]
    %v81 = vld [vmem:[%s1 + $0xc4] sm:$0xf]
    %v82 = vld [vmem:[%s1 + $0xc8] sm:$0xf]
    %v83 = vld [vmem:[%s1 + $0xcc] sm:$0xf]
    %v84 = vld [vmem:[%s1 + $0xd0] sm:$0xf]
    %v85 = vld [vmem:[%s1 + $0xd4] sm:$0xf]
    %v86 = vld [vmem:[%s1 + $0xd8] sm:$0xf]
    %v87 = vld [vmem:[%s1 + $0xdc] sm:$0xf]
    %v88 = vld [vmem:[%s1 + $0xe0] sm:$0xf]
    %v89 = vld [vmem:[%s1 + $0xe4] sm:$0xf]
    %v90 = vld [vmem:[%s1 + $0xe8] sm:$0xf]
    %v91 = vld [vmem:[%s1 + $0xec] sm:$0xf]
    %v92 = vld [vmem:[%s1 + $0xf0] sm:$0xf]
    %v93 = vld [vmem:[%s1 + $0xf4] sm:$0xf]
    %v94 = vld [vmem:[%s1 + $0xf8] sm:$0xf]
    %v95 = vld [vmem:[%s1 + $0xfc] sm:$0xf]
    %v96 = vld [vmem:[%s1 + $0x100] sm:$0xf]
    %v97 = vld [vmem:[%s1 + $0x104] sm:$0xf]
    %v98 = vld [vmem:[%s1 + $0x108] sm:$0xf]
    %v99 = vld [vmem:[%s1 + $0x10c] sm:$0xf]
    %v100 = vld [vmem:[%s1 + $0x110] sm:$0xf]
    %v101 = vld [vmem:[%s1 + $0x114] sm:$0xf]
    %v102 = vld [vmem:[%s1 + $0x118] sm:$0xf]
    %v103 = vld [vmem:[%s1 + $0x11c] sm:$0xf]
    %v104 = vld [vmem:[%s1 + $0x120] sm:$0xf]
    %v105 = vld [vmem:[%s1 + $0x124] sm:$0xf]
    %v106 = vld [vmem:[%s1 + $0x128] sm:$0xf]
    %v107 = vld [vmem:[%s1 + $0x12c] sm:$0xf]
    %v108 = vld [vmem:[%s1 + $0x130] sm:$0xf]
    %v109 = vld [vmem:[%s1 + $0x134] sm:$0xf]
    %v110 = vld [vmem:[%s1 + $0x138] sm:$0xf]
    %v111 = vld [vmem:[%s1 + $0x13c] sm:$0xf]
    %v112 = vld [vmem:[%s1 + $0x140] sm:$0xf]
    %v113 = vld [vmem:[%s1 + $0x144] sm:$0xf]
    %v114 = vld [vmem:[%s1 + $0x148] sm:$0xf]
    %v115 = vld [vmem:[%s1 + $0x14c] sm:$0xf]
    %v116 = vld [vmem:[%s1 + $0x150] sm:$0xf]
    %v117 = vld [vmem:[%s1 + $0x154] sm:$0xf]
    %v118 = vld [vmem:[%s1 + $0x158] sm:$0xf]
    %v119 = vld [vmem:[%s1 + $0x15c] sm:$0xf]
    %v120 = vld [vmem:[%s1 + $0x160] sm:$0xf]
    %v121 = vld [vmem:[%s1 + $0x164] sm:$0xf]
    %v122 = vld [vmem:[%s1 + $0x168] sm:$0xf]
    %v123 = vld [vmem:[%s1 + $0x16c] sm:$0xf]
    %v124 = vld [vmem:[%s1 + $0x170] sm:$0xf]
    %v125 = vld [vmem:[%s1 + $0x174] sm:$0xf]
    %v126 = vld [vmem:[%s1 + $0x178] sm:$0xf]
    %v127 = vld [vmem:[%s1 + $0x17c] sm:$0xf]
    %v128 = vld [vmem:[%s1 + $0x180] sm:$0xf]
    %v129 = vld [vmem:[%s1 + $0x184] sm:$0xf]
    %v130 = vld [vmem:[%s1 + $0x188] sm:$0xf]
    %v131 = vld [vmem:[%s1 + $0x18c] sm:$0xf]
    %v132 = vld [vmem:[%s1 + $0x190] sm:$0xf]
    %v133 = vld [vmem:[%s1 + $0x194] sm:$0xf]
    %v134 = vld [vmem:[%s1 + $0x198] sm:$0xf]
    %v135 = vld [vmem:[%s1 + $0x19c] sm:$0xf]
    %v136 = vld [vmem:[%s1 + $0x1a0] sm:$0xf]
    %v137 = vld [vmem:[%s1 + $0x1a4] sm:$0xf]
    %v138 = vld [vmem:[%s1 + $0x1a8] sm:$0xf]
    %v139 = vld [vmem:[%s1 + $0x1ac] sm:$0xf]
    %v140 = vld [vmem:[%s1 + $0x1b0] sm:$0xf]
    %v141 = vld [vmem:[%s1 + $0x1b4] sm:$0xf]
    %v142 = vld [vmem:[%s1 + $0x1b8] sm:$0xf]
    %v143 = vld [vmem:[%s1 + $0x1bc] sm:$0xf]
    %v144 = vld [vmem:[%s1 + $0x1c0] sm:$0xf]
    %v145 = vld [vmem:[%s1 + $0x1c4] sm:$0xf]
    %v146 = vld [vmem:[%s1 + $0x1c8] sm:$0xf]
    %v147 = vld [vmem:[%s1 + $0x1cc] sm:$0xf]
    %v148 = vld [vmem:[%s1 + $0x1d0] sm:$0xf]
    %v149 = vld [vmem:[%s1 + $0x1d4] sm:$0xf]
    %v150 = vld [vmem:[%s1 + $0x1d8] sm:$0xf]
    %v151 = vld [vmem:[%s1 + $0x1dc] sm:$0xf]
    %v152 = vld [vmem:[%s1 + $0x1e0] sm:$0xf]
    %v153 = vld [vmem:[%s1 + $0x1e4] sm:$0xf]
    %v154 = vld [vmem:[%s1 + $0x1e8] sm:$0xf]
    %v155 = vld [vmem:[%s1 + $0x1ec] sm:$0xf]
    %v156 = vld [vmem:[%s1 + $0x1f0] sm:$0xf]
    %v157 = vld [vmem:[%s1 + $0x1f4] sm:$0xf]
    %v158 = vld [vmem:[%s1 + $0x1f8] sm:$0xf]
    %v159 = vld [vmem:[%s1 + $0x1fc] sm:$0xf]
    %v160 = vld [vmem:[%s1 + $0x200] sm:$0xf]
    %v161 = vld [vmem:[%s1 + $0x204] sm:$0xf]
    %v162 = vld [vmem:[%s1 + $0x208] sm:$0xf]
    %v163 = vld [vmem:[%s1 + $0x20c] sm:$0xf]
    %v164 = vld [vmem:[%s1 + $0x210] sm:$0xf]
    %v165 = vld [vmem:[%s1 + $0x214] sm:$0xf]
    %v166 = vld [vmem:[%s1 + $0x218] sm:$0xf]
    %v167 = vld [vmem:[%s1 + $0x21c] sm:$0xf]
    %v168 = vld [vmem:[%s1 + $0x220] sm:$0xf]
    %v169 = vld [vmem:[%s1 + $0x224] sm:$0xf]
    %v170 = vld [vmem:[%s1 + $0x228] sm:$0xf]
    %v171 = vld [vmem:[%s1 + $0x22c] sm:$0xf]
    %v172 = vld [vmem:[%s1 + $0x230] sm:$0xf]
    %v173 = vld [vmem:[%s1 + $0x234] sm:$0xf]
    %v174 = vld [vmem:[%s1 + $0x238] sm:$0xf]
    %v175 = vld [vmem:[%s1 + $0x23c] sm:$0xf]
    %v176 = vld [vmem:[%s1 + $0x240] sm:$0xf]
    %v177 = vld [vmem:[%s1 + $0x244] sm:$0xf]
    %v178 = vld [vmem:[%s1 + $0x248] sm:$0xf]
    %v179 = vld [vmem:[%s1 + $0x24c] sm:$0xf]
    %v180 = vld [vmem:[%s1 + $0x250] sm:$0xf]
    %v181 = vld [vmem:[%s1 + $0x254] sm:$0xf]
    %v182 = vld [vmem:[%s1 + $0x258] sm:$0xf]
    %v183 = vld [vmem:[%s1 + $0x25c] sm:$0xf]
    %v184 = vld [vmem:[%s1 + $0x260] sm:$0xf]
    %v185 = vld [vmem:[%s1 + $0x264] sm:$0xf]
    %v186 = vld [vmem:[%s1 + $0x268] sm:$0xf]
    %v187 = vld [vmem:[%s1 + $0x26c] sm:$0xf]
    %v188 = vld [vmem:[%s1 + $0x270] sm:$0xf]
    %v189 = vld [vmem:[%s1 + $0x274] sm:$0xf]
    %v190 = vld [vmem:[%s1 + $0x278] sm:$0xf]
    %v191 = vld [vmem:[%s1 + $0x27c] sm:$0xf]
    %v192 = vld [vmem:[%s1 + $0x280] sm:$0xf]
    %v193 = vld [vmem:[%s1 + $0x284] sm:$0xf]
    %v194 = vld [vmem:[%s1 + $0x288] sm:$0xf]
    %v195 = vld [vmem:[%s1 + $0x28c] sm:$0xf]
    %v196 = vld [vmem:[%s1 + $0x290] sm:$0xf]
    %v197 = vld [vmem:[%s1 + $0x294] sm:$0xf]
    %v198 = vld [vmem:[%s1 + $0x298] sm:$0xf]
    %v199 = vld [vmem:[%s1 + $0x29c] sm:$0xf]
    %v200 = vld [vmem:[%s1 + $0x2a0] sm:$0xf]
    %v201 = vld [vmem:[%s1 + $0x2a4] sm:$0xf]
    %v202 = vld [vmem:[%s1 + $0x2a8] sm:$0xf]
    %v203 = vld [vmem:[%s1 + $0x2ac] sm:$0xf]
    %v204 = vld [vmem:[%s1 + $0x2b0] sm:$0xf]
    %v205 = vld [vmem:[%s1 + $0x2b4] sm:$0xf]
    %v206 = vld [vmem:[%s1 + $0x2b8] sm:$0xf]
    %v207 = vld [vmem:[%s1 + $0x2bc] sm:$0xf]
    %v208 = vld [vmem:[%s1 + $0x2c0] sm:$0xf]
    %v209 = vld [vmem:[%s1 + $0x2c4] sm:$0xf]
    %v210 = vld [vmem:[%s1 + $0x2c8] sm:$0xf]
    %v211 = vld [vmem:[%s1 + $0x2cc] sm:$0xf]
    %v212 = vld [vmem:[%s1 + $0x2d0] sm:$0xf]
    %v213 = vld [vmem:[%s1 + $0x2d4] sm:$0xf]
    %v214 = vld [vmem:[%s1 + $0x2d8] sm:$0xf]
    %v215 = vld [vmem:[%s1 + $0x2dc] sm:$0xf]
    %v216 = vld [vmem:[%s1 + $0x2e0] sm:$0xf]
    %v217 = vld [vmem:[%s1 + $0x2e4] sm:$0xf]
    %v218 = vld [vmem:[%s1 + $0x2e8] sm:$0xf]
    %v219 = vld [vmem:[%s1 + $0x2ec] sm:$0xf]
    %v220 = vld [vmem:[%s1 + $0x2f0] sm:$0xf]
    %v221 = vld [vmem:[%s1 + $0x2f4] sm:$0xf]
    %v222 = vld [vmem:[%s1 + $0x2f8] sm:$0xf]
    %v223 = vld [vmem:[%s1 + $0x2fc] sm:$0xf]
    %v224 = vld [vmem:[%s1 + $0x300] sm:$0xf]
    %v225 = vld [vmem:[%s1 + $0x304] sm:$0xf]
    %v226 = vld [vmem:[%s1 + $0x308] sm:$0xf]
    %v227 = vld [vmem:[%s1 + $0x30c] sm:$0xf]
    %v228 = vld [vmem:[%s2] sm:$0x1]
    %v230 = vlaneseq
    %v231 = vshrl.u32 %v230, 7
    %v232 = vsub.s32 0, %v231
    %v233 = vrot.slane %v228, %v232
    %v251 = vcombine.low %v16, %v18
    %v252 = vcombine.high %v16, %v18
    %v253 = vcombine.low %v20, %v22
    %v254 = vcombine.high %v20, %v22
    %v255 = vcombine.low %v24, %v26
    %v256 = vcombine.high %v24, %v26
    %v257 = vcombine.low %v28, %v30
    %v258 = vcombine.high %v28, %v30
    %v260 = vunpack.c.l.s4 1966171168
    %v261 = vunpack.c.0.s8 %v260
    %v262 = vlaneseq
    %v263 = vshrl.u32 %v262, 7
    %v264 = vsub.s32 %v261, %v263
    %v265 = vrot.slane %v251, %v264
    %v267 = vunpack.c.l.s4 1966171168
    %v268 = vunpack.c.0.s8 %v267
    %v269 = vlaneseq
    %v270 = vshrl.u32 %v269, 7
    %v271 = vsub.s32 %v268, %v270
    %v272 = vrot.slane %v252, %v271
    %v274 = vunpack.c.l.s4 1966171168
    %v275 = vunpack.c.0.s8 %v274
    %v276 = vlaneseq
    %v277 = vshrl.u32 %v276, 7
    %v278 = vsub.s32 %v275, %v277
    %v279 = vrot.slane %v253, %v278
    %v281 = vunpack.c.l.s4 1966171168
    %v282 = vunpack.c.0.s8 %v281
    %v283 = vlaneseq
    %v284 = vshrl.u32 %v283, 7
    %v285 = vsub.s32 %v282, %v284
    %v286 = vrot.slane %v254, %v285
    %v288 = vunpack.c.l.s4 1966171168
    %v289 = vunpack.c.0.s8 %v288
    %v290 = vlaneseq
    %v291 = vshrl.u32 %v290, 7
    %v292 = vsub.s32 %v289, %v291
    %v293 = vrot.slane %v255, %v292
    %v295 = vunpack.c.l.s4 1966171168
    %v296 = vunpack.c.0.s8 %v295
    %v297 = vlaneseq
    %v298 = vshrl.u32 %v297, 7
    %v299 = vsub.s32 %v296, %v298
    %v300 = vrot.slane %v256, %v299
    %v302 = vunpack.c.l.s4 1966171168
    %v303 = vunpack.c.0.s8 %v302
    %v304 = vlaneseq
    %v305 = vshrl.u32 %v304, 7
    %v306 = vsub.s32 %v303, %v305
    %v307 = vrot.slane %v257, %v306
    %v309 = vunpack.c.l.s4 1966171168
    %v310 = vunpack.c.0.s8 %v309
    %v311 = vlaneseq
    %v312 = vshrl.u32 %v311, 7
    %v313 = vsub.s32 %v310, %v312
    %v314 = vrot.slane %v258, %v313
    %v315 = vcombine.low %v265, %v279
    %v316 = vcombine.high %v265, %v279
    %v317 = vcombine.low %v272, %v286
    %v318 = vcombine.high %v272, %v286
    %v319 = vcombine.low %v293, %v307
    %v320 = vcombine.high %v293, %v307
    %v321 = vcombine.low %v300, %v314
    %v322 = vcombine.high %v300, %v314
    %v324 = vunpack.c.l.s4 1966171168
    %v325 = vunpack.c.0.s8 %v324
    %v326 = vlaneseq
    %v327 = vshrl.u32 %v326, 7
    %v328 = vsub.s32 %v325, %v327
    %v329 = vrot.slane %v315, %v328
    %v331 = vunpack.c.l.s4 1966171168
    %v332 = vunpack.c.0.s8 %v331
    %v333 = vlaneseq
    %v334 = vshrl.u32 %v333, 7
    %v335 = vsub.s32 %v332, %v334
    %v336 = vrot.slane %v317, %v335
    %v338 = vunpack.c.l.s4 1966171168
    %v339 = vunpack.c.0.s8 %v338
    %v340 = vlaneseq
    %v341 = vshrl.u32 %v340, 7
    %v342 = vsub.s32 %v339, %v341
    %v343 = vrot.slane %v316, %v342
    %v345 = vunpack.c.l.s4 1966171168
    %v346 = vunpack.c.0.s8 %v345
    %v347 = vlaneseq
    %v348 = vshrl.u32 %v347, 7
    %v349 = vsub.s32 %v346, %v348
    %v350 = vrot.slane %v318, %v349
    %v352 = vunpack.c.l.s4 1966171168
    %v353 = vunpack.c.0.s8 %v352
    %v354 = vlaneseq
    %v355 = vshrl.u32 %v354, 7
    %v356 = vsub.s32 %v353, %v355
    %v357 = vrot.slane %v319, %v356
    %v359 = vunpack.c.l.s4 1966171168
    %v360 = vunpack.c.0.s8 %v359
    %v361 = vlaneseq
    %v362 = vshrl.u32 %v361, 7
    %v363 = vsub.s32 %v360, %v362
    %v364 = vrot.slane %v321, %v363
    %v366 = vunpack.c.l.s4 1966171168
    %v367 = vunpack.c.0.s8 %v366
    %v368 = vlaneseq
    %v369 = vshrl.u32 %v368, 7
    %v370 = vsub.s32 %v367, %v369
    %v371 = vrot.slane %v320, %v370
    %v373 = vunpack.c.l.s4 1966171168
    %v374 = vunpack.c.0.s8 %v373
    %v375 = vlaneseq
    %v376 = vshrl.u32 %v375, 7
    %v377 = vsub.s32 %v374, %v376
    %v378 = vrot.slane %v322, %v377
    %v379 = vcombine.low %v329, %v357
    %v380 = vcombine.high %v329, %v357
    %v381 = vcombine.low %v336, %v364
    %v382 = vcombine.high %v336, %v364
    %v383 = vcombine.low %v343, %v371
    %v384 = vcombine.high %v343, %v371
    %v385 = vcombine.low %v350, %v378
    %v386 = vcombine.high %v350, %v378
    %v387 = vcombine.low %v17, %v19
    %v388 = vcombine.high %v17, %v19
    %v389 = vcombine.low %v21, %v23
    %v390 = vcombine.high %v21, %v23
    %v391 = vcombine.low %v25, %v27
    %v392 = vcombine.high %v25, %v27
    %v393 = vcombine.low %v29, %v31
    %v394 = vcombine.high %v29, %v31
    %v396 = vunpack.c.l.s4 1966171168
    %v397 = vunpack.c.0.s8 %v396
    %v398 = vlaneseq
    %v399 = vshrl.u32 %v398, 7
    %v400 = vsub.s32 %v397, %v399
    %v401 = vrot.slane %v387, %v400
    %v403 = vunpack.c.l.s4 1966171168
    %v404 = vunpack.c.0.s8 %v403
    %v405 = vlaneseq
    %v406 = vshrl.u32 %v405, 7
    %v407 = vsub.s32 %v404, %v406
    %v408 = vrot.slane %v388, %v407
    %v410 = vunpack.c.l.s4 1966171168
    %v411 = vunpack.c.0.s8 %v410
    %v412 = vlaneseq
    %v413 = vshrl.u32 %v412, 7
    %v414 = vsub.s32 %v411, %v413
    %v415 = vrot.slane %v389, %v414
    %v417 = vunpack.c.l.s4 1966171168
    %v418 = vunpack.c.0.s8 %v417
    %v419 = vlaneseq
    %v420 = vshrl.u32 %v419, 7
    %v421 = vsub.s32 %v418, %v420
    %v422 = vrot.slane %v390, %v421
    %v424 = vunpack.c.l.s4 1966171168
    %v425 = vunpack.c.0.s8 %v424
    %v426 = vlaneseq
    %v427 = vshrl.u32 %v426, 7
    %v428 = vsub.s32 %v425, %v427
    %v429 = vrot.slane %v391, %v428
    %v431 = vunpack.c.l.s4 1966171168
    %v432 = vunpack.c.0.s8 %v431
    %v433 = vlaneseq
    %v434 = vshrl.u32 %v433, 7
    %v435 = vsub.s32 %v432, %v434
    %v436 = vrot.slane %v392, %v435
    %v438 = vunpack.c.l.s4 1966171168
    %v439 = vunpack.c.0.s8 %v438
    %v440 = vlaneseq
    %v441 = vshrl.u32 %v440, 7
    %v442 = vsub.s32 %v439, %v441
    %v443 = vrot.slane %v393, %v442
    %v445 = vunpack.c.l.s4 1966171168
    %v446 = vunpack.c.0.s8 %v445
    %v447 = vlaneseq
    %v448 = vshrl.u32 %v447, 7
    %v449 = vsub.s32 %v446, %v448
    %v450 = vrot.slane %v394, %v449
    %v451 = vcombine.low %v401, %v415
    %v452 = vcombine.high %v401, %v415
    %v453 = vcombine.low %v408, %v422
    %v454 = vcombine.low %v429, %v443
    %v455 = vcombine.high %v429, %v443
    %v456 = vcombine.low %v436, %v450
    %v458 = vunpack.c.l.s4 1966171168
    %v459 = vunpack.c.0.s8 %v458
    %v460 = vlaneseq
    %v461 = vshrl.u32 %v460, 7
    %v462 = vsub.s32 %v459, %v461
    %v463 = vrot.slane %v451, %v462
    %v465 = vunpack.c.l.s4 1966171168
    %v466 = vunpack.c.0.s8 %v465
    %v467 = vlaneseq
    %v468 = vshrl.u32 %v467, 7
    %v469 = vsub.s32 %v466, %v468
    %v470 = vrot.slane %v453, %v469
    %v472 = vunpack.c.l.s4 1966171168
    %v473 = vunpack.c.0.s8 %v472
    %v474 = vlaneseq
    %v475 = vshrl.u32 %v474, 7
    %v476 = vsub.s32 %v473, %v475
    %v477 = vrot.slane %v452, %v476
    %v479 = vunpack.c.l.s4 1966171168
    %v480 = vunpack.c.0.s8 %v479
    %v481 = vlaneseq
    %v482 = vshrl.u32 %v481, 7
    %v483 = vsub.s32 %v480, %v482
    %v484 = vrot.slane %v454, %v483
    %v486 = vunpack.c.l.s4 1966171168
    %v487 = vunpack.c.0.s8 %v486
    %v488 = vlaneseq
    %v489 = vshrl.u32 %v488, 7
    %v490 = vsub.s32 %v487, %v489
    %v491 = vrot.slane %v456, %v490
    %v493 = vunpack.c.l.s4 1966171168
    %v494 = vunpack.c.0.s8 %v493
    %v495 = vlaneseq
    %v496 = vshrl.u32 %v495, 7
    %v497 = vsub.s32 %v494, %v496
    %v498 = vrot.slane %v455, %v497
    %v499 = vcombine.low %v463, %v484
    %v500 = vcombine.high %v463, %v484
    %v501 = vcombine.low %v470, %v491
    %v502 = vcombine.low %v477, %v498
    %v503 = vcombine.high %v477, %v498
    %v712 = vunpack.c.l.b16 %v32
    %v713 = vunpack.c.l.b16 %v33
    %v714 = vunpack.c.l.b16 %v34
    %v715 = vunpack.c.l.b16 %v35
    %v716 = vunpack.c.l.b16 %v36
    %v717 = vunpack.c.l.b16 %v37
    %v718 = vunpack.c.l.b16 %v38
    %v719 = vunpack.c.l.b16 %v39
    %v720 = vunpack.c.l.b16 %v40
    %v721 = vunpack.c.l.b16 %v41
    %v722 = vunpack.c.l.b16 %v42
    %v723 = vunpack.c.l.b16 %v43
    %v724 = vunpack.c.l.b16 %v44
    %v725 = vunpack.c.l.b16 %v45
    %v726 = vunpack.c.l.b16 %v46
    %v727 = vunpack.c.l.b16 %v47
    %v728 = vunpack.c.l.b16 %v48
    %v729 = vunpack.c.l.b16 %v49
    %v730 = vunpack.c.l.b16 %v50
    %v731 = vunpack.c.l.b16 %v51
    %v732 = vunpack.c.l.b16 %v52
    %v733 = vunpack.c.l.b16 %v53
    %v734 = vunpack.c.l.b16 %v54
    %v735 = vunpack.c.l.b16 %v55
    %v736 = vunpack.c.l.b16 %v56
    %v737 = vunpack.c.l.b16 %v57
    %v738 = vunpack.c.l.b16 %v58
    %v739 = vunpack.c.l.b16 %v59
    %v740 = vunpack.c.l.b16 %v60
    %v741 = vunpack.c.l.b16 %v61
    %v742 = vunpack.c.l.b16 %v62
    %v743 = vunpack.c.l.b16 %v63
    %v744 = vunpack.c.l.b16 %v64
    %v745 = vunpack.c.l.b16 %v65
    %v746 = vunpack.c.l.b16 %v66
    %v747 = vunpack.c.l.b16 %v67
    %v748 = vunpack.c.l.b16 %v68
    %v749 = vunpack.c.l.b16 %v69
    %v750 = vunpack.c.l.b16 %v70
    %v751 = vunpack.c.l.b16 %v71
    %v752 = vunpack.c.l.b16 %v72
    %v753 = vunpack.c.l.b16 %v73
    %v754 = vunpack.c.l.b16 %v74
    %v755 = vunpack.c.l.b16 %v75
    %v756 = vunpack.c.l.b16 %v76
    %v757 = vunpack.c.l.b16 %v77
    %v758 = vunpack.c.l.b16 %v78
    %v759 = vunpack.c.l.b16 %v79
    %v760 = vunpack.c.l.b16 %v80
    %v761 = vunpack.c.l.b16 %v81
    %v762 = vunpack.c.l.b16 %v82
    %v763 = vunpack.c.l.b16 %v83
    %v764 = vunpack.c.l.b16 %v84
    %v765 = vunpack.c.l.b16 %v85
    %v766 = vunpack.c.l.b16 %v86
    %v767 = vunpack.c.l.b16 %v87
    %v768 = vunpack.c.l.b16 %v88
    %v769 = vunpack.c.l.b16 %v89
    %v770 = vunpack.c.l.b16 %v90
    %v771 = vunpack.c.l.b16 %v91
    %v772 = vunpack.c.l.b16 %v92
    %v773 = vunpack.c.l.b16 %v93
    %v774 = vunpack.c.l.b16 %v94
    %v775 = vunpack.c.l.b16 %v95
    %v776 = vunpack.c.l.b16 %v96
    %v777 = vunpack.c.l.b16 %v97
    %v778 = vunpack.c.l.b16 %v98
    %v779 = vunpack.c.l.b16 %v99
    %v780 = vunpack.c.l.b16 %v100
    %v781 = vunpack.c.l.b16 %v101
    %v782 = vunpack.c.l.b16 %v102
    %v783 = vunpack.c.l.b16 %v103
    %v784 = vunpack.c.l.b16 %v104
    %v785 = vunpack.c.l.b16 %v105
    %v786 = vunpack.c.l.b16 %v106
    %v787 = vunpack.c.l.b16 %v107
    %v788 = vunpack.c.l.b16 %v108
    %v789 = vunpack.c.l.b16 %v109
    %v790 = vunpack.c.l.b16 %v110
    %v791 = vunpack.c.l.b16 %v111
    %v792 = vunpack.c.l.b16 %v112
    %v793 = vunpack.c.l.b16 %v113
    %v794 = vunpack.c.l.b16 %v114
    %v795 = vunpack.c.l.b16 %v115
    %v796 = vunpack.c.l.b16 %v116
    %v797 = vunpack.c.l.b16 %v117
    %v798 = vunpack.c.l.b16 %v118
    %v799 = vunpack.c.l.b16 %v119
    %v800 = vunpack.c.l.b16 %v120
    %v801 = vunpack.c.l.b16 %v121
    %v802 = vunpack.c.l.b16 %v122
    %v803 = vunpack.c.l.b16 %v123
    %v804 = vunpack.c.l.b16 %v124
    %v805 = vunpack.c.l.b16 %v125
    %v806 = vunpack.c.l.b16 %v126
    %v807 = vunpack.c.l.b16 %v127
    %v808 = vunpack.c.l.b16 %v128
    %v809 = vunpack.c.l.b16 %v129
    %v810 = vunpack.c.l.b16 %v130
    %v811 = vunpack.c.l.b16 %v131
    %v812 = vunpack.c.l.b16 %v132
    %v813 = vunpack.c.l.b16 %v133
    %v814 = vunpack.c.l.b16 %v134
    %v815 = vunpack.c.l.b16 %v135
    %v816 = vunpack.c.l.b16 %v136
    %v817 = vunpack.c.l.b16 %v137
    %v818 = vunpack.c.l.b16 %v138
    %v819 = vunpack.c.l.b16 %v139
    %v820 = vunpack.c.l.b16 %v140
    %v821 = vunpack.c.l.b16 %v141
    %v822 = vunpack.c.l.b16 %v142
    %v823 = vunpack.c.l.b16 %v143
    %v824 = vunpack.c.l.b16 %v144
    %v825 = vunpack.c.l.b16 %v145
    %v826 = vunpack.c.l.b16 %v146
    %v827 = vunpack.c.l.b16 %v147
    %v828 = vunpack.c.l.b16 %v148
    %v829 = vunpack.c.l.b16 %v149
    %v830 = vunpack.c.l.b16 %v150
    %v831 = vunpack.c.l.b16 %v151
    %v832 = vunpack.c.l.b16 %v152
    %v833 = vunpack.c.l.b16 %v153
    %v834 = vunpack.c.l.b16 %v154
    %v835 = vunpack.c.l.b16 %v155
    %v836 = vunpack.c.l.b16 %v156
    %v837 = vunpack.c.l.b16 %v157
    %v838 = vunpack.c.l.b16 %v158
    %v839 = vunpack.c.l.b16 %v159
    %v840 = vunpack.c.l.b16 %v160
    %v841 = vunpack.c.l.b16 %v161
    %v842 = vunpack.c.l.b16 %v162
    %v843 = vunpack.c.l.b16 %v163
    %v844 = vunpack.c.l.b16 %v164
    %v845 = vunpack.c.l.b16 %v165
    %v846 = vunpack.c.l.b16 %v166
    %v847 = vunpack.c.l.b16 %v167
    %v848 = vunpack.c.l.b16 %v168
    %v849 = vunpack.c.l.b16 %v169
    %v850 = vunpack.c.l.b16 %v170
    %v851 = vunpack.c.l.b16 %v171
    %v852 = vunpack.c.l.b16 %v172
    %v853 = vunpack.c.l.b16 %v173
    %v854 = vunpack.c.l.b16 %v174
    %v855 = vunpack.c.l.b16 %v175
    %v856 = vunpack.c.l.b16 %v176
    %v857 = vunpack.c.l.b16 %v177
    %v858 = vunpack.c.l.b16 %v178
    %v859 = vunpack.c.l.b16 %v179
    %v860 = vunpack.c.l.b16 %v180
    %v861 = vunpack.c.l.b16 %v181
    %v862 = vunpack.c.l.b16 %v182
    %v863 = vunpack.c.l.b16 %v183
    %v864 = vunpack.c.l.b16 %v184
    %v865 = vunpack.c.l.b16 %v185
    %v866 = vunpack.c.l.b16 %v186
    %v867 = vunpack.c.l.b16 %v187
    %v868 = vunpack.c.l.b16 %v188
    %v869 = vunpack.c.l.b16 %v189
    %v870 = vunpack.c.l.b16 %v190
    %v871 = vunpack.c.l.b16 %v191
    %v872 = vunpack.c.l.b16 %v192
    %v873 = vunpack.c.l.b16 %v193
    %v874 = vunpack.c.l.b16 %v194
    %v875 = vunpack.c.l.b16 %v195
    %v876 = vunpack.c.l.b16 %v196
    %v877 = vunpack.c.l.b16 %v197
    %v878 = vunpack.c.l.b16 %v198
    %v879 = vunpack.c.l.b16 %v199
    %v880 = vunpack.c.l.b16 %v200
    %v881 = vunpack.c.l.b16 %v201
    %v882 = vunpack.c.l.b16 %v202
    %v883 = vunpack.c.l.b16 %v203
    %v884 = vunpack.c.l.b16 %v204
    %v885 = vunpack.c.l.b16 %v205
    %v886 = vunpack.c.l.b16 %v206
    %v887 = vunpack.c.l.b16 %v207
    %v888 = vunpack.c.l.b16 %v208
    %v889 = vunpack.c.l.b16 %v209
    %v890 = vunpack.c.l.b16 %v210
    %v891 = vunpack.c.l.b16 %v211
    %v892 = vunpack.c.l.b16 %v212
    %v893 = vunpack.c.l.b16 %v213
    %v894 = vunpack.c.l.b16 %v214
    %v895 = vunpack.c.l.b16 %v215
    %v896 = vunpack.c.l.b16 %v216
    %v897 = vunpack.c.l.b16 %v217
    %v898 = vunpack.c.l.b16 %v218
    %v899 = vunpack.c.l.b16 %v219
    %v900 = vunpack.c.l.b16 %v220
    %v901 = vunpack.c.l.b16 %v221
    %v902 = vunpack.c.l.b16 %v222
    %v903 = vunpack.c.l.b16 %v223
    %v904 = vunpack.c.l.b16 %v224
    %v905 = vunpack.c.l.b16 %v225
    %v906 = vunpack.c.l.b16 %v226
    %v907 = vunpack.c.l.b16 %v227
    %v908 = vpack.c.b16 %v713, %v712
    %v909 = vpack.c.b16 %v715, %v714
    %v910 = vpack.c.b16 %v717, %v716
    %v911 = vpack.c.b16 %v719, %v718
    %v912 = vpack.c.b16 %v721, %v720
    %v913 = vpack.c.b16 %v723, %v722
    %v914 = vpack.c.b16 %v725, %v724
    %v915 = vpack.c.b16 %v727, %v726
    %v916 = vpack.c.b16 %v729, %v728
    %v917 = vpack.c.b16 %v731, %v730
    %v918 = vpack.c.b16 %v733, %v732
    %v919 = vpack.c.b16 %v735, %v734
    %v920 = vpack.c.b16 %v737, %v736
    %v921 = vpack.c.b16 %v739, %v738
    %v922 = vpack.c.b16 %v741, %v740
    %v923 = vpack.c.b16 %v743, %v742
    %v924 = vpack.c.b16 %v745, %v744
    %v925 = vpack.c.b16 %v747, %v746
    %v926 = vpack.c.b16 %v749, %v748
    %v927 = vpack.c.b16 %v751, %v750
    %v928 = vpack.c.b16 %v753, %v752
    %v929 = vpack.c.b16 %v755, %v754
    %v930 = vpack.c.b16 %v757, %v756
    %v931 = vpack.c.b16 %v759, %v758
    %v932 = vpack.c.b16 %v761, %v760
    %v933 = vpack.c.b16 %v763, %v762
    %v934 = vpack.c.b16 %v765, %v764
    %v935 = vpack.c.b16 %v767, %v766
    %v936 = vpack.c.b16 %v769, %v768
    %v937 = vpack.c.b16 %v771, %v770
    %v938 = vpack.c.b16 %v773, %v772
    %v939 = vpack.c.b16 %v775, %v774
    %v940 = vpack.c.b16 %v777, %v776
    %v941 = vpack.c.b16 %v779, %v778
    %v942 = vpack.c.b16 %v781, %v780
    %v943 = vpack.c.b16 %v783, %v782
    %v944 = vpack.c.b16 %v785, %v784
    %v945 = vpack.c.b16 %v787, %v786
    %v946 = vpack.c.b16 %v789, %v788
    %v947 = vpack.c.b16 %v791, %v790
    %v948 = vpack.c.b16 %v793, %v792
    %v949 = vpack.c.b16 %v795, %v794
    %v950 = vpack.c.b16 %v797, %v796
    %v951 = vpack.c.b16 %v799, %v798
    %v952 = vpack.c.b16 %v801, %v800
    %v953 = vpack.c.b16 %v803, %v802
    %v954 = vpack.c.b16 %v805, %v804
    %v955 = vpack.c.b16 %v807, %v806
    %v956 = vpack.c.b16 %v809, %v808
    %v957 = vpack.c.b16 %v811, %v810
    %v958 = vpack.c.b16 %v813, %v812
    %v959 = vpack.c.b16 %v815, %v814
    %v960 = vpack.c.b16 %v817, %v816
    %v961 = vpack.c.b16 %v819, %v818
    %v962 = vpack.c.b16 %v821, %v820
    %v963 = vpack.c.b16 %v823, %v822
    %v964 = vpack.c.b16 %v825, %v824
    %v965 = vpack.c.b16 %v827, %v826
    %v966 = vpack.c.b16 %v829, %v828
    %v967 = vpack.c.b16 %v831, %v830
    %v968 = vpack.c.b16 %v833, %v832
    %v969 = vpack.c.b16 %v835, %v834
    %v970 = vpack.c.b16 %v837, %v836
    %v971 = vpack.c.b16 %v839, %v838
    %v972 = vpack.c.b16 %v841, %v840
    %v973 = vpack.c.b16 %v843, %v842
    %v974 = vpack.c.b16 %v845, %v844
    %v975 = vpack.c.b16 %v847, %v846
    %v976 = vpack.c.b16 %v849, %v848
    %v977 = vpack.c.b16 %v851, %v850
    %v978 = vpack.c.b16 %v853, %v852
    %v979 = vpack.c.b16 %v855, %v854
    %v980 = vpack.c.b16 %v857, %v856
    %v981 = vpack.c.b16 %v859, %v858
    %v982 = vpack.c.b16 %v861, %v860
    %v983 = vpack.c.b16 %v863, %v862
    %v984 = vpack.c.b16 %v865, %v864
    %v985 = vpack.c.b16 %v867, %v866
    %v986 = vpack.c.b16 %v869, %v868
    %v987 = vpack.c.b16 %v871, %v870
    %v988 = vpack.c.b16 %v873, %v872
    %v989 = vpack.c.b16 %v875, %v874
    %v990 = vpack.c.b16 %v877, %v876
    %v991 = vpack.c.b16 %v879, %v878
    %v992 = vpack.c.b16 %v881, %v880
    %v993 = vpack.c.b16 %v883, %v882
    %v994 = vpack.c.b16 %v885, %v884
    %v995 = vpack.c.b16 %v887, %v886
    %v996 = vpack.c.b16 %v889, %v888
    %v997 = vpack.c.b16 %v891, %v890
    %v998 = vpack.c.b16 %v893, %v892
    %v999 = vpack.c.b16 %v895, %v894
    %v1000 = vpack.c.b16 %v897, %v896
    %v1001 = vpack.c.b16 %v899, %v898
    %v1002 = vpack.c.b16 %v901, %v900
    %v1003 = vpack.c.b16 %v903, %v902
    %v1004 = vpack.c.b16 %v905, %v904
    %v1005 = vpack.c.b16 %v907, %v906
    %vm1104 = vcmask 261120
    %v1106 = vsel %vm1104, %v501, 0
    %1108 = vmatprep.subr.bf16.mxu0 0
    %1109 = vmatpush1.bf16.msra.mxu0 %v908
    %1110 = vmatprep.subr.bf16.mxu0 0
    %1111 = vmatpush1.bf16.msra.mxu0 %v909
    %1112 = vmatprep.subr.bf16.mxu0 0
    %1113 = vmatpush1.bf16.msra.mxu0 %v910
    %1114 = vmatprep.subr.bf16.mxu0 0
    %1115 = vmatpush1.bf16.msra.mxu0 %v911
    %1116 = vmatprep.subr.bf16.mxu0 0
    %1117 = vmatpush1.bf16.msra.mxu0 %v912
    %1118 = vmatprep.subr.bf16.mxu0 0
    %1119 = vmatpush1.bf16.msra.mxu0 %v913
    %1120 = vmatprep.subr.bf16.mxu0 0
    %1121 = vmatpush1.bf16.msra.mxu0 %v914
    %1122 = vmatprep.subr.bf16.mxu0 0
    %1123 = vmatpush1.bf16.msra.mxu0 %v915
    %1124 = vmatprep.subr.bf16.mxu0 0
    %1125 = vmatpush1.bf16.msra.mxu0 %v916
    %1126 = vmatprep.subr.bf16.mxu0 0
    %1127 = vmatpush1.bf16.msra.mxu0 %v917
    %1128 = vmatprep.subr.bf16.mxu0 0
    %1129 = vmatpush1.bf16.msra.mxu0 %v918
    %1130 = vmatprep.subr.bf16.mxu0 0
    %1131 = vmatpush1.bf16.msra.mxu0 %v919
    %1132 = vmatprep.subr.bf16.mxu0 0
    %1133 = vmatpush1.bf16.msra.mxu0 %v920
    %1134 = vmatprep.subr.bf16.mxu0 0
    %1135 = vmatpush1.bf16.msra.mxu0 %v921
    %1136 = vmatprep.subr.bf16.mxu0 0
    %1137 = vmatpush1.bf16.msra.mxu0 %v922
    %1138 = vmatprep.subr.bf16.mxu0 0
    %1139 = vmatpush1.bf16.msra.mxu0 %v923
    %1140 = vmatprep.mubr.bf16.mxu0 %v383
    %1141 = vmatmul.mubr.bf16.gmra.mrb[0].mxu0 %v379
    %v1142 = vpop.f32.mrb[0].mxu0
    %v1143 = vadd.f32 %v233, %v1142
    %v1144 = vpop.f32.mrb[0].mxu0
    %v1145 = vpop.f32.mrb[0].mxu0
    %v1146 = vadd.f32 %v233, %v1145
    %v1147 = vpop.f32.mrb[0].mxu0
    %1148 = vdwg.mxu0
    %1149 = vmatprep.subr.bf16.mxu0 0
    %1150 = vmatpush1.bf16.msra.mxu0 %v924
    %1151 = vmatprep.subr.bf16.mxu0 0
    %1152 = vmatpush1.bf16.msra.mxu0 %v925
    %1153 = vmatprep.subr.bf16.mxu0 0
    %1154 = vmatpush1.bf16.msra.mxu0 %v926
    %1155 = vmatprep.subr.bf16.mxu0 0
    %1156 = vmatpush1.bf16.msra.mxu0 %v927
    %1157 = vmatprep.subr.bf16.mxu0 0
    %1158 = vmatpush1.bf16.msra.mxu0 %v928
    %1159 = vmatprep.subr.bf16.mxu0 0
    %1160 = vmatpush1.bf16.msra.mxu0 %v929
    %1161 = vmatprep.subr.bf16.mxu0 0
    %1162 = vmatpush1.bf16.msra.mxu0 %v930
    %1163 = vmatprep.subr.bf16.mxu0 0
    %1164 = vmatpush1.bf16.msra.mxu0 %v931
    %1165 = vmatprep.subr.bf16.mxu0 0
    %1166 = vmatpush1.bf16.msra.mxu0 %v932
    %1167 = vmatprep.subr.bf16.mxu0 0
    %1168 = vmatpush1.bf16.msra.mxu0 %v933
    %1169 = vmatprep.subr.bf16.mxu0 0
    %1170 = vmatpush1.bf16.msra.mxu0 %v934
    %1171 = vmatprep.subr.bf16.mxu0 0
    %1172 = vmatpush1.bf16.msra.mxu0 %v935
    %1173 = vmatprep.subr.bf16.mxu0 0
    %1174 = vmatpush1.bf16.msra.mxu0 %v936
    %1175 = vmatprep.subr.bf16.mxu0 0
    %1176 = vmatpush1.bf16.msra.mxu0 %v937
    %1177 = vmatprep.subr.bf16.mxu0 0
    %1178 = vmatpush1.bf16.msra.mxu0 %v938
    %1179 = vmatprep.subr.bf16.mxu0 0
    %1180 = vmatpush1.bf16.msra.mxu0 %v939
    %1181 = vmatprep.mubr.bf16.mxu0 %v384
    %1182 = vmatmul.mubr.bf16.gmra.mrb[0].mxu0 %v380
    %v1183 = vpop.f32.mrb[0].mxu0
    %v1184 = vadd.f32 %v1143, %v1183
    %v1185 = vpop.f32.mrb[0].mxu0
    %v1186 = vpop.f32.mrb[0].mxu0
    %v1187 = vadd.f32 %v1146, %v1186
    %v1188 = vpop.f32.mrb[0].mxu0
    %1189 = vdwg.mxu0
    %1190 = vmatprep.subr.bf16.mxu0 0
    %1191 = vmatpush1.bf16.msra.mxu0 %v940
    %1192 = vmatprep.subr.bf16.mxu0 0
    %1193 = vmatpush1.bf16.msra.mxu0 %v941
    %1194 = vmatprep.subr.bf16.mxu0 0
    %1195 = vmatpush1.bf16.msra.mxu0 %v942
    %1196 = vmatprep.subr.bf16.mxu0 0
    %1197 = vmatpush1.bf16.msra.mxu0 %v943
    %1198 = vmatprep.subr.bf16.mxu0 0
    %1199 = vmatpush1.bf16.msra.mxu0 %v944
    %1200 = vmatprep.subr.bf16.mxu0 0
    %1201 = vmatpush1.bf16.msra.mxu0 %v945
    %1202 = vmatprep.subr.bf16.mxu0 0
    %1203 = vmatpush1.bf16.msra.mxu0 %v946
    %1204 = vmatprep.subr.bf16.mxu0 0
    %1205 = vmatpush1.bf16.msra.mxu0 %v947
    %1206 = vmatprep.subr.bf16.mxu0 0
    %1207 = vmatpush1.bf16.msra.mxu0 %v948
    %1208 = vmatprep.subr.bf16.mxu0 0
    %1209 = vmatpush1.bf16.msra.mxu0 %v949
    %1210 = vmatprep.subr.bf16.mxu0 0
    %1211 = vmatpush1.bf16.msra.mxu0 %v950
    %1212 = vmatprep.subr.bf16.mxu0 0
    %1213 = vmatpush1.bf16.msra.mxu0 %v951
    %1214 = vmatprep.subr.bf16.mxu0 0
    %1215 = vmatpush1.bf16.msra.mxu0 %v952
    %1216 = vmatprep.subr.bf16.mxu0 0
    %1217 = vmatpush1.bf16.msra.mxu0 %v953
    %1218 = vmatprep.subr.bf16.mxu0 0
    %1219 = vmatpush1.bf16.msra.mxu0 %v954
    %1220 = vmatprep.subr.bf16.mxu0 0
    %1221 = vmatpush1.bf16.msra.mxu0 %v955
    %1222 = vmatprep.mubr.bf16.mxu0 %v385
    %1223 = vmatmul.mubr.bf16.gmra.mrb[0].mxu0 %v381
    %v1224 = vpop.f32.mrb[0].mxu0
    %v1225 = vadd.f32 %v1184, %v1224
    %v1226 = vpop.f32.mrb[0].mxu0
    %v1227 = vpop.f32.mrb[0].mxu0
    %v1228 = vadd.f32 %v1187, %v1227
    %v1229 = vpop.f32.mrb[0].mxu0
    %1230 = vdwg.mxu0
    %1231 = vmatprep.subr.bf16.mxu0 0
    %1232 = vmatpush1.bf16.msra.mxu0 %v956
    %1233 = vmatprep.subr.bf16.mxu0 0
    %1234 = vmatpush1.bf16.msra.mxu0 %v957
    %1235 = vmatprep.subr.bf16.mxu0 0
    %1236 = vmatpush1.bf16.msra.mxu0 %v958
    %1237 = vmatprep.subr.bf16.mxu0 0
    %1238 = vmatpush1.bf16.msra.mxu0 %v959
    %1239 = vmatprep.subr.bf16.mxu0 0
    %1240 = vmatpush1.bf16.msra.mxu0 %v960
    %1241 = vmatprep.subr.bf16.mxu0 0
    %1242 = vmatpush1.bf16.msra.mxu0 %v961
    %1243 = vmatprep.subr.bf16.mxu0 0
    %1244 = vmatpush1.bf16.msra.mxu0 %v962
    %1245 = vmatprep.subr.bf16.mxu0 0
    %1246 = vmatpush1.bf16.msra.mxu0 %v963
    %1247 = vmatprep.subr.bf16.mxu0 0
    %1248 = vmatpush1.bf16.msra.mxu0 %v964
    %1249 = vmatprep.subr.bf16.mxu0 0
    %1250 = vmatpush1.bf16.msra.mxu0 %v965
    %1251 = vmatprep.subr.bf16.mxu0 0
    %1252 = vmatpush1.bf16.msra.mxu0 %v966
    %1253 = vmatprep.subr.bf16.mxu0 0
    %1254 = vmatpush1.bf16.msra.mxu0 %v967
    %1255 = vmatprep.subr.bf16.mxu0 0
    %1256 = vmatpush1.bf16.msra.mxu0 %v968
    %1257 = vmatprep.subr.bf16.mxu0 0
    %1258 = vmatpush1.bf16.msra.mxu0 %v969
    %1259 = vmatprep.subr.bf16.mxu0 0
    %1260 = vmatpush1.bf16.msra.mxu0 %v970
    %1261 = vmatprep.subr.bf16.mxu0 0
    %1262 = vmatpush1.bf16.msra.mxu0 %v971
    %1263 = vmatprep.mubr.bf16.mxu0 %v386
    %1264 = vmatmul.mubr.bf16.gmra.mrb[0].mxu0 %v382
    %v1265 = vpop.f32.mrb[0].mxu0
    %v1266 = vadd.f32 %v1225, %v1265
    %v1267 = vpop.f32.mrb[0].mxu0
    %v1268 = vpop.f32.mrb[0].mxu0
    %v1269 = vadd.f32 %v1228, %v1268
    %v1270 = vpop.f32.mrb[0].mxu0
    %1271 = vdwg.mxu0
    %1272 = vmatprep.subr.bf16.mxu0 0
    %1273 = vmatpush1.bf16.msra.mxu0 %v972
    %1274 = vmatprep.subr.bf16.mxu0 0
    %1275 = vmatpush1.bf16.msra.mxu0 %v973
    %1276 = vmatprep.subr.bf16.mxu0 0
    %1277 = vmatpush1.bf16.msra.mxu0 %v974
    %1278 = vmatprep.subr.bf16.mxu0 0
    %1279 = vmatpush1.bf16.msra.mxu0 %v975
    %1280 = vmatprep.subr.bf16.mxu0 0
    %1281 = vmatpush1.bf16.msra.mxu0 %v976
    %1282 = vmatprep.subr.bf16.mxu0 0
    %1283 = vmatpush1.bf16.msra.mxu0 %v977
    %1284 = vmatprep.subr.bf16.mxu0 0
    %1285 = vmatpush1.bf16.msra.mxu0 %v978
    %1286 = vmatprep.subr.bf16.mxu0 0
    %1287 = vmatpush1.bf16.msra.mxu0 %v979
    %1288 = vmatprep.subr.bf16.mxu0 0
    %1289 = vmatpush1.bf16.msra.mxu0 %v980
    %1290 = vmatprep.subr.bf16.mxu0 0
    %1291 = vmatpush1.bf16.msra.mxu0 %v981
    %1292 = vmatprep.subr.bf16.mxu0 0
    %1293 = vmatpush1.bf16.msra.mxu0 %v982
    %1294 = vmatprep.subr.bf16.mxu0 0
    %1295 = vmatpush1.bf16.msra.mxu0 %v983
    %1296 = vmatprep.subr.bf16.mxu0 0
    %1297 = vmatpush1.bf16.msra.mxu0 %v984
    %1298 = vmatprep.subr.bf16.mxu0 0
    %1299 = vmatpush1.bf16.msra.mxu0 %v985
    %1300 = vmatprep.subr.bf16.mxu0 0
    %1301 = vmatpush1.bf16.msra.mxu0 %v986
    %1302 = vmatprep.subr.bf16.mxu0 0
    %1303 = vmatpush1.bf16.msra.mxu0 %v987
    %1304 = vmatprep.mubr.bf16.mxu0 %v502
    %1305 = vmatmul.mubr.bf16.gmra.mrb[0].mxu0 %v499
    %v1306 = vpop.f32.mrb[0].mxu0
    %v1307 = vadd.f32 %v1266, %v1306
    %v1308 = vpop.f32.mrb[0].mxu0
    %v1309 = vpop.f32.mrb[0].mxu0
    %v1310 = vadd.f32 %v1269, %v1309
    %v1311 = vpop.f32.mrb[0].mxu0
    %1312 = vdwg.mxu0
    %1313 = vmatprep.subr.bf16.mxu0 0
    %1314 = vmatpush1.bf16.msra.mxu0 %v988
    %1315 = vmatprep.subr.bf16.mxu0 0
    %1316 = vmatpush1.bf16.msra.mxu0 %v989
    %1317 = vmatprep.subr.bf16.mxu0 0
    %1318 = vmatpush1.bf16.msra.mxu0 %v990
    %1319 = vmatprep.subr.bf16.mxu0 0
    %1320 = vmatpush1.bf16.msra.mxu0 %v991
    %1321 = vmatprep.subr.bf16.mxu0 0
    %1322 = vmatpush1.bf16.msra.mxu0 %v992
    %1323 = vmatprep.subr.bf16.mxu0 0
    %1324 = vmatpush1.bf16.msra.mxu0 %v993
    %1325 = vmatprep.subr.bf16.mxu0 0
    %1326 = vmatpush1.bf16.msra.mxu0 %v994
    %1327 = vmatprep.subr.bf16.mxu0 0
    %1328 = vmatpush1.bf16.msra.mxu0 %v995
    %1329 = vmatprep.subr.bf16.mxu0 0
    %1330 = vmatpush1.bf16.msra.mxu0 %v996
    %1331 = vmatprep.subr.bf16.mxu0 0
    %1332 = vmatpush1.bf16.msra.mxu0 %v997
    %1333 = vmatprep.subr.bf16.mxu0 0
    %1334 = vmatpush1.bf16.msra.mxu0 %v998
    %1335 = vmatprep.subr.bf16.mxu0 0
    %1336 = vmatpush1.bf16.msra.mxu0 %v999
    %1337 = vmatprep.subr.bf16.mxu0 0
    %1338 = vmatpush1.bf16.msra.mxu0 %v1000
    %1339 = vmatprep.subr.bf16.mxu0 0
    %1340 = vmatpush1.bf16.msra.mxu0 %v1001
    %1341 = vmatprep.subr.bf16.mxu0 0
    %1342 = vmatpush1.bf16.msra.mxu0 %v1002
    %1343 = vmatprep.subr.bf16.mxu0 0
    %1344 = vmatpush1.bf16.msra.mxu0 %v1003
    %1345 = vmatprep.mubr.bf16.mxu0 %v503
    %1346 = vmatmul.mubr.bf16.gmra.mrb[0].mxu0 %v500
    %v1347 = vpop.f32.mrb[0].mxu0
    %v1348 = vadd.f32 %v1307, %v1347
    %v1349 = vpop.f32.mrb[0].mxu0
    %v1350 = vpop.f32.mrb[0].mxu0
    %v1351 = vadd.f32 %v1310, %v1350
    %v1352 = vpop.f32.mrb[0].mxu0
    %1353 = vdwg.mxu0
    %1354 = vmatprep.subr.bf16.mxu0 0
    %1355 = vmatpush1.bf16.msra.mxu0 %v1004
    %1356 = vmatprep.subr.bf16.mxu0 0
    %1357 = vmatpush1.bf16.msra.mxu0 %v1005
    %1358 = vmatprep.subr.bf16.mxu0 0
    %1359 = vmatpush1.bf16.msra.mxu0 0
    %1360 = vmatprep.subr.bf16.mxu0 0
    %1361 = vmatpush1.bf16.msra.mxu0 0
    %1362 = vmatprep.subr.bf16.mxu0 0
    %1363 = vmatpush1.bf16.msra.mxu0 0
    %1364 = vmatprep.subr.bf16.mxu0 0
    %1365 = vmatpush1.bf16.msra.mxu0 0
    %1366 = vmatprep.subr.bf16.mxu0 0
    %1367 = vmatpush1.bf16.msra.mxu0 0
    %1368 = vmatprep.subr.bf16.mxu0 0
    %1369 = vmatpush1.bf16.msra.mxu0 0
    %1370 = vmatprep.subr.bf16.mxu0 0
    %1371 = vmatpush1.bf16.msra.mxu0 0
    %1372 = vmatprep.subr.bf16.mxu0 0
    %1373 = vmatpush1.bf16.msra.mxu0 0
    %1374 = vmatprep.subr.bf16.mxu0 0
    %1375 = vmatpush1.bf16.msra.mxu0 0
    %1376 = vmatprep.subr.bf16.mxu0 0
    %1377 = vmatpush1.bf16.msra.mxu0 0
    %1378 = vmatprep.subr.bf16.mxu0 0
    %1379 = vmatpush1.bf16.msra.mxu0 0
    %1380 = vmatprep.subr.bf16.mxu0 0
    %1381 = vmatpush1.bf16.msra.mxu0 0
    %1382 = vmatprep.subr.bf16.mxu0 0
    %1383 = vmatpush1.bf16.msra.mxu0 0
    %1384 = vmatprep.subr.bf16.mxu0 0
    %1385 = vmatpush1.bf16.msra.mxu0 0
    %1386 = vmatprep.mubr.bf16.mxu0 0
    %1387 = vmatmul.mubr.bf16.gmra.mrb[0].mxu0 %v1106
    %v1388 = vpop.f32.mrb[0].mxu0
    %v1389 = vadd.f32 %v1348, %v1388
    %v1390 = vpop.f32.mrb[0].mxu0
    %v1391 = vpop.f32.mrb[0].mxu0
    %v1392 = vadd.f32 %v1351, %v1391
    %v1393 = vpop.f32.mrb[0].mxu0
    %1394 = vdwg.mxu0
    %vm1395 = vcmask 195584
    %1396 = vst.msk [vmem:[#allocation2] sm:$0xff] %vm1395, %v1389
    %1397 = vst.msk [vmem:[#allocation2 + $0x8] sm:$0xff] %vm1395, %v1392
    // Predicated region
    $region14: #{cnn_forward.5} parent=1 // pred_check
      _
    $region15: #{cnn_forward.5} parent=1 // pred_check_branch
      %1399 = sbr.rel (0) target = $region17
    $region16: #{cnn_forward.5} parent=1 // pred_region
      %s1401 = ssub.s32 256, 32
      %1402 = vsyncadd [#allocation3], %s1401
      %s1403 = sshll.u32 [#allocation2], 4
      %s1404 = int_to_ptr.vmem [resolvable:$true] %s1403
      %1409 = dma.vmem_to_hbm [thread:$0]  %s1404, 32, %s3, [#allocation3], 32, 32, 2
    $region17: #{cnn_forward.5} parent=1 // pred_fallthru
      _
    // Predicated region
    $region18: #{cnn_forward.5} parent=1 // pred_check
      _
    $region19: #{cnn_forward.5} parent=1 // pred_check_branch
      %1411 = sbr.rel (0) target = $region21
    $region20: #{cnn_forward.5} parent=1 // pred_region
      %1412 = dma.done [#allocation3], 256
    $region21: #{cnn_forward.5} parent=1 // pred_fallthru
      _
    %1413 = vsyncpa [#allocation3], 1

</llo_original>
